<compile_context>
chip_gen: v7x
topology: tpu7x:2x2x1
jax: 0.10.0
libtpu: 0.0.40
codegen_flags: <defaults>
</compile_context>

<pallas_src>
import jax
import jax.numpy as jnp
from jax.experimental import pallas as pl
from jax.experimental.pallas import tpu as pltpu

# ---- small, TPU-friendly shapes (scaled down from the original 1024/300/3001) ----
B = 2          # batch
BPAD = 8       # batch padded to one f32 sublane tile (tile-aligned per-step slices)
VOCAB = 64     # vocabulary size (l_dict)
T = 8          # ques_len        (scaled from 300)
E = 128        # embedding_size / text_vec_size (scaled from 1024)
H = 128        # LSTM hidden == text feature dim
R = 16         # image regions (e.g. 4x4 feature map)
D = 128        # image feature dim (== text dim, canonical SAN)
ATT = 128      # attention hidden dim
C = 256        # num_classes     (scaled from 3001)

# ---- bias-slab lane offsets (all multiples of 128) ----
_B_LSTM = 0                    # (4H,)  == PyTorch b_ih + b_hh summed
_BA1 = 4 * H                   # 512
_BA2 = _BA1 + ATT              # 640
_WP1 = _BA2 + ATT              # 768   Wp hop-1, stored transposed as a (1, ATT) row
_WP2 = _WP1 + ATT              # 896   Wp hop-2
_BU = _WP2 + ATT               # 1024
BIAS_N = _BU + C               # 1280

# ---- attention-weight-slab lane offsets ----
_WI = 0                        # wi1|wi2 : (D, 2*ATT)
_WQ = 2 * ATT                  # wq1|wq2 : (H, 2*ATT)
_WQ2 = _WQ + ATT               # wq2 alone
_WU = _WQ + 2 * ATT            # wu      : (D, C)
WATT_N = _WU + C               # 768


# ------------------------------ fused SAN kernel -------------------------------
def san_fused_kernel(tok_ref, qlen_ref, img_ref, emb_ref, wih_ref, whh_ref,
                     watt_ref, bias_ref, out_ref, x_scr, gx_scr):
    # ----------------- TextProcessing: in-kernel embedding lookup -----------------
    # Tokens live in SMEM; embedding rows are gathered from the VMEM table into a
    # time-major, batch-padded (T*BPAD, E) scratch.  Padded rows stay zero and run
    # an isolated zero-input LSTM (never read back).
    x_scr[...] = jnp.zeros_like(x_scr)
    for t in range(T):
        for b in range(B):
            tok = tok_ref[b, t]                                    # SMEM scalar
            x_scr[pl.ds(t * BPAD + b, 1), :] = emb_ref[pl.ds(tok, 1), :]

    # Hoisted LSTM input projection: ONE (T*BPAD, E) @ (E, 4H) MXU matmul, bias folded.
    gx_scr[...] = (jnp.dot(x_scr[...].astype(jnp.bfloat16), wih_ref[...],
                           preferred_element_type=jnp.float32)
                   + bias_ref[:, pl.ds(_B_LSTM, 4 * H)])           # (T*BPAD, 4H) f32

    # q_len -> (BPAD, 1) compare vector, built once from SMEM scalars (off the
    # serial path); padded rows get -1 so they never match.
    row = jax.lax.broadcasted_iota(jnp.int32, (BPAD, 1), 0)
    qvec = jnp.full((BPAD, 1), -1, jnp.int32)
    for b in range(B):
        qvec = jnp.where(row == b, qlen_ref[b], qvec)

    h = jnp.zeros((BPAD, H), jnp.float32)
    c = jnp.zeros((BPAD, H), jnp.float32)
    h_sel = jnp.zeros((BPAD, H), jnp.float32)

    # Fully unrolled recurrence (T=8): only h @ Whh is serial; every gates slice
    # starts at t*8 -> tile-aligned view, no relayout on the critical path.
    # NOTE: h is cast to bf16 for the MXU (intentional; accumulation stays f32).
    for t in range(T):
        gates = gx_scr[pl.ds(t * BPAD, BPAD), :] + jnp.dot(
            h.astype(jnp.bfloat16), whh_ref[...],
            preferred_element_type=jnp.float32)                    # (BPAD, 4H)
        i_g = jax.nn.sigmoid(gates[:, 0 * H:1 * H])
        f_g = jax.nn.sigmoid(gates[:, 1 * H:2 * H])
        g_g = jnp.tanh(gates[:, 2 * H:3 * H])
        o_g = jax.nn.sigmoid(gates[:, 3 * H:4 * H])
        c = f_g * c + i_g * g_g
        h = o_g * jnp.tanh(c)
        # hidden state at the last valid step; q_len assumed in [1, T].
        h_sel = jnp.where(qvec == (t + 1), h, h_sel)

    # -------------- StackedAttention: 2 hops, lane-dense 2D layouts --------------
    img2d = img_ref[...].reshape(B * R, D)                         # (32, 128) f32
    # Hop-invariant image projection for BOTH hops: one (32,128)@(128,256) matmul.
    hi_all = jnp.dot(img2d.astype(jnp.bfloat16), watt_ref[:, pl.ds(_WI, 2 * ATT)],
                     preferred_element_type=jnp.float32)           # (32, 256)
    # u0 @ [wq1 | wq2] upfront -> only the v1-dependent part of hq2 stays serial.
    hq0 = jnp.dot(h_sel.astype(jnp.bfloat16), watt_ref[:, pl.ds(_WQ, 2 * ATT)],
                  preferred_element_type=jnp.float32)              # (BPAD, 256)

    ba1 = bias_ref[:, pl.ds(_BA1, ATT)]
    ba2 = bias_ref[:, pl.ds(_BA2, ATT)]
    wp1 = bias_ref[:, pl.ds(_WP1, ATT)]
    wp2 = bias_ref[:, pl.ds(_WP2, ATT)]
    bu = bias_ref[:, pl.ds(_BU, C)]

    u0 = h_sel[0:B, :]                                             # (B, H) f32

    def att_hop(hi, hq, ba, wp_row):
        # hi: (B*R, ATT), hq: (B, ATT) -- everything stays 2D / lane-dense.
        hq_full = jnp.concatenate(
            [jnp.broadcast_to(hq[b:b + 1, :], (R, ATT)) for b in range(B)], axis=0)
        hA = jnp.tanh(hi + hq_full + ba)                           # (B*R, ATT)
        # N=1 projection hA @ Wp as VPU multiply + lane reduction (MXU stays free).
        # NOTE: scalar bias bP is uniform over regions -> cancels in the softmax.
        s = jnp.sum(hA * wp_row, axis=-1, keepdims=True)           # (B*R, 1)
        v_rows = []
        for b in range(B):                                         # per-batch (16, .) 2D
            sb = s[b * R:(b + 1) * R, :]                           # (R, 1)
            eb = jnp.exp(sb - jnp.max(sb, axis=0, keepdims=True))
            pb = eb / jnp.sum(eb, axis=0, keepdims=True)           # softmax over regions
            v_rows.append(jnp.sum(pb * img2d[b * R:(b + 1) * R, :],
                                  axis=0, keepdims=True))          # (1, D) f32 features
        return jnp.concatenate(v_rows, axis=0)                     # (B, D)

    # Hop 1.
    v1 = att_hop(hi_all[:, 0:ATT], hq0[0:B, 0:ATT], ba1, wp1)
    u1 = v1 + u0
    # Hop 2: hq2 = u1 @ wq2 = (u0 @ wq2) + (v1 @ wq2); first term already in hq0.
    hq2 = hq0[0:B, ATT:2 * ATT] + jnp.dot(
        v1.astype(jnp.bfloat16), watt_ref[:, pl.ds(_WQ2, ATT)],
        preferred_element_type=jnp.float32)
    v2 = att_hop(hi_all[:, ATT:2 * ATT], hq2, ba2, wp2)
    u2 = v2 + u1

    # Final classifier (logits), lane-dense (B, 256) output block.
    out_ref[...] = (jnp.dot(u2.astype(jnp.bfloat16), watt_ref[:, pl.ds(_WU, C)],
                            preferred_element_type=jnp.float32) + bu)


# ---------------------------------- full model ------------------------------------
def san_model_forward(text_tokens, img_vec, q_len, params):
    """text_tokens: (B, T) int32 ids; img_vec: (B, R, D) f32; q_len: (B,) int32 in [1, T]."""
    vmem = pl.BlockSpec(memory_space=pltpu.MemorySpace.VMEM)
    smem = pl.BlockSpec(memory_space=pltpu.MemorySpace.SMEM)
    return pl.pallas_call(
        san_fused_kernel,
        out_shape=jax.ShapeDtypeStruct((B, C), jnp.float32),
        in_specs=[smem, smem, vmem, vmem, vmem, vmem, vmem, vmem],
        out_specs=vmem,
        scratch_shapes=[
            pltpu.VMEM((T * BPAD, E), jnp.float32),      # gathered embeddings (time-major)
            pltpu.VMEM((T * BPAD, 4 * H), jnp.float32),  # hoisted input-projection gates
        ],
    )(text_tokens, q_len, img_vec,
      params["emb"], params["wih"], params["whh"], params["w_att"], params["bias"])


def init_params(key):
    ks = jax.random.split(key, 16)

    def nrm(k, shape, dtype=jnp.float32, scale=0.05):
        return (jax.random.normal(k, shape, jnp.float32) * scale).astype(dtype)

    bf = jnp.bfloat16
    wi1 = nrm(ks[1], (D, ATT), bf)
    wi2 = nrm(ks[2], (D, ATT), bf)
    wq1 = nrm(ks[3], (H, ATT), bf)
    wq2 = nrm(ks[4], (H, ATT), bf)
    wu = nrm(ks[5], (D, C), bf)
    b_lstm = nrm(ks[6], (1, 4 * H))      # PyTorch b_ih + b_hh summed
    ba1 = nrm(ks[7], (1, ATT))
    ba2 = nrm(ks[8], (1, ATT))
    wp1 = nrm(ks[9], (1, ATT))           # Wp stored transposed as a (1, ATT) row
    wp2 = nrm(ks[10], (1, ATT))
    bu = nrm(ks[11], (1, C))

    # One-time (init-side) operand consolidation: 2 weight slabs + 1 bias slab.
    w_att = jnp.concatenate([wi1, wi2, wq1, wq2, wu], axis=1)           # (128, 768) bf16
    bias = jnp.concatenate([b_lstm, ba1, ba2, wp1, wp2, bu], axis=1)    # (1, 1280) f32
    assert w_att.shape == (D, WATT_N) and bias.shape == (1, BIAS_N)

    return {
        "emb": nrm(ks[12], (VOCAB, E)),              # f32 embedding table (gathered in-kernel)
        "wih": nrm(ks[13], (E, 4 * H), bf),
        "whh": nrm(ks[14], (H, 4 * H), bf),
        "w_att": w_att,
        "bias": bias,
    }


if __name__ == "__main__":
    key = jax.random.PRNGKey(0)
    kp, kt, kl, ki = jax.random.split(key, 4)

    params = init_params(kp)
    text_tokens = jax.random.randint(kt, (B, T), 0, VOCAB, dtype=jnp.int32)  # token ids
    q_len = jax.random.randint(kl, (B,), 1, T + 1, dtype=jnp.int32)          # lengths in [1, T]
    img_vec = jax.random.normal(ki, (B, R, D), jnp.float32)                  # region features

    # TODO(synk): dropout argument of TextProcessing is None in this config -> no-op.
    pred = san_model_forward(text_tokens, img_vec, q_len, params)
    pred = jax.block_until_ready(pred)
    assert pred.shape == (B, C) and pred.dtype == jnp.float32
    assert bool(jnp.all(jnp.isfinite(pred)))
    print("KERNEL_OK")
</pallas_src>

<mosaic_0001>
module attributes {stable_mosaic.version = 11 : i64} {
  func.func @san_fused_kernel(%arg0: memref<2x8xi32, #tpu.memory_space<smem>>, %arg1: memref<2xi32, #tpu.memory_space<smem>>, %arg2: memref<2x16x128xf32, #tpu.memory_space<vmem>>, %arg3: memref<64x128xf32, #tpu.memory_space<vmem>>, %arg4: memref<128x512xbf16, #tpu.memory_space<vmem>>, %arg5: memref<128x512xbf16, #tpu.memory_space<vmem>>, %arg6: memref<128x768xbf16, #tpu.memory_space<vmem>>, %arg7: memref<1x1280xf32, #tpu.memory_space<vmem>>, %arg8: memref<2x256xf32, #tpu.memory_space<vmem>>, %arg9: memref<64x128xf32, #tpu.memory_space<vmem>>, %arg10: memref<64x512xf32, #tpu.memory_space<vmem>>) attributes {dimension_semantics = [], scalar_prefetch = 0 : i64, scratch_operands = 2 : i64, tpu.core_type = #tpu.core_type<tc>} {
    %cst = arith.constant 0.000000e+00 : f32
    %0 = vector.broadcast %cst : f32 to vector<64x128xf32>
    %c0 = arith.constant 0 : index
    %c0_0 = arith.constant 0 : index
    %1 = vector.load %arg9[%c0, %c0_0] : memref<64x128xf32, #tpu.memory_space<vmem>>, vector<64x128xf32>
    tpu.vector_store %arg9[%c0, %c0_0], %0 {strides = array<i32>} : memref<64x128xf32, #tpu.memory_space<vmem>>, vector<64x128xf32>,
    %c0_1 = arith.constant 0 : index
    %c0_2 = arith.constant 0 : index
    %2 = memref.load %arg0[%c0_1, %c0_2] : memref<2x8xi32, #tpu.memory_space<smem>>
    %3 = arith.index_cast %2 : i32 to index
    %c0_3 = arith.constant 0 : index
    %4 = vector.load %arg3[%3, %c0_3] : memref<64x128xf32, #tpu.memory_space<vmem>>, vector<1x128xf32>
    %c0_4 = arith.constant 0 : index
    %c0_5 = arith.constant 0 : index
    %5 = vector.load %arg9[%c0_4, %c0_5] : memref<64x128xf32, #tpu.memory_space<vmem>>, vector<1x128xf32>
    tpu.vector_store %arg9[%c0_4, %c0_5], %4 {strides = array<i32>} : memref<64x128xf32, #tpu.memory_space<vmem>>, vector<1x128xf32>,
    %c1 = arith.constant 1 : index
    %c0_6 = arith.constant 0 : index
    %6 = memref.load %arg0[%c1, %c0_6] : memref<2x8xi32, #tpu.memory_space<smem>>
    %7 = arith.index_cast %6 : i32 to index
    %c0_7 = arith.constant 0 : index
    %8 = vector.load %arg3[%7, %c0_7] : memref<64x128xf32, #tpu.memory_space<vmem>>, vector<1x128xf32>
    %c1_8 = arith.constant 1 : index
    %c0_9 = arith.constant 0 : index
    %9 = vector.load %arg9[%c1_8, %c0_9] : memref<64x128xf32, #tpu.memory_space<vmem>>, vector<1x128xf32>
    tpu.vector_store %arg9[%c1_8, %c0_9], %8 {strides = array<i32>} : memref<64x128xf32, #tpu.memory_space<vmem>>, vector<1x128xf32>,
    %c0_10 = arith.constant 0 : index
    %c1_11 = arith.constant 1 : index
    %10 = memref.load %arg0[%c0_10, %c1_11] : memref<2x8xi32, #tpu.memory_space<smem>>
    %11 = arith.index_cast %10 : i32 to index
    %c0_12 = arith.constant 0 : index
    %12 = vector.load %arg3[%11, %c0_12] : memref<64x128xf32, #tpu.memory_space<vmem>>, vector<1x128xf32>
    %c8 = arith.constant 8 : index
    %c0_13 = arith.constant 0 : index
    %13 = vector.load %arg9[%c8, %c0_13] : memref<64x128xf32, #tpu.memory_space<vmem>>, vector<1x128xf32>
    tpu.vector_store %arg9[%c8, %c0_13], %12 {strides = array<i32>} : memref<64x128xf32, #tpu.memory_space<vmem>>, vector<1x128xf32>,
    %c1_14 = arith.constant 1 : index
    %c1_15 = arith.constant 1 : index
    %14 = memref.load %arg0[%c1_14, %c1_15] : memref<2x8xi32, #tpu.memory_space<smem>>
    %15 = arith.index_cast %14 : i32 to index
    %c0_16 = arith.constant 0 : index
    %16 = vector.load %arg3[%15, %c0_16] : memref<64x128xf32, #tpu.memory_space<vmem>>, vector<1x128xf32>
    %c9 = arith.constant 9 : index
    %c0_17 = arith.constant 0 : index
    %17 = vector.load %arg9[%c9, %c0_17] : memref<64x128xf32, #tpu.memory_space<vmem>>, vector<1x128xf32>
    tpu.vector_store %arg9[%c9, %c0_17], %16 {strides = array<i32>} : memref<64x128xf32, #tpu.memory_space<vmem>>, vector<1x128xf32>,
    %c0_18 = arith.constant 0 : index
    %c2 = arith.constant 2 : index
    %18 = memref.load %arg0[%c0_18, %c2] : memref<2x8xi32, #tpu.memory_space<smem>>
    %19 = arith.index_cast %18 : i32 to index
    %c0_19 = arith.constant 0 : index
    %20 = vector.load %arg3[%19, %c0_19] : memref<64x128xf32, #tpu.memory_space<vmem>>, vector<1x128xf32>
    %c16 = arith.constant 16 : index
    %c0_20 = arith.constant 0 : index
    %21 = vector.load %arg9[%c16, %c0_20] : memref<64x128xf32, #tpu.memory_space<vmem>>, vector<1x128xf32>
    tpu.vector_store %arg9[%c16, %c0_20], %20 {strides = array<i32>} : memref<64x128xf32, #tpu.memory_space<vmem>>, vector<1x128xf32>,
    %c1_21 = arith.constant 1 : index
    %c2_22 = arith.constant 2 : index
    %22 = memref.load %arg0[%c1_21, %c2_22] : memref<2x8xi32, #tpu.memory_space<smem>>
    %23 = arith.index_cast %22 : i32 to index
    %c0_23 = arith.constant 0 : index
    %24 = vector.load %arg3[%23, %c0_23] : memref<64x128xf32, #tpu.memory_space<vmem>>, vector<1x128xf32>
    %c17 = arith.constant 17 : index
    %c0_24 = arith.constant 0 : index
    %25 = vector.load %arg9[%c17, %c0_24] : memref<64x128xf32, #tpu.memory_space<vmem>>, vector<1x128xf32>
    tpu.vector_store %arg9[%c17, %c0_24], %24 {strides = array<i32>} : memref<64x128xf32, #tpu.memory_space<vmem>>, vector<1x128xf32>,
    %c0_25 = arith.constant 0 : index
    %c3 = arith.constant 3 : index
    %26 = memref.load %arg0[%c0_25, %c3] : memref<2x8xi32, #tpu.memory_space<smem>>
    %27 = arith.index_cast %26 : i32 to index
    %c0_26 = arith.constant 0 : index
    %28 = vector.load %arg3[%27, %c0_26] : memref<64x128xf32, #tpu.memory_space<vmem>>, vector<1x128xf32>
    %c24 = arith.constant 24 : index
    %c0_27 = arith.constant 0 : index
    %29 = vector.load %arg9[%c24, %c0_27] : memref<64x128xf32, #tpu.memory_space<vmem>>, vector<1x128xf32>
    tpu.vector_store %arg9[%c24, %c0_27], %28 {strides = array<i32>} : memref<64x128xf32, #tpu.memory_space<vmem>>, vector<1x128xf32>,
    %c1_28 = arith.constant 1 : index
    %c3_29 = arith.constant 3 : index
    %30 = memref.load %arg0[%c1_28, %c3_29] : memref<2x8xi32, #tpu.memory_space<smem>>
    %31 = arith.index_cast %30 : i32 to index
    %c0_30 = arith.constant 0 : index
    %32 = vector.load %arg3[%31, %c0_30] : memref<64x128xf32, #tpu.memory_space<vmem>>, vector<1x128xf32>
    %c25 = arith.constant 25 : index
    %c0_31 = arith.constant 0 : index
    %33 = vector.load %arg9[%c25, %c0_31] : memref<64x128xf32, #tpu.memory_space<vmem>>, vector<1x128xf32>
    tpu.vector_store %arg9[%c25, %c0_31], %32 {strides = array<i32>} : memref<64x128xf32, #tpu.memory_space<vmem>>, vector<1x128xf32>,
    %c0_32 = arith.constant 0 : index
    %c4 = arith.constant 4 : index
    %34 = memref.load %arg0[%c0_32, %c4] : memref<2x8xi32, #tpu.memory_space<smem>>
    %35 = arith.index_cast %34 : i32 to index
    %c0_33 = arith.constant 0 : index
    %36 = vector.load %arg3[%35, %c0_33] : memref<64x128xf32, #tpu.memory_space<vmem>>, vector<1x128xf32>
    %c32 = arith.constant 32 : index
    %c0_34 = arith.constant 0 : index
    %37 = vector.load %arg9[%c32, %c0_34] : memref<64x128xf32, #tpu.memory_space<vmem>>, vector<1x128xf32>
    tpu.vector_store %arg9[%c32, %c0_34], %36 {strides = array<i32>} : memref<64x128xf32, #tpu.memory_space<vmem>>, vector<1x128xf32>,
    %c1_35 = arith.constant 1 : index
    %c4_36 = arith.constant 4 : index
    %38 = memref.load %arg0[%c1_35, %c4_36] : memref<2x8xi32, #tpu.memory_space<smem>>
    %39 = arith.index_cast %38 : i32 to index
    %c0_37 = arith.constant 0 : index
    %40 = vector.load %arg3[%39, %c0_37] : memref<64x128xf32, #tpu.memory_space<vmem>>, vector<1x128xf32>
    %c33 = arith.constant 33 : index
    %c0_38 = arith.constant 0 : index
    %41 = vector.load %arg9[%c33, %c0_38] : memref<64x128xf32, #tpu.memory_space<vmem>>, vector<1x128xf32>
    tpu.vector_store %arg9[%c33, %c0_38], %40 {strides = array<i32>} : memref<64x128xf32, #tpu.memory_space<vmem>>, vector<1x128xf32>,
    %c0_39 = arith.constant 0 : index
    %c5 = arith.constant 5 : index
    %42 = memref.load %arg0[%c0_39, %c5] : memref<2x8xi32, #tpu.memory_space<smem>>
    %43 = arith.index_cast %42 : i32 to index
    %c0_40 = arith.constant 0 : index
    %44 = vector.load %arg3[%43, %c0_40] : memref<64x128xf32, #tpu.memory_space<vmem>>, vector<1x128xf32>
    %c40 = arith.constant 40 : index
    %c0_41 = arith.constant 0 : index
    %45 = vector.load %arg9[%c40, %c0_41] : memref<64x128xf32, #tpu.memory_space<vmem>>, vector<1x128xf32>
    tpu.vector_store %arg9[%c40, %c0_41], %44 {strides = array<i32>} : memref<64x128xf32, #tpu.memory_space<vmem>>, vector<1x128xf32>,
    %c1_42 = arith.constant 1 : index
    %c5_43 = arith.constant 5 : index
    %46 = memref.load %arg0[%c1_42, %c5_43] : memref<2x8xi32, #tpu.memory_space<smem>>
    %47 = arith.index_cast %46 : i32 to index
    %c0_44 = arith.constant 0 : index
    %48 = vector.load %arg3[%47, %c0_44] : memref<64x128xf32, #tpu.memory_space<vmem>>, vector<1x128xf32>
    %c41 = arith.constant 41 : index
    %c0_45 = arith.constant 0 : index
    %49 = vector.load %arg9[%c41, %c0_45] : memref<64x128xf32, #tpu.memory_space<vmem>>, vector<1x128xf32>
    tpu.vector_store %arg9[%c41, %c0_45], %48 {strides = array<i32>} : memref<64x128xf32, #tpu.memory_space<vmem>>, vector<1x128xf32>,
    %c0_46 = arith.constant 0 : index
    %c6 = arith.constant 6 : index
    %50 = memref.load %arg0[%c0_46, %c6] : memref<2x8xi32, #tpu.memory_space<smem>>
    %51 = arith.index_cast %50 : i32 to index
    %c0_47 = arith.constant 0 : index
    %52 = vector.load %arg3[%51, %c0_47] : memref<64x128xf32, #tpu.memory_space<vmem>>, vector<1x128xf32>
    %c48 = arith.constant 48 : index
    %c0_48 = arith.constant 0 : index
    %53 = vector.load %arg9[%c48, %c0_48] : memref<64x128xf32, #tpu.memory_space<vmem>>, vector<1x128xf32>
    tpu.vector_store %arg9[%c48, %c0_48], %52 {strides = array<i32>} : memref<64x128xf32, #tpu.memory_space<vmem>>, vector<1x128xf32>,
    %c1_49 = arith.constant 1 : index
    %c6_50 = arith.constant 6 : index
    %54 = memref.load %arg0[%c1_49, %c6_50] : memref<2x8xi32, #tpu.memory_space<smem>>
    %55 = arith.index_cast %54 : i32 to index
    %c0_51 = arith.constant 0 : index
    %56 = vector.load %arg3[%55, %c0_51] : memref<64x128xf32, #tpu.memory_space<vmem>>, vector<1x128xf32>
    %c49 = arith.constant 49 : index
    %c0_52 = arith.constant 0 : index
    %57 = vector.load %arg9[%c49, %c0_52] : memref<64x128xf32, #tpu.memory_space<vmem>>, vector<1x128xf32>
    tpu.vector_store %arg9[%c49, %c0_52], %56 {strides = array<i32>} : memref<64x128xf32, #tpu.memory_space<vmem>>, vector<1x128xf32>,
    %c0_53 = arith.constant 0 : index
    %c7 = arith.constant 7 : index
    %58 = memref.load %arg0[%c0_53, %c7] : memref<2x8xi32, #tpu.memory_space<smem>>
    %59 = arith.index_cast %58 : i32 to index
    %c0_54 = arith.constant 0 : index
    %60 = vector.load %arg3[%59, %c0_54] : memref<64x128xf32, #tpu.memory_space<vmem>>, vector<1x128xf32>
    %c56 = arith.constant 56 : index
    %c0_55 = arith.constant 0 : index
    %61 = vector.load %arg9[%c56, %c0_55] : memref<64x128xf32, #tpu.memory_space<vmem>>, vector<1x128xf32>
    tpu.vector_store %arg9[%c56, %c0_55], %60 {strides = array<i32>} : memref<64x128xf32, #tpu.memory_space<vmem>>, vector<1x128xf32>,
    %c1_56 = arith.constant 1 : index
    %c7_57 = arith.constant 7 : index
    %62 = memref.load %arg0[%c1_56, %c7_57] : memref<2x8xi32, #tpu.memory_space<smem>>
    %63 = arith.index_cast %62 : i32 to index
    %c0_58 = arith.constant 0 : index
    %64 = vector.load %arg3[%63, %c0_58] : memref<64x128xf32, #tpu.memory_space<vmem>>, vector<1x128xf32>
    %c57 = arith.constant 57 : index
    %c0_59 = arith.constant 0 : index
    %65 = vector.load %arg9[%c57, %c0_59] : memref<64x128xf32, #tpu.memory_space<vmem>>, vector<1x128xf32>
    tpu.vector_store %arg9[%c57, %c0_59], %64 {strides = array<i32>} : memref<64x128xf32, #tpu.memory_space<vmem>>, vector<1x128xf32>,
    %c0_60 = arith.constant 0 : index
    %c0_61 = arith.constant 0 : index
    %66 = vector.load %arg9[%c0_60, %c0_61] : memref<64x128xf32, #tpu.memory_space<vmem>>, vector<64x128xf32>
    %67 = arith.truncf %66 : vector<64x128xf32> to vector<64x128xbf16>
    %c0_62 = arith.constant 0 : index
    %c0_63 = arith.constant 0 : index
    %68 = vector.load %arg4[%c0_62, %c0_63] : memref<128x512xbf16, #tpu.memory_space<vmem>>, vector<128x512xbf16>
    %cst_64 = arith.constant dense<0.000000e+00> : vector<64x512xf32>
    %69 = tpu.matmul %67, %68, %cst_64 {dimension_numbers = #tpu.dot_dimension_numbers<[1], [0], [0], [1], [0, 0, 1, 1], [], []>} : vector<64x128xbf16>, vector<128x512xbf16>, vector<64x512xf32> -> vector<64x512xf32>
    %c0_65 = arith.constant 0 : index
    %c0_66 = arith.constant 0 : index
    %70 = vector.load %arg7[%c0_65, %c0_66] : memref<1x1280xf32, #tpu.memory_space<vmem>>, vector<1x512xf32>
    %71 = vector.broadcast %70 : vector<1x512xf32> to vector<64x512xf32>
    %72 = arith.addf %69, %71 : vector<64x512xf32>
    %c0_67 = arith.constant 0 : index
    %c0_68 = arith.constant 0 : index
    %73 = vector.load %arg10[%c0_67, %c0_68] : memref<64x512xf32, #tpu.memory_space<vmem>>, vector<64x512xf32>
    tpu.vector_store %arg10[%c0_67, %c0_68], %72 {strides = array<i32>} : memref<64x512xf32, #tpu.memory_space<vmem>>, vector<64x512xf32>,
    %74 = tpu.iota {dimensions = array<i32: 0>} : vector<8x1xi32>
    %c-1_i32 = arith.constant -1 : i32
    %75 = vector.broadcast %c-1_i32 : i32 to vector<8x1xi32>
    %c0_i32 = arith.constant 0 : i32
    %76 = vector.broadcast %c0_i32 : i32 to vector<8x1xi32>
    %77 = arith.cmpi eq, %74, %76 : vector<8x1xi32>
    %c0_69 = arith.constant 0 : index
    %78 = memref.load %arg1[%c0_69] : memref<2xi32, #tpu.memory_space<smem>>
    %79 = vector.broadcast %78 : i32 to vector<8x1xi32>
    %80 = arith.select %77, %79, %75 : vector<8x1xi1>, vector<8x1xi32>
    %c1_i32 = arith.constant 1 : i32
    %81 = vector.broadcast %c1_i32 : i32 to vector<8x1xi32>
    %82 = arith.cmpi eq, %74, %81 : vector<8x1xi32>
    %c1_70 = arith.constant 1 : index
    %83 = memref.load %arg1[%c1_70] : memref<2xi32, #tpu.memory_space<smem>>
    %84 = vector.broadcast %83 : i32 to vector<8x1xi32>
    %85 = arith.select %82, %84, %80 : vector<8x1xi1>, vector<8x1xi32>
    %cst_71 = arith.constant 0.000000e+00 : f32
    %86 = vector.broadcast %cst_71 : f32 to vector<8x128xf32>
    %cst_72 = arith.constant 0.000000e+00 : f32
    %87 = vector.broadcast %cst_72 : f32 to vector<8x128xf32>
    %cst_73 = arith.constant 0.000000e+00 : f32
    %88 = vector.broadcast %cst_73 : f32 to vector<8x128xf32>
    %c0_74 = arith.constant 0 : index
    %c0_75 = arith.constant 0 : index
    %89 = vector.load %arg10[%c0_74, %c0_75] : memref<64x512xf32, #tpu.memory_space<vmem>>, vector<8x512xf32>
    %90 = arith.truncf %86 : vector<8x128xf32> to vector<8x128xbf16>
    %c0_76 = arith.constant 0 : index
    %c0_77 = arith.constant 0 : index
    %91 = vector.load %arg5[%c0_76, %c0_77] : memref<128x512xbf16, #tpu.memory_space<vmem>>, vector<128x512xbf16>
    %cst_78 = arith.constant dense<0.000000e+00> : vector<8x512xf32>
    %92 = tpu.matmul %90, %91, %cst_78 {dimension_numbers = #tpu.dot_dimension_numbers<[1], [0], [0], [1], [0, 0, 1, 1], [], []>} : vector<8x128xbf16>, vector<128x512xbf16>, vector<8x512xf32> -> vector<8x512xf32>
    %93 = arith.addf %89, %92 : vector<8x512xf32>
    %94 = vector.extract_strided_slice %93 {offsets = [0, 0], sizes = [8, 128], strides = [1, 1]} : vector<8x512xf32> to vector<8x128xf32>
    %95 = arith.negf %94 : vector<8x128xf32>
    %96 = math.exp %95 : vector<8x128xf32>
    %cst_79 = arith.constant 1.000000e+00 : f32
    %97 = vector.broadcast %cst_79 : f32 to vector<8x128xf32>
    %98 = arith.addf %97, %96 : vector<8x128xf32>
    %99 = arith.divf %97, %98 : vector<8x128xf32>
    %100 = vector.extract_strided_slice %93 {offsets = [0, 128], sizes = [8, 128], strides = [1, 1]} : vector<8x512xf32> to vector<8x128xf32>
    %101 = arith.negf %100 : vector<8x128xf32>
    %102 = math.exp %101 : vector<8x128xf32>
    %cst_80 = arith.constant 1.000000e+00 : f32
    %103 = vector.broadcast %cst_80 : f32 to vector<8x128xf32>
    %104 = arith.addf %103, %102 : vector<8x128xf32>
    %105 = arith.divf %103, %104 : vector<8x128xf32>
    %106 = vector.extract_strided_slice %93 {offsets = [0, 256], sizes = [8, 128], strides = [1, 1]} : vector<8x512xf32> to vector<8x128xf32>
    %107 = math.tanh %106 : vector<8x128xf32>
    %108 = vector.extract_strided_slice %93 {offsets = [0, 384], sizes = [8, 128], strides = [1, 1]} : vector<8x512xf32> to vector<8x128xf32>
    %109 = arith.negf %108 : vector<8x128xf32>
    %110 = math.exp %109 : vector<8x128xf32>
    %cst_81 = arith.constant 1.000000e+00 : f32
    %111 = vector.broadcast %cst_81 : f32 to vector<8x128xf32>
    %112 = arith.addf %111, %110 : vector<8x128xf32>
    %113 = arith.divf %111, %112 : vector<8x128xf32>
    %114 = arith.mulf %105, %87 : vector<8x128xf32>
    %115 = arith.mulf %99, %107 : vector<8x128xf32>
    %116 = arith.addf %114, %115 : vector<8x128xf32>
    %117 = math.tanh %116 : vector<8x128xf32>
    %118 = arith.mulf %113, %117 : vector<8x128xf32>
    %c1_i32_82 = arith.constant 1 : i32
    %119 = vector.broadcast %c1_i32_82 : i32 to vector<8x1xi32>
    %120 = arith.cmpi eq, %85, %119 : vector<8x1xi32>
    %121 = vector.shape_cast %120 : vector<8x1xi1> to vector<8x1xi1>
    %122 = vector.broadcast %121 : vector<8x1xi1> to vector<8x128xi1>
    %123 = arith.select %122, %118, %88 : vector<8x128xi1>, vector<8x128xf32>
    %c8_83 = arith.constant 8 : index
    %c0_84 = arith.constant 0 : index
    %124 = vector.load %arg10[%c8_83, %c0_84] : memref<64x512xf32, #tpu.memory_space<vmem>>, vector<8x512xf32>
    %125 = arith.truncf %118 : vector<8x128xf32> to vector<8x128xbf16>
    %c0_85 = arith.constant 0 : index
    %c0_86 = arith.constant 0 : index
    %126 = vector.load %arg5[%c0_85, %c0_86] : memref<128x512xbf16, #tpu.memory_space<vmem>>, vector<128x512xbf16>
    %cst_87 = arith.constant dense<0.000000e+00> : vector<8x512xf32>
    %127 = tpu.matmul %125, %126, %cst_87 {dimension_numbers = #tpu.dot_dimension_numbers<[1], [0], [0], [1], [0, 0, 1, 1], [], []>} : vector<8x128xbf16>, vector<128x512xbf16>, vector<8x512xf32> -> vector<8x512xf32>
    %128 = arith.addf %124, %127 : vector<8x512xf32>
    %129 = vector.extract_strided_slice %128 {offsets = [0, 0], sizes = [8, 128], strides = [1, 1]} : vector<8x512xf32> to vector<8x128xf32>
    %130 = arith.negf %129 : vector<8x128xf32>
    %131 = math.exp %130 : vector<8x128xf32>
    %cst_88 = arith.constant 1.000000e+00 : f32
    %132 = vector.broadcast %cst_88 : f32 to vector<8x128xf32>
    %133 = arith.addf %132, %131 : vector<8x128xf32>
    %134 = arith.divf %132, %133 : vector<8x128xf32>
    %135 = vector.extract_strided_slice %128 {offsets = [0, 128], sizes = [8, 128], strides = [1, 1]} : vector<8x512xf32> to vector<8x128xf32>
    %136 = arith.negf %135 : vector<8x128xf32>
    %137 = math.exp %136 : vector<8x128xf32>
    %cst_89 = arith.constant 1.000000e+00 : f32
    %138 = vector.broadcast %cst_89 : f32 to vector<8x128xf32>
    %139 = arith.addf %138, %137 : vector<8x128xf32>
    %140 = arith.divf %138, %139 : vector<8x128xf32>
    %141 = vector.extract_strided_slice %128 {offsets = [0, 256], sizes = [8, 128], strides = [1, 1]} : vector<8x512xf32> to vector<8x128xf32>
    %142 = math.tanh %141 : vector<8x128xf32>
    %143 = vector.extract_strided_slice %128 {offsets = [0, 384], sizes = [8, 128], strides = [1, 1]} : vector<8x512xf32> to vector<8x128xf32>
    %144 = arith.negf %143 : vector<8x128xf32>
    %145 = math.exp %144 : vector<8x128xf32>
    %cst_90 = arith.constant 1.000000e+00 : f32
    %146 = vector.broadcast %cst_90 : f32 to vector<8x128xf32>
    %147 = arith.addf %146, %145 : vector<8x128xf32>
    %148 = arith.divf %146, %147 : vector<8x128xf32>
    %149 = arith.mulf %140, %116 : vector<8x128xf32>
    %150 = arith.mulf %134, %142 : vector<8x128xf32>
    %151 = arith.addf %149, %150 : vector<8x128xf32>
    %152 = math.tanh %151 : vector<8x128xf32>
    %153 = arith.mulf %148, %152 : vector<8x128xf32>
    %c2_i32 = arith.constant 2 : i32
    %154 = vector.broadcast %c2_i32 : i32 to vector<8x1xi32>
    %155 = arith.cmpi eq, %85, %154 : vector<8x1xi32>
    %156 = vector.shape_cast %155 : vector<8x1xi1> to vector<8x1xi1>
    %157 = vector.broadcast %156 : vector<8x1xi1> to vector<8x128xi1>
    %158 = arith.select %157, %153, %123 : vector<8x128xi1>, vector<8x128xf32>
    %c16_91 = arith.constant 16 : index
    %c0_92 = arith.constant 0 : index
    %159 = vector.load %arg10[%c16_91, %c0_92] : memref<64x512xf32, #tpu.memory_space<vmem>>, vector<8x512xf32>
    %160 = arith.truncf %153 : vector<8x128xf32> to vector<8x128xbf16>
    %c0_93 = arith.constant 0 : index
    %c0_94 = arith.constant 0 : index
    %161 = vector.load %arg5[%c0_93, %c0_94] : memref<128x512xbf16, #tpu.memory_space<vmem>>, vector<128x512xbf16>
    %cst_95 = arith.constant dense<0.000000e+00> : vector<8x512xf32>
    %162 = tpu.matmul %160, %161, %cst_95 {dimension_numbers = #tpu.dot_dimension_numbers<[1], [0], [0], [1], [0, 0, 1, 1], [], []>} : vector<8x128xbf16>, vector<128x512xbf16>, vector<8x512xf32> -> vector<8x512xf32>
    %163 = arith.addf %159, %162 : vector<8x512xf32>
    %164 = vector.extract_strided_slice %163 {offsets = [0, 0], sizes = [8, 128], strides = [1, 1]} : vector<8x512xf32> to vector<8x128xf32>
    %165 = arith.negf %164 : vector<8x128xf32>
    %166 = math.exp %165 : vector<8x128xf32>
    %cst_96 = arith.constant 1.000000e+00 : f32
    %167 = vector.broadcast %cst_96 : f32 to vector<8x128xf32>
    %168 = arith.addf %167, %166 : vector<8x128xf32>
    %169 = arith.divf %167, %168 : vector<8x128xf32>
    %170 = vector.extract_strided_slice %163 {offsets = [0, 128], sizes = [8, 128], strides = [1, 1]} : vector<8x512xf32> to vector<8x128xf32>
    %171 = arith.negf %170 : vector<8x128xf32>
    %172 = math.exp %171 : vector<8x128xf32>
    %cst_97 = arith.constant 1.000000e+00 : f32
    %173 = vector.broadcast %cst_97 : f32 to vector<8x128xf32>
    %174 = arith.addf %173, %172 : vector<8x128xf32>
    %175 = arith.divf %173, %174 : vector<8x128xf32>
    %176 = vector.extract_strided_slice %163 {offsets = [0, 256], sizes = [8, 128], strides = [1, 1]} : vector<8x512xf32> to vector<8x128xf32>
    %177 = math.tanh %176 : vector<8x128xf32>
    %178 = vector.extract_strided_slice %163 {offsets = [0, 384], sizes = [8, 128], strides = [1, 1]} : vector<8x512xf32> to vector<8x128xf32>
    %179 = arith.negf %178 : vector<8x128xf32>
    %180 = math.exp %179 : vector<8x128xf32>
    %cst_98 = arith.constant 1.000000e+00 : f32
    %181 = vector.broadcast %cst_98 : f32 to vector<8x128xf32>
    %182 = arith.addf %181, %180 : vector<8x128xf32>
    %183 = arith.divf %181, %182 : vector<8x128xf32>
    %184 = arith.mulf %175, %151 : vector<8x128xf32>
    %185 = arith.mulf %169, %177 : vector<8x128xf32>
    %186 = arith.addf %184, %185 : vector<8x128xf32>
    %187 = math.tanh %186 : vector<8x128xf32>
    %188 = arith.mulf %183, %187 : vector<8x128xf32>
    %c3_i32 = arith.constant 3 : i32
    %189 = vector.broadcast %c3_i32 : i32 to vector<8x1xi32>
    %190 = arith.cmpi eq, %85, %189 : vector<8x1xi32>
    %191 = vector.shape_cast %190 : vector<8x1xi1> to vector<8x1xi1>
    %192 = vector.broadcast %191 : vector<8x1xi1> to vector<8x128xi1>
    %193 = arith.select %192, %188, %158 : vector<8x128xi1>, vector<8x128xf32>
    %c24_99 = arith.constant 24 : index
    %c0_100 = arith.constant 0 : index
    %194 = vector.load %arg10[%c24_99, %c0_100] : memref<64x512xf32, #tpu.memory_space<vmem>>, vector<8x512xf32>
    %195 = arith.truncf %188 : vector<8x128xf32> to vector<8x128xbf16>
    %c0_101 = arith.constant 0 : index
    %c0_102 = arith.constant 0 : index
    %196 = vector.load %arg5[%c0_101, %c0_102] : memref<128x512xbf16, #tpu.memory_space<vmem>>, vector<128x512xbf16>
    %cst_103 = arith.constant dense<0.000000e+00> : vector<8x512xf32>
    %197 = tpu.matmul %195, %196, %cst_103 {dimension_numbers = #tpu.dot_dimension_numbers<[1], [0], [0], [1], [0, 0, 1, 1], [], []>} : vector<8x128xbf16>, vector<128x512xbf16>, vector<8x512xf32> -> vector<8x512xf32>
    %198 = arith.addf %194, %197 : vector<8x512xf32>
    %199 = vector.extract_strided_slice %198 {offsets = [0, 0], sizes = [8, 128], strides = [1, 1]} : vector<8x512xf32> to vector<8x128xf32>
    %200 = arith.negf %199 : vector<8x128xf32>
    %201 = math.exp %200 : vector<8x128xf32>
    %cst_104 = arith.constant 1.000000e+00 : f32
    %202 = vector.broadcast %cst_104 : f32 to vector<8x128xf32>
    %203 = arith.addf %202, %201 : vector<8x128xf32>
    %204 = arith.divf %202, %203 : vector<8x128xf32>
    %205 = vector.extract_strided_slice %198 {offsets = [0, 128], sizes = [8, 128], strides = [1, 1]} : vector<8x512xf32> to vector<8x128xf32>
    %206 = arith.negf %205 : vector<8x128xf32>
    %207 = math.exp %206 : vector<8x128xf32>
    %cst_105 = arith.constant 1.000000e+00 : f32
    %208 = vector.broadcast %cst_105 : f32 to vector<8x128xf32>
    %209 = arith.addf %208, %207 : vector<8x128xf32>
    %210 = arith.divf %208, %209 : vector<8x128xf32>
    %211 = vector.extract_strided_slice %198 {offsets = [0, 256], sizes = [8, 128], strides = [1, 1]} : vector<8x512xf32> to vector<8x128xf32>
    %212 = math.tanh %211 : vector<8x128xf32>
    %213 = vector.extract_strided_slice %198 {offsets = [0, 384], sizes = [8, 128], strides = [1, 1]} : vector<8x512xf32> to vector<8x128xf32>
    %214 = arith.negf %213 : vector<8x128xf32>
    %215 = math.exp %214 : vector<8x128xf32>
    %cst_106 = arith.constant 1.000000e+00 : f32
    %216 = vector.broadcast %cst_106 : f32 to vector<8x128xf32>
    %217 = arith.addf %216, %215 : vector<8x128xf32>
    %218 = arith.divf %216, %217 : vector<8x128xf32>
    %219 = arith.mulf %210, %186 : vector<8x128xf32>
    %220 = arith.mulf %204, %212 : vector<8x128xf32>
    %221 = arith.addf %219, %220 : vector<8x128xf32>
    %222 = math.tanh %221 : vector<8x128xf32>
    %223 = arith.mulf %218, %222 : vector<8x128xf32>
    %c4_i32 = arith.constant 4 : i32
    %224 = vector.broadcast %c4_i32 : i32 to vector<8x1xi32>
    %225 = arith.cmpi eq, %85, %224 : vector<8x1xi32>
    %226 = vector.shape_cast %225 : vector<8x1xi1> to vector<8x1xi1>
    %227 = vector.broadcast %226 : vector<8x1xi1> to vector<8x128xi1>
    %228 = arith.select %227, %223, %193 : vector<8x128xi1>, vector<8x128xf32>
    %c32_107 = arith.constant 32 : index
    %c0_108 = arith.constant 0 : index
    %229 = vector.load %arg10[%c32_107, %c0_108] : memref<64x512xf32, #tpu.memory_space<vmem>>, vector<8x512xf32>
    %230 = arith.truncf %223 : vector<8x128xf32> to vector<8x128xbf16>
    %c0_109 = arith.constant 0 : index
    %c0_110 = arith.constant 0 : index
    %231 = vector.load %arg5[%c0_109, %c0_110] : memref<128x512xbf16, #tpu.memory_space<vmem>>, vector<128x512xbf16>
    %cst_111 = arith.constant dense<0.000000e+00> : vector<8x512xf32>
    %232 = tpu.matmul %230, %231, %cst_111 {dimension_numbers = #tpu.dot_dimension_numbers<[1], [0], [0], [1], [0, 0, 1, 1], [], []>} : vector<8x128xbf16>, vector<128x512xbf16>, vector<8x512xf32> -> vector<8x512xf32>
    %233 = arith.addf %229, %232 : vector<8x512xf32>
    %234 = vector.extract_strided_slice %233 {offsets = [0, 0], sizes = [8, 128], strides = [1, 1]} : vector<8x512xf32> to vector<8x128xf32>
    %235 = arith.negf %234 : vector<8x128xf32>
    %236 = math.exp %235 : vector<8x128xf32>
    %cst_112 = arith.constant 1.000000e+00 : f32
    %237 = vector.broadcast %cst_112 : f32 to vector<8x128xf32>
    %238 = arith.addf %237, %236 : vector<8x128xf32>
    %239 = arith.divf %237, %238 : vector<8x128xf32>
    %240 = vector.extract_strided_slice %233 {offsets = [0, 128], sizes = [8, 128], strides = [1, 1]} : vector<8x512xf32> to vector<8x128xf32>
    %241 = arith.negf %240 : vector<8x128xf32>
    %242 = math.exp %241 : vector<8x128xf32>
    %cst_113 = arith.constant 1.000000e+00 : f32
    %243 = vector.broadcast %cst_113 : f32 to vector<8x128xf32>
    %244 = arith.addf %243, %242 : vector<8x128xf32>
    %245 = arith.divf %243, %244 : vector<8x128xf32>
    %246 = vector.extract_strided_slice %233 {offsets = [0, 256], sizes = [8, 128], strides = [1, 1]} : vector<8x512xf32> to vector<8x128xf32>
    %247 = math.tanh %246 : vector<8x128xf32>
    %248 = vector.extract_strided_slice %233 {offsets = [0, 384], sizes = [8, 128], strides = [1, 1]} : vector<8x512xf32> to vector<8x128xf32>
    %249 = arith.negf %248 : vector<8x128xf32>
    %250 = math.exp %249 : vector<8x128xf32>
    %cst_114 = arith.constant 1.000000e+00 : f32
    %251 = vector.broadcast %cst_114 : f32 to vector<8x128xf32>
    %252 = arith.addf %251, %250 : vector<8x128xf32>
    %253 = arith.divf %251, %252 : vector<8x128xf32>
    %254 = arith.mulf %245, %221 : vector<8x128xf32>
    %255 = arith.mulf %239, %247 : vector<8x128xf32>
    %256 = arith.addf %254, %255 : vector<8x128xf32>
    %257 = math.tanh %256 : vector<8x128xf32>
    %258 = arith.mulf %253, %257 : vector<8x128xf32>
    %c5_i32 = arith.constant 5 : i32
    %259 = vector.broadcast %c5_i32 : i32 to vector<8x1xi32>
    %260 = arith.cmpi eq, %85, %259 : vector<8x1xi32>
    %261 = vector.shape_cast %260 : vector<8x1xi1> to vector<8x1xi1>
    %262 = vector.broadcast %261 : vector<8x1xi1> to vector<8x128xi1>
    %263 = arith.select %262, %258, %228 : vector<8x128xi1>, vector<8x128xf32>
    %c40_115 = arith.constant 40 : index
    %c0_116 = arith.constant 0 : index
    %264 = vector.load %arg10[%c40_115, %c0_116] : memref<64x512xf32, #tpu.memory_space<vmem>>, vector<8x512xf32>
    %265 = arith.truncf %258 : vector<8x128xf32> to vector<8x128xbf16>
    %c0_117 = arith.constant 0 : index
    %c0_118 = arith.constant 0 : index
    %266 = vector.load %arg5[%c0_117, %c0_118] : memref<128x512xbf16, #tpu.memory_space<vmem>>, vector<128x512xbf16>
    %cst_119 = arith.constant dense<0.000000e+00> : vector<8x512xf32>
    %267 = tpu.matmul %265, %266, %cst_119 {dimension_numbers = #tpu.dot_dimension_numbers<[1], [0], [0], [1], [0, 0, 1, 1], [], []>} : vector<8x128xbf16>, vector<128x512xbf16>, vector<8x512xf32> -> vector<8x512xf32>
    %268 = arith.addf %264, %267 : vector<8x512xf32>
    %269 = vector.extract_strided_slice %268 {offsets = [0, 0], sizes = [8, 128], strides = [1, 1]} : vector<8x512xf32> to vector<8x128xf32>
    %270 = arith.negf %269 : vector<8x128xf32>
    %271 = math.exp %270 : vector<8x128xf32>
    %cst_120 = arith.constant 1.000000e+00 : f32
    %272 = vector.broadcast %cst_120 : f32 to vector<8x128xf32>
    %273 = arith.addf %272, %271 : vector<8x128xf32>
    %274 = arith.divf %272, %273 : vector<8x128xf32>
    %275 = vector.extract_strided_slice %268 {offsets = [0, 128], sizes = [8, 128], strides = [1, 1]} : vector<8x512xf32> to vector<8x128xf32>
    %276 = arith.negf %275 : vector<8x128xf32>
    %277 = math.exp %276 : vector<8x128xf32>
    %cst_121 = arith.constant 1.000000e+00 : f32
    %278 = vector.broadcast %cst_121 : f32 to vector<8x128xf32>
    %279 = arith.addf %278, %277 : vector<8x128xf32>
    %280 = arith.divf %278, %279 : vector<8x128xf32>
    %281 = vector.extract_strided_slice %268 {offsets = [0, 256], sizes = [8, 128], strides = [1, 1]} : vector<8x512xf32> to vector<8x128xf32>
    %282 = math.tanh %281 : vector<8x128xf32>
    %283 = vector.extract_strided_slice %268 {offsets = [0, 384], sizes = [8, 128], strides = [1, 1]} : vector<8x512xf32> to vector<8x128xf32>
    %284 = arith.negf %283 : vector<8x128xf32>
    %285 = math.exp %284 : vector<8x128xf32>
    %cst_122 = arith.constant 1.000000e+00 : f32
    %286 = vector.broadcast %cst_122 : f32 to vector<8x128xf32>
    %287 = arith.addf %286, %285 : vector<8x128xf32>
    %288 = arith.divf %286, %287 : vector<8x128xf32>
    %289 = arith.mulf %280, %256 : vector<8x128xf32>
    %290 = arith.mulf %274, %282 : vector<8x128xf32>
    %291 = arith.addf %289, %290 : vector<8x128xf32>
    %292 = math.tanh %291 : vector<8x128xf32>
    %293 = arith.mulf %288, %292 : vector<8x128xf32>
    %c6_i32 = arith.constant 6 : i32
    %294 = vector.broadcast %c6_i32 : i32 to vector<8x1xi32>
    %295 = arith.cmpi eq, %85, %294 : vector<8x1xi32>
    %296 = vector.shape_cast %295 : vector<8x1xi1> to vector<8x1xi1>
    %297 = vector.broadcast %296 : vector<8x1xi1> to vector<8x128xi1>
    %298 = arith.select %297, %293, %263 : vector<8x128xi1>, vector<8x128xf32>
    %c48_123 = arith.constant 48 : index
    %c0_124 = arith.constant 0 : index
    %299 = vector.load %arg10[%c48_123, %c0_124] : memref<64x512xf32, #tpu.memory_space<vmem>>, vector<8x512xf32>
    %300 = arith.truncf %293 : vector<8x128xf32> to vector<8x128xbf16>
    %c0_125 = arith.constant 0 : index
    %c0_126 = arith.constant 0 : index
    %301 = vector.load %arg5[%c0_125, %c0_126] : memref<128x512xbf16, #tpu.memory_space<vmem>>, vector<128x512xbf16>
    %cst_127 = arith.constant dense<0.000000e+00> : vector<8x512xf32>
    %302 = tpu.matmul %300, %301, %cst_127 {dimension_numbers = #tpu.dot_dimension_numbers<[1], [0], [0], [1], [0, 0, 1, 1], [], []>} : vector<8x128xbf16>, vector<128x512xbf16>, vector<8x512xf32> -> vector<8x512xf32>
    %303 = arith.addf %299, %302 : vector<8x512xf32>
    %304 = vector.extract_strided_slice %303 {offsets = [0, 0], sizes = [8, 128], strides = [1, 1]} : vector<8x512xf32> to vector<8x128xf32>
    %305 = arith.negf %304 : vector<8x128xf32>
    %306 = math.exp %305 : vector<8x128xf32>
    %cst_128 = arith.constant 1.000000e+00 : f32
    %307 = vector.broadcast %cst_128 : f32 to vector<8x128xf32>
    %308 = arith.addf %307, %306 : vector<8x128xf32>
    %309 = arith.divf %307, %308 : vector<8x128xf32>
    %310 = vector.extract_strided_slice %303 {offsets = [0, 128], sizes = [8, 128], strides = [1, 1]} : vector<8x512xf32> to vector<8x128xf32>
    %311 = arith.negf %310 : vector<8x128xf32>
    %312 = math.exp %311 : vector<8x128xf32>
    %cst_129 = arith.constant 1.000000e+00 : f32
    %313 = vector.broadcast %cst_129 : f32 to vector<8x128xf32>
    %314 = arith.addf %313, %312 : vector<8x128xf32>
    %315 = arith.divf %313, %314 : vector<8x128xf32>
    %316 = vector.extract_strided_slice %303 {offsets = [0, 256], sizes = [8, 128], strides = [1, 1]} : vector<8x512xf32> to vector<8x128xf32>
    %317 = math.tanh %316 : vector<8x128xf32>
    %318 = vector.extract_strided_slice %303 {offsets = [0, 384], sizes = [8, 128], strides = [1, 1]} : vector<8x512xf32> to vector<8x128xf32>
    %319 = arith.negf %318 : vector<8x128xf32>
    %320 = math.exp %319 : vector<8x128xf32>
    %cst_130 = arith.constant 1.000000e+00 : f32
    %321 = vector.broadcast %cst_130 : f32 to vector<8x128xf32>
    %322 = arith.addf %321, %320 : vector<8x128xf32>
    %323 = arith.divf %321, %322 : vector<8x128xf32>
    %324 = arith.mulf %315, %291 : vector<8x128xf32>
    %325 = arith.mulf %309, %317 : vector<8x128xf32>
    %326 = arith.addf %324, %325 : vector<8x128xf32>
    %327 = math.tanh %326 : vector<8x128xf32>
    %328 = arith.mulf %323, %327 : vector<8x128xf32>
    %c7_i32 = arith.constant 7 : i32
    %329 = vector.broadcast %c7_i32 : i32 to vector<8x1xi32>
    %330 = arith.cmpi eq, %85, %329 : vector<8x1xi32>
    %331 = vector.shape_cast %330 : vector<8x1xi1> to vector<8x1xi1>
    %332 = vector.broadcast %331 : vector<8x1xi1> to vector<8x128xi1>
    %333 = arith.select %332, %328, %298 : vector<8x128xi1>, vector<8x128xf32>
    %c56_131 = arith.constant 56 : index
    %c0_132 = arith.constant 0 : index
    %334 = vector.load %arg10[%c56_131, %c0_132] : memref<64x512xf32, #tpu.memory_space<vmem>>, vector<8x512xf32>
    %335 = arith.truncf %328 : vector<8x128xf32> to vector<8x128xbf16>
    %c0_133 = arith.constant 0 : index
    %c0_134 = arith.constant 0 : index
    %336 = vector.load %arg5[%c0_133, %c0_134] : memref<128x512xbf16, #tpu.memory_space<vmem>>, vector<128x512xbf16>
    %cst_135 = arith.constant dense<0.000000e+00> : vector<8x512xf32>
    %337 = tpu.matmul %335, %336, %cst_135 {dimension_numbers = #tpu.dot_dimension_numbers<[1], [0], [0], [1], [0, 0, 1, 1], [], []>} : vector<8x128xbf16>, vector<128x512xbf16>, vector<8x512xf32> -> vector<8x512xf32>
    %338 = arith.addf %334, %337 : vector<8x512xf32>
    %339 = vector.extract_strided_slice %338 {offsets = [0, 0], sizes = [8, 128], strides = [1, 1]} : vector<8x512xf32> to vector<8x128xf32>
    %340 = arith.negf %339 : vector<8x128xf32>
    %341 = math.exp %340 : vector<8x128xf32>
    %cst_136 = arith.constant 1.000000e+00 : f32
    %342 = vector.broadcast %cst_136 : f32 to vector<8x128xf32>
    %343 = arith.addf %342, %341 : vector<8x128xf32>
    %344 = arith.divf %342, %343 : vector<8x128xf32>
    %345 = vector.extract_strided_slice %338 {offsets = [0, 128], sizes = [8, 128], strides = [1, 1]} : vector<8x512xf32> to vector<8x128xf32>
    %346 = arith.negf %345 : vector<8x128xf32>
    %347 = math.exp %346 : vector<8x128xf32>
    %cst_137 = arith.constant 1.000000e+00 : f32
    %348 = vector.broadcast %cst_137 : f32 to vector<8x128xf32>
    %349 = arith.addf %348, %347 : vector<8x128xf32>
    %350 = arith.divf %348, %349 : vector<8x128xf32>
    %351 = vector.extract_strided_slice %338 {offsets = [0, 256], sizes = [8, 128], strides = [1, 1]} : vector<8x512xf32> to vector<8x128xf32>
    %352 = math.tanh %351 : vector<8x128xf32>
    %353 = vector.extract_strided_slice %338 {offsets = [0, 384], sizes = [8, 128], strides = [1, 1]} : vector<8x512xf32> to vector<8x128xf32>
    %354 = arith.negf %353 : vector<8x128xf32>
    %355 = math.exp %354 : vector<8x128xf32>
    %cst_138 = arith.constant 1.000000e+00 : f32
    %356 = vector.broadcast %cst_138 : f32 to vector<8x128xf32>
    %357 = arith.addf %356, %355 : vector<8x128xf32>
    %358 = arith.divf %356, %357 : vector<8x128xf32>
    %359 = arith.mulf %350, %326 : vector<8x128xf32>
    %360 = arith.mulf %344, %352 : vector<8x128xf32>
    %361 = arith.addf %359, %360 : vector<8x128xf32>
    %362 = math.tanh %361 : vector<8x128xf32>
    %363 = arith.mulf %358, %362 : vector<8x128xf32>
    %c8_i32 = arith.constant 8 : i32
    %364 = vector.broadcast %c8_i32 : i32 to vector<8x1xi32>
    %365 = arith.cmpi eq, %85, %364 : vector<8x1xi32>
    %366 = vector.shape_cast %365 : vector<8x1xi1> to vector<8x1xi1>
    %367 = vector.broadcast %366 : vector<8x1xi1> to vector<8x128xi1>
    %368 = arith.select %367, %363, %333 : vector<8x128xi1>, vector<8x128xf32>
    %c0_139 = arith.constant 0 : index
    %c0_140 = arith.constant 0 : index
    %c0_141 = arith.constant 0 : index
    %369 = vector.load %arg2[%c0_139, %c0_140, %c0_141] : memref<2x16x128xf32, #tpu.memory_space<vmem>>, vector<2x16x128xf32>
    %370 = vector.shape_cast %369 : vector<2x16x128xf32> to vector<32x128xf32>
    %371 = arith.truncf %370 : vector<32x128xf32> to vector<32x128xbf16>
    %c0_142 = arith.constant 0 : index
    %c0_143 = arith.constant 0 : index
    %372 = vector.load %arg6[%c0_142, %c0_143] : memref<128x768xbf16, #tpu.memory_space<vmem>>, vector<128x256xbf16>
    %cst_144 = arith.constant dense<0.000000e+00> : vector<32x256xf32>
    %373 = tpu.matmul %371, %372, %cst_144 {dimension_numbers = #tpu.dot_dimension_numbers<[1], [0], [0], [1], [0, 0, 1, 1], [], []>} : vector<32x128xbf16>, vector<128x256xbf16>, vector<32x256xf32> -> vector<32x256xf32>
    %374 = arith.truncf %368 : vector<8x128xf32> to vector<8x128xbf16>
    %c0_145 = arith.constant 0 : index
    %c256 = arith.constant 256 : index
    %375 = vector.load %arg6[%c0_145, %c256] : memref<128x768xbf16, #tpu.memory_space<vmem>>, vector<128x256xbf16>
    %cst_146 = arith.constant dense<0.000000e+00> : vector<8x256xf32>
    %376 = tpu.matmul %374, %375, %cst_146 {dimension_numbers = #tpu.dot_dimension_numbers<[1], [0], [0], [1], [0, 0, 1, 1], [], []>} : vector<8x128xbf16>, vector<128x256xbf16>, vector<8x256xf32> -> vector<8x256xf32>
    %c0_147 = arith.constant 0 : index
    %c512 = arith.constant 512 : index
    %377 = vector.load %arg7[%c0_147, %c512] : memref<1x1280xf32, #tpu.memory_space<vmem>>, vector<1x128xf32>
    %c0_148 = arith.constant 0 : index
    %c640 = arith.constant 640 : index
    %378 = vector.load %arg7[%c0_148, %c640] : memref<1x1280xf32, #tpu.memory_space<vmem>>, vector<1x128xf32>
    %c0_149 = arith.constant 0 : index
    %c768 = arith.constant 768 : index
    %379 = vector.load %arg7[%c0_149, %c768] : memref<1x1280xf32, #tpu.memory_space<vmem>>, vector<1x128xf32>
    %c0_150 = arith.constant 0 : index
    %c896 = arith.constant 896 : index
    %380 = vector.load %arg7[%c0_150, %c896] : memref<1x1280xf32, #tpu.memory_space<vmem>>, vector<1x128xf32>
    %c0_151 = arith.constant 0 : index
    %c1024 = arith.constant 1024 : index
    %381 = vector.load %arg7[%c0_151, %c1024] : memref<1x1280xf32, #tpu.memory_space<vmem>>, vector<1x256xf32>
    %382 = vector.extract_strided_slice %368 {offsets = [0, 0], sizes = [2, 128], strides = [1, 1]} : vector<8x128xf32> to vector<2x128xf32>
    %383 = vector.extract_strided_slice %373 {offsets = [0, 0], sizes = [32, 128], strides = [1, 1]} : vector<32x256xf32> to vector<32x128xf32>
    %384 = vector.extract_strided_slice %376 {offsets = [0, 0], sizes = [2, 128], strides = [1, 1]} : vector<8x256xf32> to vector<2x128xf32>
    %385 = vector.extract_strided_slice %384 {offsets = [0, 0], sizes = [1, 128], strides = [1, 1]} : vector<2x128xf32> to vector<1x128xf32>
    %386 = vector.shape_cast %385 : vector<1x128xf32> to vector<1x128xf32>
    %387 = vector.broadcast %386 : vector<1x128xf32> to vector<16x128xf32>
    %388 = vector.extract_strided_slice %384 {offsets = [1, 0], sizes = [1, 128], strides = [1, 1]} : vector<2x128xf32> to vector<1x128xf32>
    %389 = vector.shape_cast %388 : vector<1x128xf32> to vector<1x128xf32>
    %390 = vector.broadcast %389 : vector<1x128xf32> to vector<16x128xf32>
    %391 = tpu.concatenate %387, %390 in 0 : vector<16x128xf32>, vector<16x128xf32> -> vector<32x128xf32>
    %392 = arith.addf %383, %391 : vector<32x128xf32>
    %393 = vector.broadcast %377 : vector<1x128xf32> to vector<32x128xf32>
    %394 = arith.addf %392, %393 : vector<32x128xf32>
    %395 = math.tanh %394 : vector<32x128xf32>
    %396 = vector.broadcast %379 : vector<1x128xf32> to vector<32x128xf32>
    %397 = arith.mulf %395, %396 : vector<32x128xf32>
    %cst_152 = arith.constant dense<0.000000e+00> : vector<32xf32>
    %398 = vector.multi_reduction <add>, %397, %cst_152 [1] : vector<32x128xf32> to vector<32xf32>
    %399 = vector.shape_cast %398 : vector<32xf32> to vector<32x1xf32>
    %400 = vector.extract_strided_slice %399 {offsets = [0, 0], sizes = [16, 1], strides = [1, 1]} : vector<32x1xf32> to vector<16x1xf32>
    %cst_153 = arith.constant dense<0xFF800000> : vector<1xf32>
    %401 = vector.multi_reduction <maximumf>, %400, %cst_153 [0] : vector<16x1xf32> to vector<1xf32>
    %402 = vector.shape_cast %401 : vector<1xf32> to vector<1x1xf32>
    %403 = vector.broadcast %402 : vector<1x1xf32> to vector<16x1xf32>
    %404 = arith.subf %400, %403 : vector<16x1xf32>
    %405 = math.exp %404 : vector<16x1xf32>
    %cst_154 = arith.constant dense<0.000000e+00> : vector<1xf32>
    %406 = vector.multi_reduction <add>, %405, %cst_154 [0] : vector<16x1xf32> to vector<1xf32>
    %407 = vector.shape_cast %406 : vector<1xf32> to vector<1x1xf32>
    %408 = vector.broadcast %407 : vector<1x1xf32> to vector<16x1xf32>
    %409 = arith.divf %405, %408 : vector<16x1xf32>
    %410 = vector.extract_strided_slice %370 {offsets = [0, 0], sizes = [16, 128], strides = [1, 1]} : vector<32x128xf32> to vector<16x128xf32>
    %411 = vector.broadcast %409 : vector<16x1xf32> to vector<16x128xf32>
    %412 = arith.mulf %411, %410 : vector<16x128xf32>
    %cst_155 = arith.constant dense<0.000000e+00> : vector<128xf32>
    %413 = vector.multi_reduction <add>, %412, %cst_155 [0] : vector<16x128xf32> to vector<128xf32>
    %414 = vector.shape_cast %413 : vector<128xf32> to vector<1x128xf32>
    %415 = vector.extract_strided_slice %399 {offsets = [16, 0], sizes = [16, 1], strides = [1, 1]} : vector<32x1xf32> to vector<16x1xf32>
    %cst_156 = arith.constant dense<0xFF800000> : vector<1xf32>
    %416 = vector.multi_reduction <maximumf>, %415, %cst_156 [0] : vector<16x1xf32> to vector<1xf32>
    %417 = vector.shape_cast %416 : vector<1xf32> to vector<1x1xf32>
    %418 = vector.broadcast %417 : vector<1x1xf32> to vector<16x1xf32>
    %419 = arith.subf %415, %418 : vector<16x1xf32>
    %420 = math.exp %419 : vector<16x1xf32>
    %cst_157 = arith.constant dense<0.000000e+00> : vector<1xf32>
    %421 = vector.multi_reduction <add>, %420, %cst_157 [0] : vector<16x1xf32> to vector<1xf32>
    %422 = vector.shape_cast %421 : vector<1xf32> to vector<1x1xf32>
    %423 = vector.broadcast %422 : vector<1x1xf32> to vector<16x1xf32>
    %424 = arith.divf %420, %423 : vector<16x1xf32>
    %425 = vector.extract_strided_slice %370 {offsets = [16, 0], sizes = [16, 128], strides = [1, 1]} : vector<32x128xf32> to vector<16x128xf32>
    %426 = vector.broadcast %424 : vector<16x1xf32> to vector<16x128xf32>
    %427 = arith.mulf %426, %425 : vector<16x128xf32>
    %cst_158 = arith.constant dense<0.000000e+00> : vector<128xf32>
    %428 = vector.multi_reduction <add>, %427, %cst_158 [0] : vector<16x128xf32> to vector<128xf32>
    %429 = vector.shape_cast %428 : vector<128xf32> to vector<1x128xf32>
    %430 = tpu.concatenate %414, %429 in 0 : vector<1x128xf32>, vector<1x128xf32> -> vector<2x128xf32>
    %431 = arith.addf %430, %382 : vector<2x128xf32>
    %432 = vector.extract_strided_slice %376 {offsets = [0, 128], sizes = [2, 128], strides = [1, 1]} : vector<8x256xf32> to vector<2x128xf32>
    %433 = arith.truncf %430 : vector<2x128xf32> to vector<2x128xbf16>
    %c0_159 = arith.constant 0 : index
    %c384 = arith.constant 384 : index
    %434 = vector.load %arg6[%c0_159, %c384] : memref<128x768xbf16, #tpu.memory_space<vmem>>, vector<128x128xbf16>
    %cst_160 = arith.constant dense<0.000000e+00> : vector<2x128xf32>
    %435 = tpu.matmul %433, %434, %cst_160 {dimension_numbers = #tpu.dot_dimension_numbers<[1], [0], [0], [1], [0, 0, 1, 1], [], []>} : vector<2x128xbf16>, vector<128x128xbf16>, vector<2x128xf32> -> vector<2x128xf32>
    %436 = arith.addf %432, %435 : vector<2x128xf32>
    %437 = vector.extract_strided_slice %373 {offsets = [0, 128], sizes = [32, 128], strides = [1, 1]} : vector<32x256xf32> to vector<32x128xf32>
    %438 = vector.extract_strided_slice %436 {offsets = [0, 0], sizes = [1, 128], strides = [1, 1]} : vector<2x128xf32> to vector<1x128xf32>
    %439 = vector.shape_cast %438 : vector<1x128xf32> to vector<1x128xf32>
    %440 = vector.broadcast %439 : vector<1x128xf32> to vector<16x128xf32>
    %441 = vector.extract_strided_slice %436 {offsets = [1, 0], sizes = [1, 128], strides = [1, 1]} : vector<2x128xf32> to vector<1x128xf32>
    %442 = vector.shape_cast %441 : vector<1x128xf32> to vector<1x128xf32>
    %443 = vector.broadcast %442 : vector<1x128xf32> to vector<16x128xf32>
    %444 = tpu.concatenate %440, %443 in 0 : vector<16x128xf32>, vector<16x128xf32> -> vector<32x128xf32>
    %445 = arith.addf %437, %444 : vector<32x128xf32>
    %446 = vector.broadcast %378 : vector<1x128xf32> to vector<32x128xf32>
    %447 = arith.addf %445, %446 : vector<32x128xf32>
    %448 = math.tanh %447 : vector<32x128xf32>
    %449 = vector.broadcast %380 : vector<1x128xf32> to vector<32x128xf32>
    %450 = arith.mulf %448, %449 : vector<32x128xf32>
    %cst_161 = arith.constant dense<0.000000e+00> : vector<32xf32>
    %451 = vector.multi_reduction <add>, %450, %cst_161 [1] : vector<32x128xf32> to vector<32xf32>
    %452 = vector.shape_cast %451 : vector<32xf32> to vector<32x1xf32>
    %453 = vector.extract_strided_slice %452 {offsets = [0, 0], sizes = [16, 1], strides = [1, 1]} : vector<32x1xf32> to vector<16x1xf32>
    %cst_162 = arith.constant dense<0xFF800000> : vector<1xf32>
    %454 = vector.multi_reduction <maximumf>, %453, %cst_162 [0] : vector<16x1xf32> to vector<1xf32>
    %455 = vector.shape_cast %454 : vector<1xf32> to vector<1x1xf32>
    %456 = vector.broadcast %455 : vector<1x1xf32> to vector<16x1xf32>
    %457 = arith.subf %453, %456 : vector<16x1xf32>
    %458 = math.exp %457 : vector<16x1xf32>
    %cst_163 = arith.constant dense<0.000000e+00> : vector<1xf32>
    %459 = vector.multi_reduction <add>, %458, %cst_163 [0] : vector<16x1xf32> to vector<1xf32>
    %460 = vector.shape_cast %459 : vector<1xf32> to vector<1x1xf32>
    %461 = vector.broadcast %460 : vector<1x1xf32> to vector<16x1xf32>
    %462 = arith.divf %458, %461 : vector<16x1xf32>
    %463 = vector.extract_strided_slice %370 {offsets = [0, 0], sizes = [16, 128], strides = [1, 1]} : vector<32x128xf32> to vector<16x128xf32>
    %464 = vector.broadcast %462 : vector<16x1xf32> to vector<16x128xf32>
    %465 = arith.mulf %464, %463 : vector<16x128xf32>
    %cst_164 = arith.constant dense<0.000000e+00> : vector<128xf32>
    %466 = vector.multi_reduction <add>, %465, %cst_164 [0] : vector<16x128xf32> to vector<128xf32>
    %467 = vector.shape_cast %466 : vector<128xf32> to vector<1x128xf32>
    %468 = vector.extract_strided_slice %452 {offsets = [16, 0], sizes = [16, 1], strides = [1, 1]} : vector<32x1xf32> to vector<16x1xf32>
    %cst_165 = arith.constant dense<0xFF800000> : vector<1xf32>
    %469 = vector.multi_reduction <maximumf>, %468, %cst_165 [0] : vector<16x1xf32> to vector<1xf32>
    %470 = vector.shape_cast %469 : vector<1xf32> to vector<1x1xf32>
    %471 = vector.broadcast %470 : vector<1x1xf32> to vector<16x1xf32>
    %472 = arith.subf %468, %471 : vector<16x1xf32>
    %473 = math.exp %472 : vector<16x1xf32>
    %cst_166 = arith.constant dense<0.000000e+00> : vector<1xf32>
    %474 = vector.multi_reduction <add>, %473, %cst_166 [0] : vector<16x1xf32> to vector<1xf32>
    %475 = vector.shape_cast %474 : vector<1xf32> to vector<1x1xf32>
    %476 = vector.broadcast %475 : vector<1x1xf32> to vector<16x1xf32>
    %477 = arith.divf %473, %476 : vector<16x1xf32>
    %478 = vector.extract_strided_slice %370 {offsets = [16, 0], sizes = [16, 128], strides = [1, 1]} : vector<32x128xf32> to vector<16x128xf32>
    %479 = vector.broadcast %477 : vector<16x1xf32> to vector<16x128xf32>
    %480 = arith.mulf %479, %478 : vector<16x128xf32>
    %cst_167 = arith.constant dense<0.000000e+00> : vector<128xf32>
    %481 = vector.multi_reduction <add>, %480, %cst_167 [0] : vector<16x128xf32> to vector<128xf32>
    %482 = vector.shape_cast %481 : vector<128xf32> to vector<1x128xf32>
    %483 = tpu.concatenate %467, %482 in 0 : vector<1x128xf32>, vector<1x128xf32> -> vector<2x128xf32>
    %484 = arith.addf %483, %431 : vector<2x128xf32>
    %485 = arith.truncf %484 : vector<2x128xf32> to vector<2x128xbf16>
    %c0_168 = arith.constant 0 : index
    %c512_169 = arith.constant 512 : index
    %486 = vector.load %arg6[%c0_168, %c512_169] : memref<128x768xbf16, #tpu.memory_space<vmem>>, vector<128x256xbf16>
    %cst_170 = arith.constant dense<0.000000e+00> : vector<2x256xf32>
    %487 = tpu.matmul %485, %486, %cst_170 {dimension_numbers = #tpu.dot_dimension_numbers<[1], [0], [0], [1], [0, 0, 1, 1], [], []>} : vector<2x128xbf16>, vector<128x256xbf16>, vector<2x256xf32> -> vector<2x256xf32>
    %488 = vector.broadcast %381 : vector<1x256xf32> to vector<2x256xf32>
    %489 = arith.addf %487, %488 : vector<2x256xf32>
    %c0_171 = arith.constant 0 : index
    %c0_172 = arith.constant 0 : index
    %490 = vector.load %arg8[%c0_171, %c0_172] : memref<2x256xf32, #tpu.memory_space<vmem>>, vector<2x256xf32>
    tpu.vector_store %arg8[%c0_171, %c0_172], %489 {strides = array<i32>} : memref<2x256xf32, #tpu.memory_space<vmem>>, vector<2x256xf32>,
    return
  }
}

</mosaic_0001>

<llo_original>
// kernel: tpu_custom_call.1
$region0: #{tpu_custom_call.1}
  #allocation0 [shape = 'u32[]', space=smem, size = 0x4, offset = 0x4, fixed_abs, tag = 'smem constant byte address 0x4 - core index']
  #allocation1 [shape = 'u32[144,128]{1,0:T(1,128)}', space=vmem, size = 0x12000, scoped, tag = 'internal scratch']
  #allocation2 [shape = 'f32[64,128]{1,0:T(8,128)}', space=vmem, size = 0x8000, scoped, tag = 'scratch operand']
  #allocation3 [shape = 'f32[64,512]{1,0:T(8,128)}', space=vmem, size = 0x20000, scoped, tag = 'scratch operand']
  %s0 = inlined_call_operand.hbm [shape: s32[2,8], index: 0, kind: input, shape index: {}]
  %s1 = inlined_call_operand.vmem [shape: s32[2], index: 1, kind: input, shape index: {}]
  %s2 = inlined_call_operand.hbm [shape: f32[2,16,128], index: 2, kind: input, shape index: {}]
  %s3 = inlined_call_operand.hbm [shape: f32[64,128], index: 3, kind: input, shape index: {}]
  %s4 = inlined_call_operand.hbm [shape: bf16[128,512], index: 4, kind: input, shape index: {}]
  %s5 = inlined_call_operand.hbm [shape: bf16[128,512], index: 5, kind: input, shape index: {}]
  %s6 = inlined_call_operand.hbm [shape: bf16[128,768], index: 6, kind: input, shape index: {}]
  %s7 = inlined_call_operand.vmem [shape: f32[1,1280], index: 7, kind: input, shape index: {}]
  %s8 = inlined_call_operand.hbm [shape: f32[2,256], index: 8, kind: output, shape index: {}]
  %s9 = sld [smem:[#allocation0]]
  $region70: #{tpu_custom_call.1} parent=0
    _
  %s11 = ssub.s32 1, %s9
  %s12 = scalar_select 0, %s11, %s9
  $region1: #{tpu_custom_call.1} parent=0
    #allocation4 [shape = 'u8[1024]{0}', space=smem, size = 0x400, scoped, tag = 'input window, operand 0, single buffered']
    #allocation5 [shape = 's32[1]{0}', space=sflag, size = 0x4, scoped, tag = 'scoped memory for tpu_custom_call.1']
    #allocation6 [shape = 's32[1]{0}', space=sflag, size = 0x4, scoped, tag = 'scoped memory for tpu_custom_call.1']
    #allocation7 [shape = 's32[1]{0}', space=sflag, size = 0x4, scoped, tag = 'scoped memory for tpu_custom_call.1']
    #allocation8 [shape = 's32[1]{0}', space=sflag, size = 0x4, scoped, tag = 'scoped memory for tpu_custom_call.1']
    #allocation9 [shape = 'u8[512]{0}', space=smem, size = 0x200, scoped, tag = 'input window, operand 1, single buffered']
    #allocation10 [shape = 'u8[16384]{0}', space=vmem, size = 0x4000, scoped, tag = 'input window, operand 2, single buffered']
    #allocation11 [shape = 'u8[32768]{0}', space=vmem, size = 0x8000, scoped, tag = 'input window, operand 3, single buffered']
    #allocation12 [shape = 's32[1]{0}', space=sflag, size = 0x4, scoped, tag = 'scoped memory for tpu_custom_call.1']
    #allocation13 [shape = 'u8[131072]{0}', space=vmem, size = 0x20000, scoped, tag = 'input window, operand 4, single buffered']
    #allocation14 [shape = 'u8[131072]{0}', space=vmem, size = 0x20000, scoped, tag = 'input window, operand 5, single buffered']
    #allocation15 [shape = 's32[1]{0}', space=sflag, size = 0x4, scoped, tag = 'scoped memory for tpu_custom_call.1']
    #allocation16 [shape = 'u8[196608]{0}', space=vmem, size = 0x30000, scoped, tag = 'input window, operand 6, single buffered']
    #allocation17 [shape = 'u8[2048]{0}', space=vmem, size = 0x800, scoped, tag = 'output window, operand 0, single buffered']
    %13 = vsyncpa [#allocation7], 0
    %14 = vsyncpa [#allocation8], 0
    %15 = vsyncpa [#allocation5], 0
    %16 = vsyncpa [#allocation12], 0
    %17 = vsyncpa [#allocation15], 0
    %18 = vsyncpa [#allocation6], 0
    // Predicated region
    $region2: #{tpu_custom_call.1} parent=1 // pred_check
      _
    $region3: #{tpu_custom_call.1} parent=1 // pred_check_branch
      %20 = sbr.rel (0) target = $region5
    $region4: #{tpu_custom_call.1} parent=1 // pred_region
      %s22 = ssub.s32 32, 32
      %23 = vsyncadd [#allocation7], %s22
      %26 = dma.hbm_to_smem %s0, 32, [#allocation4], [#allocation7]
    $region5: #{tpu_custom_call.1} parent=1 // pred_fallthru
      _
    // Predicated region
    $region6: #{tpu_custom_call.1} parent=1 // pred_check
      _
    $region7: #{tpu_custom_call.1} parent=1 // pred_check_branch
      %28 = sbr.rel (0) target = $region9
    $region8: #{tpu_custom_call.1} parent=1 // pred_region
      %s30 = ssub.s32 16, 16
      %31 = vsyncadd [#allocation8], %s30
      %s33 = sshll.u32 %s1, 4
      %s34 = int_to_ptr.vmem [resolvable:$true] %s33
      %36 = dma.vmem_to_smem %s34, 16, [#allocation9], [#allocation8]
    $region9: #{tpu_custom_call.1} parent=1 // pred_fallthru
      _
    // Predicated region
    $region10: #{tpu_custom_call.1} parent=1 // pred_check
      _
    $region11: #{tpu_custom_call.1} parent=1 // pred_check_branch
      %38 = sbr.rel (0) target = $region13
    $region12: #{tpu_custom_call.1} parent=1 // pred_region
      %s40 = ssub.s32 512, 512
      %41 = vsyncadd [#allocation5], %s40
      %s42 = sshll.u32 [#allocation10], 4
      %s43 = int_to_ptr.vmem [resolvable:$true] %s42
      %48 = dma.hbm_to_vmem [thread:$0]  %s2, 512, %s43, [#allocation5], 128, 128, 8
    $region13: #{tpu_custom_call.1} parent=1 // pred_fallthru
      _
    // Predicated region
    $region14: #{tpu_custom_call.1} parent=1 // pred_check
      _
    $region15: #{tpu_custom_call.1} parent=1 // pred_check_branch
      %50 = sbr.rel (0) target = $region17
    $region16: #{tpu_custom_call.1} parent=1 // pred_region
      %s52 = ssub.s32 1024, 1024
      %53 = vsyncadd [#allocation12], %s52
      %s54 = sshll.u32 [#allocation11], 4
      %s55 = int_to_ptr.vmem [resolvable:$true] %s54
      %60 = dma.hbm_to_vmem [thread:$0]  %s3, 1024, %s55, [#allocation12], 128, 128, 8
    $region17: #{tpu_custom_call.1} parent=1 // pred_fallthru
      _
    // Predicated region
    $region18: #{tpu_custom_call.1} parent=1 // pred_check
      _
    $region19: #{tpu_custom_call.1} parent=1 // pred_check_branch
      %62 = sbr.rel (0) target = $region21
    $region20: #{tpu_custom_call.1} parent=1 // pred_region
      %s64 = ssub.s32 4096, 4096
      %65 = vsyncadd [#allocation12], %s64
      %s66 = sshll.u32 [#allocation13], 4
      %s67 = int_to_ptr.vmem [resolvable:$true] %s66
      %72 = dma.hbm_to_vmem [thread:$0]  %s4, 4096, %s67, [#allocation12], 256, 256, 16
    $region21: #{tpu_custom_call.1} parent=1 // pred_fallthru
      _
    // Predicated region
    $region22: #{tpu_custom_call.1} parent=1 // pred_check
      _
    $region23: #{tpu_custom_call.1} parent=1 // pred_check_branch
      %74 = sbr.rel (0) target = $region25
    $region24: #{tpu_custom_call.1} parent=1 // pred_region
      %s76 = ssub.s32 4096, 4096
      %77 = vsyncadd [#allocation15], %s76
      %s78 = sshll.u32 [#allocation14], 4
      %s79 = int_to_ptr.vmem [resolvable:$true] %s78
      %84 = dma.hbm_to_vmem [thread:$0]  %s5, 4096, %s79, [#allocation15], 256, 256, 16
    $region25: #{tpu_custom_call.1} parent=1 // pred_fallthru
      _
    // Predicated region
    $region26: #{tpu_custom_call.1} parent=1 // pred_check
      _
    $region27: #{tpu_custom_call.1} parent=1 // pred_check_branch
      %86 = sbr.rel (0) target = $region29
    $region28: #{tpu_custom_call.1} parent=1 // pred_region
      %s88 = ssub.s32 6144, 6144
      %89 = vsyncadd [#allocation15], %s88
      %s90 = sshll.u32 [#allocation16], 4
      %s91 = int_to_ptr.vmem [resolvable:$true] %s90
      %96 = dma.hbm_to_vmem [thread:$0]  %s6, 6144, %s91, [#allocation15], 384, 384, 24
    $region29: #{tpu_custom_call.1} parent=1 // pred_fallthru
      _
    // Predicated region
    $region30: #{tpu_custom_call.1} parent=1 // pred_check
      _
    $region31: #{tpu_custom_call.1} parent=1 // pred_check_branch
      %98 = sbr.rel (0) target = $region33
    $region32: #{tpu_custom_call.1} parent=1 // pred_region
      _
    $region33: #{tpu_custom_call.1} parent=1 // pred_fallthru
      _
    // Predicated region
    $region34: #{tpu_custom_call.1} parent=1 // pred_check
      _
    $region35: #{tpu_custom_call.1} parent=1 // pred_check_branch
      %100 = sbr.rel (0) target = $region37
    $region36: #{tpu_custom_call.1} parent=1 // pred_region
      %101 = dma.done [#allocation7], 32
    $region37: #{tpu_custom_call.1} parent=1 // pred_fallthru
      _
    // Predicated region
    $region38: #{tpu_custom_call.1} parent=1 // pred_check
      _
    $region39: #{tpu_custom_call.1} parent=1 // pred_check_branch
      %103 = sbr.rel (0) target = $region41
    $region40: #{tpu_custom_call.1} parent=1 // pred_region
      %104 = dma.done [#allocation8], 16
    $region41: #{tpu_custom_call.1} parent=1 // pred_fallthru
      _
    // Predicated region
    $region42: #{tpu_custom_call.1} parent=1 // pred_check
      _
    $region43: #{tpu_custom_call.1} parent=1 // pred_check_branch
      %106 = sbr.rel (0) target = $region45
    $region44: #{tpu_custom_call.1} parent=1 // pred_region
      %107 = dma.done [#allocation5], 512
    $region45: #{tpu_custom_call.1} parent=1 // pred_fallthru
      _
    // Predicated region
    $region46: #{tpu_custom_call.1} parent=1 // pred_check
      _
    $region47: #{tpu_custom_call.1} parent=1 // pred_check_branch
      %109 = sbr.rel (0) target = $region49
    $region48: #{tpu_custom_call.1} parent=1 // pred_region
      %110 = dma.done [#allocation12], 1024
    $region49: #{tpu_custom_call.1} parent=1 // pred_fallthru
      _
    // Predicated region
    $region50: #{tpu_custom_call.1} parent=1 // pred_check
      _
    $region51: #{tpu_custom_call.1} parent=1 // pred_check_branch
      %112 = sbr.rel (0) target = $region53
    $region52: #{tpu_custom_call.1} parent=1 // pred_region
      %113 = dma.done [#allocation12], 4096
    $region53: #{tpu_custom_call.1} parent=1 // pred_fallthru
      _
    // Predicated region
    $region54: #{tpu_custom_call.1} parent=1 // pred_check
      _
    $region55: #{tpu_custom_call.1} parent=1 // pred_check_branch
      %115 = sbr.rel (0) target = $region57
    $region56: #{tpu_custom_call.1} parent=1 // pred_region
      %116 = dma.done [#allocation15], 4096
    $region57: #{tpu_custom_call.1} parent=1 // pred_fallthru
      _
    // Predicated region
    $region58: #{tpu_custom_call.1} parent=1 // pred_check
      _
    $region59: #{tpu_custom_call.1} parent=1 // pred_check_branch
      %118 = sbr.rel (0) target = $region61
    $region60: #{tpu_custom_call.1} parent=1 // pred_region
      %119 = dma.done [#allocation15], 6144
    $region61: #{tpu_custom_call.1} parent=1 // pred_fallthru
      _
    %120 = sfence
    %122 = vst [vmem:[#allocation2] sm:$0xff] 0.0
    %123 = vst [vmem:[#allocation2 + $0x8] sm:$0xff] 0.0
    %124 = vst [vmem:[#allocation2 + $0x10] sm:$0xff] 0.0
    %125 = vst [vmem:[#allocation2 + $0x18] sm:$0xff] 0.0
    %126 = vst [vmem:[#allocation2 + $0x20] sm:$0xff] 0.0
    %127 = vst [vmem:[#allocation2 + $0x28] sm:$0xff] 0.0
    %128 = vst [vmem:[#allocation2 + $0x30] sm:$0xff] 0.0
    %129 = vst [vmem:[#allocation2 + $0x38] sm:$0xff] 0.0
    %s130 = sld [smem:[#allocation4]]
    %s131 = scalar_lea.vmem [#allocation11], %s130
    %v132 = vld [vmem:[%s131] sm:$0x1]
    %133 = vst [vmem:[#allocation2] sm:$0x1] %v132
    %s134 = sld [smem:[#allocation4 + $0x80]]
    %s135 = scalar_lea.vmem [#allocation11], %s134
    %v136 = vld [vmem:[%s135] sm:$0x1]
    %137 = vst [vmem:[#allocation2 + $0x1] sm:$0x1] %v136
    %s138 = sld [smem:[#allocation4 + $0x1]]
    %s139 = scalar_lea.vmem [#allocation11], %s138
    %v140 = vld [vmem:[%s139] sm:$0x1]
    %141 = vst [vmem:[#allocation2 + $0x8] sm:$0x1] %v140
    %s142 = sld [smem:[#allocation4 + $0x81]]
    %s143 = scalar_lea.vmem [#allocation11], %s142
    %v144 = vld [vmem:[%s143] sm:$0x1]
    %145 = vst [vmem:[#allocation2 + $0x9] sm:$0x1] %v144
    %s146 = sld [smem:[#allocation4 + $0x2]]
    %s147 = scalar_lea.vmem [#allocation11], %s146
    %v148 = vld [vmem:[%s147] sm:$0x1]
    %149 = vst [vmem:[#allocation2 + $0x10] sm:$0x1] %v148
    %s150 = sld [smem:[#allocation4 + $0x82]]
    %s151 = scalar_lea.vmem [#allocation11], %s150
    %v152 = vld [vmem:[%s151] sm:$0x1]
    %153 = vst [vmem:[#allocation2 + $0x11] sm:$0x1] %v152
    %s154 = sld [smem:[#allocation4 + $0x3]]
    %s155 = scalar_lea.vmem [#allocation11], %s154
    %v156 = vld [vmem:[%s155] sm:$0x1]
    %157 = vst [vmem:[#allocation2 + $0x18] sm:$0x1] %v156
    %s158 = sld [smem:[#allocation4 + $0x83]]
    %s159 = scalar_lea.vmem [#allocation11], %s158
    %v160 = vld [vmem:[%s159] sm:$0x1]
    %161 = vst [vmem:[#allocation2 + $0x19] sm:$0x1] %v160
    %s162 = sld [smem:[#allocation4 + $0x4]]
    %s163 = scalar_lea.vmem [#allocation11], %s162
    %v164 = vld [vmem:[%s163] sm:$0x1]
    %165 = vst [vmem:[#allocation2 + $0x20] sm:$0x1] %v164
    %s166 = sld [smem:[#allocation4 + $0x84]]
    %s167 = scalar_lea.vmem [#allocation11], %s166
    %v168 = vld [vmem:[%s167] sm:$0x1]
    %169 = vst [vmem:[#allocation2 + $0x21] sm:$0x1] %v168
    %s170 = sld [smem:[#allocation4 + $0x5]]
    %s171 = scalar_lea.vmem [#allocation11], %s170
    %v172 = vld [vmem:[%s171] sm:$0x1]
    %173 = vst [vmem:[#allocation2 + $0x28] sm:$0x1] %v172
    %s174 = sld [smem:[#allocation4 + $0x85]]
    %s175 = scalar_lea.vmem [#allocation11], %s174
    %v176 = vld [vmem:[%s175] sm:$0x1]
    %177 = vst [vmem:[#allocation2 + $0x29] sm:$0x1] %v176
    %s178 = sld [smem:[#allocation4 + $0x6]]
    %s179 = scalar_lea.vmem [#allocation11], %s178
    %v180 = vld [vmem:[%s179] sm:$0x1]
    %181 = vst [vmem:[#allocation2 + $0x30] sm:$0x1] %v180
    %s182 = sld [smem:[#allocation4 + $0x86]]
    %s183 = scalar_lea.vmem [#allocation11], %s182
    %v184 = vld [vmem:[%s183] sm:$0x1]
    %185 = vst [vmem:[#allocation2 + $0x31] sm:$0x1] %v184
    %s186 = sld [smem:[#allocation4 + $0x7]]
    %s187 = scalar_lea.vmem [#allocation11], %s186
    %v188 = vld [vmem:[%s187] sm:$0x1]
    %189 = vst [vmem:[#allocation2 + $0x38] sm:$0x1] %v188
    %s190 = sld [smem:[#allocation4 + $0x87]]
    %s191 = scalar_lea.vmem [#allocation11], %s190
    %v192 = vld [vmem:[%s191] sm:$0x1]
    %193 = vst [vmem:[#allocation2 + $0x39] sm:$0x1] %v192
    %v194 = vld [vmem:[#allocation2] sm:$0xff]
    %v195 = vld [vmem:[#allocation2 + $0x8] sm:$0xff]
    %v196 = vld [vmem:[#allocation2 + $0x10] sm:$0xff]
    %v197 = vld [vmem:[#allocation2 + $0x18] sm:$0xff]
    %v198 = vld [vmem:[#allocation2 + $0x20] sm:$0xff]
    %v199 = vld [vmem:[#allocation2 + $0x28] sm:$0xff]
    %v200 = vld [vmem:[#allocation2 + $0x30] sm:$0xff]
    %v201 = vld [vmem:[#allocation2 + $0x38] sm:$0xff]
    %v202 = vpack.c.bf16 %v195, %v194
    %v203 = vpack.c.bf16 %v197, %v196
    %v204 = vpack.c.bf16 %v199, %v198
    %v205 = vpack.c.bf16 %v201, %v200
    %v206 = vld [vmem:[#allocation13] sm:$0xff]
    %v207 = vld [vmem:[#allocation13 + $0x8] sm:$0xff]
    %v208 = vld [vmem:[#allocation13 + $0x10] sm:$0xff]
    %v209 = vld [vmem:[#allocation13 + $0x18] sm:$0xff]
    %v210 = vld [vmem:[#allocation13 + $0x20] sm:$0xff]
    %v211 = vld [vmem:[#allocation13 + $0x28] sm:$0xff]
    %v212 = vld [vmem:[#allocation13 + $0x30] sm:$0xff]
    %v213 = vld [vmem:[#allocation13 + $0x38] sm:$0xff]
    %v214 = vld [vmem:[#allocation13 + $0x40] sm:$0xff]
    %v215 = vld [vmem:[#allocation13 + $0x48] sm:$0xff]
    %v216 = vld [vmem:[#allocation13 + $0x50] sm:$0xff]
    %v217 = vld [vmem:[#allocation13 + $0x58] sm:$0xff]
    %v218 = vld [vmem:[#allocation13 + $0x60] sm:$0xff]
    %v219 = vld [vmem:[#allocation13 + $0x68] sm:$0xff]
    %v220 = vld [vmem:[#allocation13 + $0x70] sm:$0xff]
    %v221 = vld [vmem:[#allocation13 + $0x78] sm:$0xff]
    %v222 = vld [vmem:[#allocation13 + $0x80] sm:$0xff]
    %v223 = vld [vmem:[#allocation13 + $0x88] sm:$0xff]
    %v224 = vld [vmem:[#allocation13 + $0x90] sm:$0xff]
    %v225 = vld [vmem:[#allocation13 + $0x98] sm:$0xff]
    %v226 = vld [vmem:[#allocation13 + $0xa0] sm:$0xff]
    %v227 = vld [vmem:[#allocation13 + $0xa8] sm:$0xff]
    %v228 = vld [vmem:[#allocation13 + $0xb0] sm:$0xff]
    %v229 = vld [vmem:[#allocation13 + $0xb8] sm:$0xff]
    %v230 = vld [vmem:[#allocation13 + $0xc0] sm:$0xff]
    %v231 = vld [vmem:[#allocation13 + $0xc8] sm:$0xff]
    %v232 = vld [vmem:[#allocation13 + $0xd0] sm:$0xff]
    %v233 = vld [vmem:[#allocation13 + $0xd8] sm:$0xff]
    %v234 = vld [vmem:[#allocation13 + $0xe0] sm:$0xff]
    %v235 = vld [vmem:[#allocation13 + $0xe8] sm:$0xff]
    %v236 = vld [vmem:[#allocation13 + $0xf0] sm:$0xff]
    %v237 = vld [vmem:[#allocation13 + $0xf8] sm:$0xff]
    %v238 = vld [vmem:[%s7] sm:$0xf]
    %v240 = vlaneseq
    %v241 = vshrl.u32 %v240, 7
    %v242 = vsub.s32 0, %v241
    %v243 = vrot.slane %v238, %v242
    %v244 = vlaneseq
    %v245 = vshrl.u32 %v244, 7
    %v246 = vsub.s32 1, %v245
    %v247 = vrot.slane %v238, %v246
    %v248 = vlaneseq
    %v249 = vshrl.u32 %v248, 7
    %v250 = vsub.s32 2, %v249
    %v251 = vrot.slane %v238, %v250
    %v252 = vlaneseq
    %v253 = vshrl.u32 %v252, 7
    %v254 = vsub.s32 3, %v253
    %v255 = vrot.slane %v238, %v254
    %v292 = vunpack.c.l.b16 %v206
    %v293 = vunpack.c.h.b16 %v206
    %v294 = vunpack.c.l.b16 %v207
    %v295 = vunpack.c.h.b16 %v207
    %v296 = vunpack.c.l.b16 %v208
    %v297 = vunpack.c.h.b16 %v208
    %v298 = vunpack.c.l.b16 %v209
    %v299 = vunpack.c.h.b16 %v209
    %v300 = vunpack.c.l.b16 %v210
    %v301 = vunpack.c.h.b16 %v210
    %v302 = vunpack.c.l.b16 %v211
    %v303 = vunpack.c.h.b16 %v211
    %v304 = vunpack.c.l.b16 %v212
    %v305 = vunpack.c.h.b16 %v212
    %v306 = vunpack.c.l.b16 %v213
    %v307 = vunpack.c.h.b16 %v213
    %v308 = vunpack.c.l.b16 %v214
    %v309 = vunpack.c.h.b16 %v214
    %v310 = vunpack.c.l.b16 %v215
    %v311 = vunpack.c.h.b16 %v215
    %v312 = vunpack.c.l.b16 %v216
    %v313 = vunpack.c.h.b16 %v216
    %v314 = vunpack.c.l.b16 %v217
    %v315 = vunpack.c.h.b16 %v217
    %v316 = vunpack.c.l.b16 %v218
    %v317 = vunpack.c.h.b16 %v218
    %v318 = vunpack.c.l.b16 %v219
    %v319 = vunpack.c.h.b16 %v219
    %v320 = vunpack.c.l.b16 %v220
    %v321 = vunpack.c.h.b16 %v220
    %v322 = vunpack.c.l.b16 %v221
    %v323 = vunpack.c.h.b16 %v221
    %v324 = vunpack.c.l.b16 %v222
    %v325 = vunpack.c.h.b16 %v222
    %v326 = vunpack.c.l.b16 %v223
    %v327 = vunpack.c.h.b16 %v223
    %v328 = vunpack.c.l.b16 %v224
    %v329 = vunpack.c.h.b16 %v224
    %v330 = vunpack.c.l.b16 %v225
    %v331 = vunpack.c.h.b16 %v225
    %v332 = vunpack.c.l.b16 %v226
    %v333 = vunpack.c.h.b16 %v226
    %v334 = vunpack.c.l.b16 %v227
    %v335 = vunpack.c.h.b16 %v227
    %v336 = vunpack.c.l.b16 %v228
    %v337 = vunpack.c.h.b16 %v228
    %v338 = vunpack.c.l.b16 %v229
    %v339 = vunpack.c.h.b16 %v229
    %v340 = vunpack.c.l.b16 %v230
    %v341 = vunpack.c.h.b16 %v230
    %v342 = vunpack.c.l.b16 %v231
    %v343 = vunpack.c.h.b16 %v231
    %v344 = vunpack.c.l.b16 %v232
    %v345 = vunpack.c.h.b16 %v232
    %v346 = vunpack.c.l.b16 %v233
    %v347 = vunpack.c.h.b16 %v233
    %v348 = vunpack.c.l.b16 %v234
    %v349 = vunpack.c.h.b16 %v234
    %v350 = vunpack.c.l.b16 %v235
    %v351 = vunpack.c.h.b16 %v235
    %v352 = vunpack.c.l.b16 %v236
    %v353 = vunpack.c.h.b16 %v236
    %v354 = vunpack.c.l.b16 %v237
    %v355 = vunpack.c.h.b16 %v237
    %v356 = vpack.c.b16 %v296, %v292
    %v357 = vpack.c.b16 %v297, %v293
    %v358 = vpack.c.b16 %v298, %v294
    %v359 = vpack.c.b16 %v299, %v295
    %v360 = vpack.c.b16 %v304, %v300
    %v361 = vpack.c.b16 %v305, %v301
    %v362 = vpack.c.b16 %v306, %v302
    %v363 = vpack.c.b16 %v307, %v303
    %v364 = vpack.c.b16 %v312, %v308
    %v365 = vpack.c.b16 %v313, %v309
    %v366 = vpack.c.b16 %v314, %v310
    %v367 = vpack.c.b16 %v315, %v311
    %v368 = vpack.c.b16 %v320, %v316
    %v369 = vpack.c.b16 %v321, %v317
    %v370 = vpack.c.b16 %v322, %v318
    %v371 = vpack.c.b16 %v323, %v319
    %v372 = vpack.c.b16 %v328, %v324
    %v373 = vpack.c.b16 %v329, %v325
    %v374 = vpack.c.b16 %v330, %v326
    %v375 = vpack.c.b16 %v331, %v327
    %v376 = vpack.c.b16 %v336, %v332
    %v377 = vpack.c.b16 %v337, %v333
    %v378 = vpack.c.b16 %v338, %v334
    %v379 = vpack.c.b16 %v339, %v335
    %v380 = vpack.c.b16 %v344, %v340
    %v381 = vpack.c.b16 %v345, %v341
    %v382 = vpack.c.b16 %v346, %v342
    %v383 = vpack.c.b16 %v347, %v343
    %v384 = vpack.c.b16 %v352, %v348
    %v385 = vpack.c.b16 %v353, %v349
    %v386 = vpack.c.b16 %v354, %v350
    %v387 = vpack.c.b16 %v355, %v351
    %420 = vmatprep.subr.bf16.mxu0 %v357
    %421 = vmatpush1.bf16.msra.mxu0 %v356
    %422 = vmatprep.subr.bf16.mxu0 %v361
    %423 = vmatpush1.bf16.msra.mxu0 %v360
    %424 = vmatprep.subr.bf16.mxu0 %v365
    %425 = vmatpush1.bf16.msra.mxu0 %v364
    %426 = vmatprep.subr.bf16.mxu0 %v369
    %427 = vmatpush1.bf16.msra.mxu0 %v368
    %428 = vmatprep.subr.bf16.mxu0 %v373
    %429 = vmatpush1.bf16.msra.mxu0 %v372
    %430 = vmatprep.subr.bf16.mxu0 %v377
    %431 = vmatpush1.bf16.msra.mxu0 %v376
    %432 = vmatprep.subr.bf16.mxu0 %v381
    %433 = vmatpush1.bf16.msra.mxu0 %v380
    %434 = vmatprep.subr.bf16.mxu0 %v385
    %435 = vmatpush1.bf16.msra.mxu0 %v384
    %436 = vmatprep.subr.bf16.mxu0 0
    %437 = vmatpush1.bf16.msra.mxu0 0
    %438 = vmatprep.subr.bf16.mxu0 0
    %439 = vmatpush1.bf16.msra.mxu0 0
    %440 = vmatprep.subr.bf16.mxu0 0
    %441 = vmatpush1.bf16.msra.mxu0 0
    %442 = vmatprep.subr.bf16.mxu0 0
    %443 = vmatpush1.bf16.msra.mxu0 0
    %444 = vmatprep.subr.bf16.mxu0 0
    %445 = vmatpush1.bf16.msra.mxu0 0
    %446 = vmatprep.subr.bf16.mxu0 0
    %447 = vmatpush1.bf16.msra.mxu0 0
    %448 = vmatprep.subr.bf16.mxu0 0
    %449 = vmatpush1.bf16.msra.mxu0 0
    %450 = vmatprep.subr.bf16.mxu0 0
    %451 = vmatpush1.bf16.msra.mxu0 0
    %452 = vmatprep.mubr.bf16.mxu0 0
    %453 = vmatmul.mubr.bf16.gmra.mrb[0].mxu0 %v202
    %v454 = vpop.f32.mrb[0].mxu0
    %v455 = vadd.f32 %v243, %v454
    %v456 = vpop.f32.mrb[0].mxu0
    %v457 = vadd.f32 %v247, %v456
    %v458 = vpop.f32.mrb[0].mxu0
    %v459 = vadd.f32 %v243, %v458
    %v460 = vpop.f32.mrb[0].mxu0
    %v461 = vadd.f32 %v247, %v460
    %462 = vmatprep.mubr.bf16.mxu0 0
    %463 = vmatmul.mubr.bf16.gmra.mrb[0].mxu0 %v203
    %v464 = vpop.f32.mrb[0].mxu0
    %v465 = vadd.f32 %v243, %v464
    %v466 = vpop.f32.mrb[0].mxu0
    %v467 = vadd.f32 %v247, %v466
    %v468 = vpop.f32.mrb[0].mxu0
    %v469 = vadd.f32 %v243, %v468
    %v470 = vpop.f32.mrb[0].mxu0
    %v471 = vadd.f32 %v247, %v470
    %472 = vmatprep.mubr.bf16.mxu0 0
    %473 = vmatmul.mubr.bf16.gmra.mrb[0].mxu0 %v204
    %v474 = vpop.f32.mrb[0].mxu0
    %v475 = vadd.f32 %v243, %v474
    %v476 = vpop.f32.mrb[0].mxu0
    %v477 = vadd.f32 %v247, %v476
    %v478 = vpop.f32.mrb[0].mxu0
    %v479 = vadd.f32 %v243, %v478
    %v480 = vpop.f32.mrb[0].mxu0
    %v481 = vadd.f32 %v247, %v480
    %482 = vmatprep.mubr.bf16.mxu0 0
    %483 = vmatmul.mubr.bf16.gmra.mrb[0].mxu0 %v205
    %v484 = vpop.f32.mrb[0].mxu0
    %v485 = vadd.f32 %v243, %v484
    %v486 = vpop.f32.mrb[0].mxu0
    %v487 = vadd.f32 %v247, %v486
    %v488 = vpop.f32.mrb[0].mxu0
    %v489 = vadd.f32 %v243, %v488
    %v490 = vpop.f32.mrb[0].mxu0
    %v491 = vadd.f32 %v247, %v490
    %492 = vdwg.mxu0
    %493 = vmatprep.subr.bf16.mxu0 %v359
    %494 = vmatpush1.bf16.msra.mxu0 %v358
    %495 = vmatprep.subr.bf16.mxu0 %v363
    %496 = vmatpush1.bf16.msra.mxu0 %v362
    %497 = vmatprep.subr.bf16.mxu0 %v367
    %498 = vmatpush1.bf16.msra.mxu0 %v366
    %499 = vmatprep.subr.bf16.mxu0 %v371
    %500 = vmatpush1.bf16.msra.mxu0 %v370
    %501 = vmatprep.subr.bf16.mxu0 %v375
    %502 = vmatpush1.bf16.msra.mxu0 %v374
    %503 = vmatprep.subr.bf16.mxu0 %v379
    %504 = vmatpush1.bf16.msra.mxu0 %v378
    %505 = vmatprep.subr.bf16.mxu0 %v383
    %506 = vmatpush1.bf16.msra.mxu0 %v382
    %507 = vmatprep.subr.bf16.mxu0 %v387
    %508 = vmatpush1.bf16.msra.mxu0 %v386
    %509 = vmatprep.subr.bf16.mxu0 0
    %510 = vmatpush1.bf16.msra.mxu0 0
    %511 = vmatprep.subr.bf16.mxu0 0
    %512 = vmatpush1.bf16.msra.mxu0 0
    %513 = vmatprep.subr.bf16.mxu0 0
    %514 = vmatpush1.bf16.msra.mxu0 0
    %515 = vmatprep.subr.bf16.mxu0 0
    %516 = vmatpush1.bf16.msra.mxu0 0
    %517 = vmatprep.subr.bf16.mxu0 0
    %518 = vmatpush1.bf16.msra.mxu0 0
    %519 = vmatprep.subr.bf16.mxu0 0
    %520 = vmatpush1.bf16.msra.mxu0 0
    %521 = vmatprep.subr.bf16.mxu0 0
    %522 = vmatpush1.bf16.msra.mxu0 0
    %523 = vmatprep.subr.bf16.mxu0 0
    %524 = vmatpush1.bf16.msra.mxu0 0
    %525 = vmatprep.mubr.bf16.mxu0 0
    %526 = vmatmul.mubr.bf16.gmra.mrb[0].mxu0 %v202
    %v527 = vpop.f32.mrb[0].mxu0
    %v528 = vadd.f32 %v251, %v527
    %v529 = vpop.f32.mrb[0].mxu0
    %v530 = vadd.f32 %v255, %v529
    %v531 = vpop.f32.mrb[0].mxu0
    %v532 = vadd.f32 %v251, %v531
    %v533 = vpop.f32.mrb[0].mxu0
    %v534 = vadd.f32 %v255, %v533
    %535 = vmatprep.mubr.bf16.mxu0 0
    %536 = vmatmul.mubr.bf16.gmra.mrb[0].mxu0 %v203
    %v537 = vpop.f32.mrb[0].mxu0
    %v538 = vadd.f32 %v251, %v537
    %v539 = vpop.f32.mrb[0].mxu0
    %v540 = vadd.f32 %v255, %v539
    %v541 = vpop.f32.mrb[0].mxu0
    %v542 = vadd.f32 %v251, %v541
    %v543 = vpop.f32.mrb[0].mxu0
    %v544 = vadd.f32 %v255, %v543
    %545 = vmatprep.mubr.bf16.mxu0 0
    %546 = vmatmul.mubr.bf16.gmra.mrb[0].mxu0 %v204
    %v547 = vpop.f32.mrb[0].mxu0
    %v548 = vadd.f32 %v251, %v547
    %v549 = vpop.f32.mrb[0].mxu0
    %v550 = vadd.f32 %v255, %v549
    %v551 = vpop.f32.mrb[0].mxu0
    %v552 = vadd.f32 %v251, %v551
    %v553 = vpop.f32.mrb[0].mxu0
    %v554 = vadd.f32 %v255, %v553
    %555 = vmatprep.mubr.bf16.mxu0 0
    %556 = vmatmul.mubr.bf16.gmra.mrb[0].mxu0 %v205
    %v557 = vpop.f32.mrb[0].mxu0
    %v558 = vadd.f32 %v251, %v557
    %v559 = vpop.f32.mrb[0].mxu0
    %v560 = vadd.f32 %v255, %v559
    %v561 = vpop.f32.mrb[0].mxu0
    %v562 = vadd.f32 %v251, %v561
    %v563 = vpop.f32.mrb[0].mxu0
    %v564 = vadd.f32 %v255, %v563
    %565 = vdwg.mxu0
    %566 = vst [vmem:[#allocation3] sm:$0xff] %v455
    %567 = vst [vmem:[#allocation3 + $0x8] sm:$0xff] %v457
    %568 = vst [vmem:[#allocation3 + $0x10] sm:$0xff] %v528
    %569 = vst [vmem:[#allocation3 + $0x18] sm:$0xff] %v530
    %570 = vst [vmem:[#allocation3 + $0x20] sm:$0xff] %v459
    %571 = vst [vmem:[#allocation3 + $0x28] sm:$0xff] %v461
    %572 = vst [vmem:[#allocation3 + $0x30] sm:$0xff] %v532
    %573 = vst [vmem:[#allocation3 + $0x38] sm:$0xff] %v534
    %574 = vst [vmem:[#allocation3 + $0x40] sm:$0xff] %v465
    %575 = vst [vmem:[#allocation3 + $0x48] sm:$0xff] %v467
    %576 = vst [vmem:[#allocation3 + $0x50] sm:$0xff] %v538
    %577 = vst [vmem:[#allocation3 + $0x58] sm:$0xff] %v540
    %578 = vst [vmem:[#allocation3 + $0x60] sm:$0xff] %v469
    %579 = vst [vmem:[#allocation3 + $0x68] sm:$0xff] %v471
    %580 = vst [vmem:[#allocation3 + $0x70] sm:$0xff] %v542
    %581 = vst [vmem:[#allocation3 + $0x78] sm:$0xff] %v544
    %582 = vst [vmem:[#allocation3 + $0x80] sm:$0xff] %v475
    %583 = vst [vmem:[#allocation3 + $0x88] sm:$0xff] %v477
    %584 = vst [vmem:[#allocation3 + $0x90] sm:$0xff] %v548
    %585 = vst [vmem:[#allocation3 + $0x98] sm:$0xff] %v550
    %586 = vst [vmem:[#allocation3 + $0xa0] sm:$0xff] %v479
    %587 = vst [vmem:[#allocation3 + $0xa8] sm:$0xff] %v481
    %588 = vst [vmem:[#allocation3 + $0xb0] sm:$0xff] %v552
    %589 = vst [vmem:[#allocation3 + $0xb8] sm:$0xff] %v554
    %590 = vst [vmem:[#allocation3 + $0xc0] sm:$0xff] %v485
    %591 = vst [vmem:[#allocation3 + $0xc8] sm:$0xff] %v487
    %592 = vst [vmem:[#allocation3 + $0xd0] sm:$0xff] %v558
    %593 = vst [vmem:[#allocation3 + $0xd8] sm:$0xff] %v560
    %594 = vst [vmem:[#allocation3 + $0xe0] sm:$0xff] %v489
    %595 = vst [vmem:[#allocation3 + $0xe8] sm:$0xff] %v491
    %596 = vst [vmem:[#allocation3 + $0xf0] sm:$0xff] %v562
    %597 = vst [vmem:[#allocation3 + $0xf8] sm:$0xff] %v564
    %v598 = vlaneseq
    %v599 = vshrl.u32 %v598, 7
    %vm600 = vcmp.eq.s32.totalorder %v599, 0
    %s601 = sld [smem:[#allocation9]]
    %v602 = vstv %s601
    %v603 = vsel %vm600, %v602, 4294967295
    %vm604 = vcmp.eq.s32.totalorder %v599, 1
    %s605 = sld [smem:[#allocation9 + $0x1]]
    %v606 = vstv %s605
    %v607 = vsel %vm604, %v606, %v603
    %v608 = vld [vmem:[#allocation3] sm:$0xff]
    %v609 = vld [vmem:[#allocation3 + $0x8] sm:$0xff]
    %v610 = vld [vmem:[#allocation3 + $0x10] sm:$0xff]
    %v611 = vld [vmem:[#allocation3 + $0x18] sm:$0xff]
    %v612 = vld [vmem:[#allocation14] sm:$0xff]
    %v613 = vld [vmem:[#allocation14 + $0x8] sm:$0xff]
    %v614 = vld [vmem:[#allocation14 + $0x10] sm:$0xff]
    %v615 = vld [vmem:[#allocation14 + $0x18] sm:$0xff]
    %v616 = vld [vmem:[#allocation14 + $0x20] sm:$0xff]
    %v617 = vld [vmem:[#allocation14 + $0x28] sm:$0xff]
    %v618 = vld [vmem:[#allocation14 + $0x30] sm:$0xff]
    %v619 = vld [vmem:[#allocation14 + $0x38] sm:$0xff]
    %v620 = vld [vmem:[#allocation14 + $0x40] sm:$0xff]
    %v621 = vld [vmem:[#allocation14 + $0x48] sm:$0xff]
    %v622 = vld [vmem:[#allocation14 + $0x50] sm:$0xff]
    %v623 = vld [vmem:[#allocation14 + $0x58] sm:$0xff]
    %v624 = vld [vmem:[#allocation14 + $0x60] sm:$0xff]
    %v625 = vld [vmem:[#allocation14 + $0x68] sm:$0xff]
    %v626 = vld [vmem:[#allocation14 + $0x70] sm:$0xff]
    %v627 = vld [vmem:[#allocation14 + $0x78] sm:$0xff]
    %v628 = vld [vmem:[#allocation14 + $0x80] sm:$0xff]
    %v629 = vld [vmem:[#allocation14 + $0x88] sm:$0xff]
    %v630 = vld [vmem:[#allocation14 + $0x90] sm:$0xff]
    %v631 = vld [vmem:[#allocation14 + $0x98] sm:$0xff]
    %v632 = vld [vmem:[#allocation14 + $0xa0] sm:$0xff]
    %v633 = vld [vmem:[#allocation14 + $0xa8] sm:$0xff]
    %v634 = vld [vmem:[#allocation14 + $0xb0] sm:$0xff]
    %v635 = vld [vmem:[#allocation14 + $0xb8] sm:$0xff]
    %v636 = vld [vmem:[#allocation14 + $0xc0] sm:$0xff]
    %v637 = vld [vmem:[#allocation14 + $0xc8] sm:$0xff]
    %v638 = vld [vmem:[#allocation14 + $0xd0] sm:$0xff]
    %v639 = vld [vmem:[#allocation14 + $0xd8] sm:$0xff]
    %v640 = vld [vmem:[#allocation14 + $0xe0] sm:$0xff]
    %v641 = vld [vmem:[#allocation14 + $0xe8] sm:$0xff]
    %v642 = vld [vmem:[#allocation14 + $0xf0] sm:$0xff]
    %v643 = vld [vmem:[#allocation14 + $0xf8] sm:$0xff]
    %v676 = vunpack.c.l.b16 %v612
    %v677 = vunpack.c.h.b16 %v612
    %v678 = vunpack.c.l.b16 %v613
    %v679 = vunpack.c.h.b16 %v613
    %v680 = vunpack.c.l.b16 %v614
    %v681 = vunpack.c.h.b16 %v614
    %v682 = vunpack.c.l.b16 %v615
    %v683 = vunpack.c.h.b16 %v615
    %v684 = vunpack.c.l.b16 %v616
    %v685 = vunpack.c.h.b16 %v616
    %v686 = vunpack.c.l.b16 %v617
    %v687 = vunpack.c.h.b16 %v617
    %v688 = vunpack.c.l.b16 %v618
    %v689 = vunpack.c.h.b16 %v618
    %v690 = vunpack.c.l.b16 %v619
    %v691 = vunpack.c.h.b16 %v619
    %v692 = vunpack.c.l.b16 %v620
    %v693 = vunpack.c.h.b16 %v620
    %v694 = vunpack.c.l.b16 %v621
    %v695 = vunpack.c.h.b16 %v621
    %v696 = vunpack.c.l.b16 %v622
    %v697 = vunpack.c.h.b16 %v622
    %v698 = vunpack.c.l.b16 %v623
    %v699 = vunpack.c.h.b16 %v623
    %v700 = vunpack.c.l.b16 %v624
    %v701 = vunpack.c.h.b16 %v624
    %v702 = vunpack.c.l.b16 %v625
    %v703 = vunpack.c.h.b16 %v625
    %v704 = vunpack.c.l.b16 %v626
    %v705 = vunpack.c.h.b16 %v626
    %v706 = vunpack.c.l.b16 %v627
    %v707 = vunpack.c.h.b16 %v627
    %v708 = vunpack.c.l.b16 %v628
    %v709 = vunpack.c.h.b16 %v628
    %v710 = vunpack.c.l.b16 %v629
    %v711 = vunpack.c.h.b16 %v629
    %v712 = vunpack.c.l.b16 %v630
    %v713 = vunpack.c.h.b16 %v630
    %v714 = vunpack.c.l.b16 %v631
    %v715 = vunpack.c.h.b16 %v631
    %v716 = vunpack.c.l.b16 %v632
    %v717 = vunpack.c.h.b16 %v632
    %v718 = vunpack.c.l.b16 %v633
    %v719 = vunpack.c.h.b16 %v633
    %v720 = vunpack.c.l.b16 %v634
    %v721 = vunpack.c.h.b16 %v634
    %v722 = vunpack.c.l.b16 %v635
    %v723 = vunpack.c.h.b16 %v635
    %v724 = vunpack.c.l.b16 %v636
    %v725 = vunpack.c.h.b16 %v636
    %v726 = vunpack.c.l.b16 %v637
    %v727 = vunpack.c.h.b16 %v637
    %v728 = vunpack.c.l.b16 %v638
    %v729 = vunpack.c.h.b16 %v638
    %v730 = vunpack.c.l.b16 %v639
    %v731 = vunpack.c.h.b16 %v639
    %v732 = vunpack.c.l.b16 %v640
    %v733 = vunpack.c.h.b16 %v640
    %v734 = vunpack.c.l.b16 %v641
    %v735 = vunpack.c.h.b16 %v641
    %v736 = vunpack.c.l.b16 %v642
    %v737 = vunpack.c.h.b16 %v642
    %v738 = vunpack.c.l.b16 %v643
    %v739 = vunpack.c.h.b16 %v643
    %v740 = vpack.c.b16 %v680, %v676
    %v741 = vpack.c.b16 %v681, %v677
    %v742 = vpack.c.b16 %v682, %v678
    %v743 = vpack.c.b16 %v683, %v679
    %v744 = vpack.c.b16 %v688, %v684
    %v745 = vpack.c.b16 %v689, %v685
    %v746 = vpack.c.b16 %v690, %v686
    %v747 = vpack.c.b16 %v691, %v687
    %v748 = vpack.c.b16 %v696, %v692
    %v749 = vpack.c.b16 %v697, %v693
    %v750 = vpack.c.b16 %v698, %v694
    %v751 = vpack.c.b16 %v699, %v695
    %v752 = vpack.c.b16 %v704, %v700
    %v753 = vpack.c.b16 %v705, %v701
    %v754 = vpack.c.b16 %v706, %v702
    %v755 = vpack.c.b16 %v707, %v703
    %v756 = vpack.c.b16 %v712, %v708
    %v757 = vpack.c.b16 %v713, %v709
    %v758 = vpack.c.b16 %v714, %v710
    %v759 = vpack.c.b16 %v715, %v711
    %v760 = vpack.c.b16 %v720, %v716
    %v761 = vpack.c.b16 %v721, %v717
    %v762 = vpack.c.b16 %v722, %v718
    %v763 = vpack.c.b16 %v723, %v719
    %v764 = vpack.c.b16 %v728, %v724
    %v765 = vpack.c.b16 %v729, %v725
    %v766 = vpack.c.b16 %v730, %v726
    %v767 = vpack.c.b16 %v731, %v727
    %v768 = vpack.c.b16 %v736, %v732
    %v769 = vpack.c.b16 %v737, %v733
    %v770 = vpack.c.b16 %v738, %v734
    %v771 = vpack.c.b16 %v739, %v735
    %804 = vmatprep.subr.bf16.mxu0 %v741
    %805 = vmatpush1.bf16.msra.mxu0 %v740
    %806 = vmatprep.subr.bf16.mxu0 %v745
    %807 = vmatpush1.bf16.msra.mxu0 %v744
    %808 = vmatprep.subr.bf16.mxu0 %v749
    %809 = vmatpush1.bf16.msra.mxu0 %v748
    %810 = vmatprep.subr.bf16.mxu0 %v753
    %811 = vmatpush1.bf16.msra.mxu0 %v752
    %812 = vmatprep.subr.bf16.mxu0 %v757
    %813 = vmatpush1.bf16.msra.mxu0 %v756
    %814 = vmatprep.subr.bf16.mxu0 %v761
    %815 = vmatpush1.bf16.msra.mxu0 %v760
    %816 = vmatprep.subr.bf16.mxu0 %v765
    %817 = vmatpush1.bf16.msra.mxu0 %v764
    %818 = vmatprep.subr.bf16.mxu0 %v769
    %819 = vmatpush1.bf16.msra.mxu0 %v768
    %820 = vmatprep.subr.bf16.mxu0 0
    %821 = vmatpush1.bf16.msra.mxu0 0
    %822 = vmatprep.subr.bf16.mxu0 0
    %823 = vmatpush1.bf16.msra.mxu0 0
    %824 = vmatprep.subr.bf16.mxu0 0
    %825 = vmatpush1.bf16.msra.mxu0 0
    %826 = vmatprep.subr.bf16.mxu0 0
    %827 = vmatpush1.bf16.msra.mxu0 0
    %828 = vmatprep.subr.bf16.mxu0 0
    %829 = vmatpush1.bf16.msra.mxu0 0
    %830 = vmatprep.subr.bf16.mxu0 0
    %831 = vmatpush1.bf16.msra.mxu0 0
    %832 = vmatprep.subr.bf16.mxu0 0
    %833 = vmatpush1.bf16.msra.mxu0 0
    %834 = vmatprep.subr.bf16.mxu0 0
    %835 = vmatpush1.bf16.msra.mxu0 0
    %836 = vmatprep.mubr.bf16.mxu0 0
    %837 = vmatmul.mubr.bf16.gmra.mrb[0].mxu0 0
    %v838 = vpop.f32.mrb[0].mxu0
    %v839 = vadd.f32 0.0, %v838
    %v840 = vpop.f32.mrb[0].mxu0
    %v841 = vadd.f32 0.0, %v840
    %v842 = vpop.f32.mrb[0].mxu0
    %v843 = vpop.f32.mrb[0].mxu0
    %844 = vdwg.mxu0
    %845 = vmatprep.subr.bf16.mxu0 %v743
    %846 = vmatpush1.bf16.msra.mxu0 %v742
    %847 = vmatprep.subr.bf16.mxu0 %v747
    %848 = vmatpush1.bf16.msra.mxu0 %v746
    %849 = vmatprep.subr.bf16.mxu0 %v751
    %850 = vmatpush1.bf16.msra.mxu0 %v750
    %851 = vmatprep.subr.bf16.mxu0 %v755
    %852 = vmatpush1.bf16.msra.mxu0 %v754
    %853 = vmatprep.subr.bf16.mxu0 %v759
    %854 = vmatpush1.bf16.msra.mxu0 %v758
    %855 = vmatprep.subr.bf16.mxu0 %v763
    %856 = vmatpush1.bf16.msra.mxu0 %v762
    %857 = vmatprep.subr.bf16.mxu0 %v767
    %858 = vmatpush1.bf16.msra.mxu0 %v766
    %859 = vmatprep.subr.bf16.mxu0 %v771
    %860 = vmatpush1.bf16.msra.mxu0 %v770
    %861 = vmatprep.subr.bf16.mxu0 0
    %862 = vmatpush1.bf16.msra.mxu0 0
    %863 = vmatprep.subr.bf16.mxu0 0
    %864 = vmatpush1.bf16.msra.mxu0 0
    %865 = vmatprep.subr.bf16.mxu0 0
    %866 = vmatpush1.bf16.msra.mxu0 0
    %867 = vmatprep.subr.bf16.mxu0 0
    %868 = vmatpush1.bf16.msra.mxu0 0
    %869 = vmatprep.subr.bf16.mxu0 0
    %870 = vmatpush1.bf16.msra.mxu0 0
    %871 = vmatprep.subr.bf16.mxu0 0
    %872 = vmatpush1.bf16.msra.mxu0 0
    %873 = vmatprep.subr.bf16.mxu0 0
    %874 = vmatpush1.bf16.msra.mxu0 0
    %875 = vmatprep.subr.bf16.mxu0 0
    %876 = vmatpush1.bf16.msra.mxu0 0
    %877 = vmatprep.mubr.bf16.mxu0 0
    %878 = vmatmul.mubr.bf16.gmra.mrb[0].mxu0 0
    %v879 = vpop.f32.mrb[0].mxu0
    %v880 = vadd.f32 0.0, %v879
    %v881 = vpop.f32.mrb[0].mxu0
    %v882 = vadd.f32 0.0, %v881
    %v883 = vpop.f32.mrb[0].mxu0
    %v884 = vpop.f32.mrb[0].mxu0
    %885 = vdwg.mxu0
    %v886 = vadd.f32 %v608, %v839
    %v887 = vadd.f32 %v609, %v841
    %v888 = vadd.f32 %v610, %v880
    %v889 = vadd.f32 %v611, %v882
    %v890 = vxor.u32 %v886, 2147483648
    %v891 = vmul.f32 %v890, 1.442695
    %v892 = vpow.pop %v891
    %v893 = vadd.f32 %v892, 1.0
    %v894 = vrcp.pop %v893
    %v895 = vmul.f32 1.0, %v894
    %v896 = vxor.u32 %v887, 2147483648
    %v897 = vmul.f32 %v896, 1.442695
    %v898 = vpow.pop %v897
    %v899 = vadd.f32 %v898, 1.0
    %v900 = vrcp.pop %v899
    %v901 = vmul.f32 1.0, %v900
    %v902 = vtanh.pop %v888
    %v903 = vxor.u32 %v889, 2147483648
    %v904 = vmul.f32 %v903, 1.442695
    %v905 = vpow.pop %v904
    %v906 = vadd.f32 %v905, 1.0
    %v907 = vrcp.pop %v906
    %v908 = vmul.f32 1.0, %v907
    %v909 = vmul.f32 %v901, 0.0
    %v910 = vmul.f32 %v895, %v902
    %v911 = vadd.f32 %v909, %v910
    %v912 = vtanh.pop %v911
    %v913 = vmul.f32 %v908, %v912
    %vm914 = vcmp.eq.s32.totalorder %v607, 1
    %v915 = vsel %vm914, 1, 0
    %vm916 = vcmp.eq.s32.totalorder %v915, 1
    %v917 = vsel %vm916, %v913, 0.0
    %v918 = vld [vmem:[#allocation3 + $0x20] sm:$0xff]
    %v919 = vld [vmem:[#allocation3 + $0x28] sm:$0xff]
    %v920 = vld [vmem:[#allocation3 + $0x30] sm:$0xff]
    %v921 = vld [vmem:[#allocation3 + $0x38] sm:$0xff]
    %v922 = vpack.c.bf16 %v913, %v913
    %923 = vmatprep.subr.bf16.mxu0 %v741
    %924 = vmatpush1.bf16.msra.mxu0 %v740
    %925 = vmatprep.subr.bf16.mxu0 %v745
    %926 = vmatpush1.bf16.msra.mxu0 %v744
    %927 = vmatprep.subr.bf16.mxu0 %v749
    %928 = vmatpush1.bf16.msra.mxu0 %v748
    %929 = vmatprep.subr.bf16.mxu0 %v753
    %930 = vmatpush1.bf16.msra.mxu0 %v752
    %931 = vmatprep.subr.bf16.mxu0 %v757
    %932 = vmatpush1.bf16.msra.mxu0 %v756
    %933 = vmatprep.subr.bf16.mxu0 %v761
    %934 = vmatpush1.bf16.msra.mxu0 %v760
    %935 = vmatprep.subr.bf16.mxu0 %v765
    %936 = vmatpush1.bf16.msra.mxu0 %v764
    %937 = vmatprep.subr.bf16.mxu0 %v769
    %938 = vmatpush1.bf16.msra.mxu0 %v768
    %939 = vmatprep.subr.bf16.mxu0 0
    %940 = vmatpush1.bf16.msra.mxu0 0
    %941 = vmatprep.subr.bf16.mxu0 0
    %942 = vmatpush1.bf16.msra.mxu0 0
    %943 = vmatprep.subr.bf16.mxu0 0
    %944 = vmatpush1.bf16.msra.mxu0 0
    %945 = vmatprep.subr.bf16.mxu0 0
    %946 = vmatpush1.bf16.msra.mxu0 0
    %947 = vmatprep.subr.bf16.mxu0 0
    %948 = vmatpush1.bf16.msra.mxu0 0
    %949 = vmatprep.subr.bf16.mxu0 0
    %950 = vmatpush1.bf16.msra.mxu0 0
    %951 = vmatprep.subr.bf16.mxu0 0
    %952 = vmatpush1.bf16.msra.mxu0 0
    %953 = vmatprep.subr.bf16.mxu0 0
    %954 = vmatpush1.bf16.msra.mxu0 0
    %955 = vmatprep.mubr.bf16.mxu0 0
    %956 = vmatmul.mubr.bf16.gmra.mrb[0].mxu0 %v922
    %v957 = vpop.f32.mrb[0].mxu0
    %v958 = vadd.f32 0.0, %v957
    %v959 = vpop.f32.mrb[0].mxu0
    %v960 = vadd.f32 0.0, %v959
    %v961 = vpop.f32.mrb[0].mxu0
    %v962 = vpop.f32.mrb[0].mxu0
    %963 = vdwg.mxu0
    %964 = vmatprep.subr.bf16.mxu0 %v743
    %965 = vmatpush1.bf16.msra.mxu0 %v742
    %966 = vmatprep.subr.bf16.mxu0 %v747
    %967 = vmatpush1.bf16.msra.mxu0 %v746
    %968 = vmatprep.subr.bf16.mxu0 %v751
    %969 = vmatpush1.bf16.msra.mxu0 %v750
    %970 = vmatprep.subr.bf16.mxu0 %v755
    %971 = vmatpush1.bf16.msra.mxu0 %v754
    %972 = vmatprep.subr.bf16.mxu0 %v759
    %973 = vmatpush1.bf16.msra.mxu0 %v758
    %974 = vmatprep.subr.bf16.mxu0 %v763
    %975 = vmatpush1.bf16.msra.mxu0 %v762
    %976 = vmatprep.subr.bf16.mxu0 %v767
    %977 = vmatpush1.bf16.msra.mxu0 %v766
    %978 = vmatprep.subr.bf16.mxu0 %v771
    %979 = vmatpush1.bf16.msra.mxu0 %v770
    %980 = vmatprep.subr.bf16.mxu0 0
    %981 = vmatpush1.bf16.msra.mxu0 0
    %982 = vmatprep.subr.bf16.mxu0 0
    %983 = vmatpush1.bf16.msra.mxu0 0
    %984 = vmatprep.subr.bf16.mxu0 0
    %985 = vmatpush1.bf16.msra.mxu0 0
    %986 = vmatprep.subr.bf16.mxu0 0
    %987 = vmatpush1.bf16.msra.mxu0 0
    %988 = vmatprep.subr.bf16.mxu0 0
    %989 = vmatpush1.bf16.msra.mxu0 0
    %990 = vmatprep.subr.bf16.mxu0 0
    %991 = vmatpush1.bf16.msra.mxu0 0
    %992 = vmatprep.subr.bf16.mxu0 0
    %993 = vmatpush1.bf16.msra.mxu0 0
    %994 = vmatprep.subr.bf16.mxu0 0
    %995 = vmatpush1.bf16.msra.mxu0 0
    %996 = vmatprep.mubr.bf16.mxu0 0
    %997 = vmatmul.mubr.bf16.gmra.mrb[0].mxu0 %v922
    %v998 = vpop.f32.mrb[0].mxu0
    %v999 = vadd.f32 0.0, %v998
    %v1000 = vpop.f32.mrb[0].mxu0
    %v1001 = vadd.f32 0.0, %v1000
    %v1002 = vpop.f32.mrb[0].mxu0
    %v1003 = vpop.f32.mrb[0].mxu0
    %1004 = vdwg.mxu0
    %v1005 = vadd.f32 %v918, %v958
    %v1006 = vadd.f32 %v919, %v960
    %v1007 = vadd.f32 %v920, %v999
    %v1008 = vadd.f32 %v921, %v1001
    %v1009 = vxor.u32 %v1005, 2147483648
    %v1010 = vmul.f32 %v1009, 1.442695
    %v1011 = vpow.pop %v1010
    %v1012 = vadd.f32 %v1011, 1.0
    %v1013 = vrcp.pop %v1012
    %v1014 = vmul.f32 1.0, %v1013
    %v1015 = vxor.u32 %v1006, 2147483648
    %v1016 = vmul.f32 %v1015, 1.442695
    %v1017 = vpow.pop %v1016
    %v1018 = vadd.f32 %v1017, 1.0
    %v1019 = vrcp.pop %v1018
    %v1020 = vmul.f32 1.0, %v1019
    %v1021 = vtanh.pop %v1007
    %v1022 = vxor.u32 %v1008, 2147483648
    %v1023 = vmul.f32 %v1022, 1.442695
    %v1024 = vpow.pop %v1023
    %v1025 = vadd.f32 %v1024, 1.0
    %v1026 = vrcp.pop %v1025
    %v1027 = vmul.f32 1.0, %v1026
    %v1028 = vmul.f32 %v1020, %v911
    %v1029 = vmul.f32 %v1014, %v1021
    %v1030 = vadd.f32 %v1028, %v1029
    %v1031 = vtanh.pop %v1030
    %v1032 = vmul.f32 %v1027, %v1031
    %vm1033 = vcmp.eq.s32.totalorder %v607, 2
    %v1034 = vsel %vm1033, 1, 0
    %vm1035 = vcmp.eq.s32.totalorder %v1034, 1
    %v1036 = vsel %vm1035, %v1032, %v917
    %v1037 = vld [vmem:[#allocation3 + $0x40] sm:$0xff]
    %v1038 = vld [vmem:[#allocation3 + $0x48] sm:$0xff]
    %v1039 = vld [vmem:[#allocation3 + $0x50] sm:$0xff]
    %v1040 = vld [vmem:[#allocation3 + $0x58] sm:$0xff]
    %v1041 = vpack.c.bf16 %v1032, %v1032
    %1042 = vmatprep.subr.bf16.mxu0 %v741
    %1043 = vmatpush1.bf16.msra.mxu0 %v740
    %1044 = vmatprep.subr.bf16.mxu0 %v745
    %1045 = vmatpush1.bf16.msra.mxu0 %v744
    %1046 = vmatprep.subr.bf16.mxu0 %v749
    %1047 = vmatpush1.bf16.msra.mxu0 %v748
    %1048 = vmatprep.subr.bf16.mxu0 %v753
    %1049 = vmatpush1.bf16.msra.mxu0 %v752
    %1050 = vmatprep.subr.bf16.mxu0 %v757
    %1051 = vmatpush1.bf16.msra.mxu0 %v756
    %1052 = vmatprep.subr.bf16.mxu0 %v761
    %1053 = vmatpush1.bf16.msra.mxu0 %v760
    %1054 = vmatprep.subr.bf16.mxu0 %v765
    %1055 = vmatpush1.bf16.msra.mxu0 %v764
    %1056 = vmatprep.subr.bf16.mxu0 %v769
    %1057 = vmatpush1.bf16.msra.mxu0 %v768
    %1058 = vmatprep.subr.bf16.mxu0 0
    %1059 = vmatpush1.bf16.msra.mxu0 0
    %1060 = vmatprep.subr.bf16.mxu0 0
    %1061 = vmatpush1.bf16.msra.mxu0 0
    %1062 = vmatprep.subr.bf16.mxu0 0
    %1063 = vmatpush1.bf16.msra.mxu0 0
    %1064 = vmatprep.subr.bf16.mxu0 0
    %1065 = vmatpush1.bf16.msra.mxu0 0
    %1066 = vmatprep.subr.bf16.mxu0 0
    %1067 = vmatpush1.bf16.msra.mxu0 0
    %1068 = vmatprep.subr.bf16.mxu0 0
    %1069 = vmatpush1.bf16.msra.mxu0 0
    %1070 = vmatprep.subr.bf16.mxu0 0
    %1071 = vmatpush1.bf16.msra.mxu0 0
    %1072 = vmatprep.subr.bf16.mxu0 0
    %1073 = vmatpush1.bf16.msra.mxu0 0
    %1074 = vmatprep.mubr.bf16.mxu0 0
    %1075 = vmatmul.mubr.bf16.gmra.mrb[0].mxu0 %v1041
    %v1076 = vpop.f32.mrb[0].mxu0
    %v1077 = vadd.f32 0.0, %v1076
    %v1078 = vpop.f32.mrb[0].mxu0
    %v1079 = vadd.f32 0.0, %v1078
    %v1080 = vpop.f32.mrb[0].mxu0
    %v1081 = vpop.f32.mrb[0].mxu0
    %1082 = vdwg.mxu0
    %1083 = vmatprep.subr.bf16.mxu0 %v743
    %1084 = vmatpush1.bf16.msra.mxu0 %v742
    %1085 = vmatprep.subr.bf16.mxu0 %v747
    %1086 = vmatpush1.bf16.msra.mxu0 %v746
    %1087 = vmatprep.subr.bf16.mxu0 %v751
    %1088 = vmatpush1.bf16.msra.mxu0 %v750
    %1089 = vmatprep.subr.bf16.mxu0 %v755
    %1090 = vmatpush1.bf16.msra.mxu0 %v754
    %1091 = vmatprep.subr.bf16.mxu0 %v759
    %1092 = vmatpush1.bf16.msra.mxu0 %v758
    %1093 = vmatprep.subr.bf16.mxu0 %v763
    %1094 = vmatpush1.bf16.msra.mxu0 %v762
    %1095 = vmatprep.subr.bf16.mxu0 %v767
    %1096 = vmatpush1.bf16.msra.mxu0 %v766
    %1097 = vmatprep.subr.bf16.mxu0 %v771
    %1098 = vmatpush1.bf16.msra.mxu0 %v770
    %1099 = vmatprep.subr.bf16.mxu0 0
    %1100 = vmatpush1.bf16.msra.mxu0 0
    %1101 = vmatprep.subr.bf16.mxu0 0
    %1102 = vmatpush1.bf16.msra.mxu0 0
    %1103 = vmatprep.subr.bf16.mxu0 0
    %1104 = vmatpush1.bf16.msra.mxu0 0
    %1105 = vmatprep.subr.bf16.mxu0 0
    %1106 = vmatpush1.bf16.msra.mxu0 0
    %1107 = vmatprep.subr.bf16.mxu0 0
    %1108 = vmatpush1.bf16.msra.mxu0 0
    %1109 = vmatprep.subr.bf16.mxu0 0
    %1110 = vmatpush1.bf16.msra.mxu0 0
    %1111 = vmatprep.subr.bf16.mxu0 0
    %1112 = vmatpush1.bf16.msra.mxu0 0
    %1113 = vmatprep.subr.bf16.mxu0 0
    %1114 = vmatpush1.bf16.msra.mxu0 0
    %1115 = vmatprep.mubr.bf16.mxu0 0
    %1116 = vmatmul.mubr.bf16.gmra.mrb[0].mxu0 %v1041
    %v1117 = vpop.f32.mrb[0].mxu0
    %v1118 = vadd.f32 0.0, %v1117
    %v1119 = vpop.f32.mrb[0].mxu0
    %v1120 = vadd.f32 0.0, %v1119
    %v1121 = vpop.f32.mrb[0].mxu0
    %v1122 = vpop.f32.mrb[0].mxu0
    %1123 = vdwg.mxu0
    %v1124 = vadd.f32 %v1037, %v1077
    %v1125 = vadd.f32 %v1038, %v1079
    %v1126 = vadd.f32 %v1039, %v1118
    %v1127 = vadd.f32 %v1040, %v1120
    %v1128 = vxor.u32 %v1124, 2147483648
    %v1129 = vmul.f32 %v1128, 1.442695
    %v1130 = vpow.pop %v1129
    %v1131 = vadd.f32 %v1130, 1.0
    %v1132 = vrcp.pop %v1131
    %v1133 = vmul.f32 1.0, %v1132
    %v1134 = vxor.u32 %v1125, 2147483648
    %v1135 = vmul.f32 %v1134, 1.442695
    %v1136 = vpow.pop %v1135
    %v1137 = vadd.f32 %v1136, 1.0
    %v1138 = vrcp.pop %v1137
    %v1139 = vmul.f32 1.0, %v1138
    %v1140 = vtanh.pop %v1126
    %v1141 = vxor.u32 %v1127, 2147483648
    %v1142 = vmul.f32 %v1141, 1.442695
    %v1143 = vpow.pop %v1142
    %v1144 = vadd.f32 %v1143, 1.0
    %v1145 = vrcp.pop %v1144
    %v1146 = vmul.f32 1.0, %v1145
    %v1147 = vmul.f32 %v1139, %v1030
    %v1148 = vmul.f32 %v1133, %v1140
    %v1149 = vadd.f32 %v1147, %v1148
    %v1150 = vtanh.pop %v1149
    %v1151 = vmul.f32 %v1146, %v1150
    %vm1152 = vcmp.eq.s32.totalorder %v607, 3
    %v1153 = vsel %vm1152, 1, 0
    %vm1154 = vcmp.eq.s32.totalorder %v1153, 1
    %v1155 = vsel %vm1154, %v1151, %v1036
    %v1156 = vld [vmem:[#allocation3 + $0x60] sm:$0xff]
    %v1157 = vld [vmem:[#allocation3 + $0x68] sm:$0xff]
    %v1158 = vld [vmem:[#allocation3 + $0x70] sm:$0xff]
    %v1159 = vld [vmem:[#allocation3 + $0x78] sm:$0xff]
    %v1160 = vpack.c.bf16 %v1151, %v1151
    %1161 = vmatprep.subr.bf16.mxu0 %v741
    %1162 = vmatpush1.bf16.msra.mxu0 %v740
    %1163 = vmatprep.subr.bf16.mxu0 %v745
    %1164 = vmatpush1.bf16.msra.mxu0 %v744
    %1165 = vmatprep.subr.bf16.mxu0 %v749
    %1166 = vmatpush1.bf16.msra.mxu0 %v748
    %1167 = vmatprep.subr.bf16.mxu0 %v753
    %1168 = vmatpush1.bf16.msra.mxu0 %v752
    %1169 = vmatprep.subr.bf16.mxu0 %v757
    %1170 = vmatpush1.bf16.msra.mxu0 %v756
    %1171 = vmatprep.subr.bf16.mxu0 %v761
    %1172 = vmatpush1.bf16.msra.mxu0 %v760
    %1173 = vmatprep.subr.bf16.mxu0 %v765
    %1174 = vmatpush1.bf16.msra.mxu0 %v764
    %1175 = vmatprep.subr.bf16.mxu0 %v769
    %1176 = vmatpush1.bf16.msra.mxu0 %v768
    %1177 = vmatprep.subr.bf16.mxu0 0
    %1178 = vmatpush1.bf16.msra.mxu0 0
    %1179 = vmatprep.subr.bf16.mxu0 0
    %1180 = vmatpush1.bf16.msra.mxu0 0
    %1181 = vmatprep.subr.bf16.mxu0 0
    %1182 = vmatpush1.bf16.msra.mxu0 0
    %1183 = vmatprep.subr.bf16.mxu0 0
    %1184 = vmatpush1.bf16.msra.mxu0 0
    %1185 = vmatprep.subr.bf16.mxu0 0
    %1186 = vmatpush1.bf16.msra.mxu0 0
    %1187 = vmatprep.subr.bf16.mxu0 0
    %1188 = vmatpush1.bf16.msra.mxu0 0
    %1189 = vmatprep.subr.bf16.mxu0 0
    %1190 = vmatpush1.bf16.msra.mxu0 0
    %1191 = vmatprep.subr.bf16.mxu0 0
    %1192 = vmatpush1.bf16.msra.mxu0 0
    %1193 = vmatprep.mubr.bf16.mxu0 0
    %1194 = vmatmul.mubr.bf16.gmra.mrb[0].mxu0 %v1160
    %v1195 = vpop.f32.mrb[0].mxu0
    %v1196 = vadd.f32 0.0, %v1195
    %v1197 = vpop.f32.mrb[0].mxu0
    %v1198 = vadd.f32 0.0, %v1197
    %v1199 = vpop.f32.mrb[0].mxu0
    %v1200 = vpop.f32.mrb[0].mxu0
    %1201 = vdwg.mxu0
    %1202 = vmatprep.subr.bf16.mxu0 %v743
    %1203 = vmatpush1.bf16.msra.mxu0 %v742
    %1204 = vmatprep.subr.bf16.mxu0 %v747
    %1205 = vmatpush1.bf16.msra.mxu0 %v746
    %1206 = vmatprep.subr.bf16.mxu0 %v751
    %1207 = vmatpush1.bf16.msra.mxu0 %v750
    %1208 = vmatprep.subr.bf16.mxu0 %v755
    %1209 = vmatpush1.bf16.msra.mxu0 %v754
    %1210 = vmatprep.subr.bf16.mxu0 %v759
    %1211 = vmatpush1.bf16.msra.mxu0 %v758
    %1212 = vmatprep.subr.bf16.mxu0 %v763
    %1213 = vmatpush1.bf16.msra.mxu0 %v762
    %1214 = vmatprep.subr.bf16.mxu0 %v767
    %1215 = vmatpush1.bf16.msra.mxu0 %v766
    %1216 = vmatprep.subr.bf16.mxu0 %v771
    %1217 = vmatpush1.bf16.msra.mxu0 %v770
    %1218 = vmatprep.subr.bf16.mxu0 0
    %1219 = vmatpush1.bf16.msra.mxu0 0
    %1220 = vmatprep.subr.bf16.mxu0 0
    %1221 = vmatpush1.bf16.msra.mxu0 0
    %1222 = vmatprep.subr.bf16.mxu0 0
    %1223 = vmatpush1.bf16.msra.mxu0 0
    %1224 = vmatprep.subr.bf16.mxu0 0
    %1225 = vmatpush1.bf16.msra.mxu0 0
    %1226 = vmatprep.subr.bf16.mxu0 0
    %1227 = vmatpush1.bf16.msra.mxu0 0
    %1228 = vmatprep.subr.bf16.mxu0 0
    %1229 = vmatpush1.bf16.msra.mxu0 0
    %1230 = vmatprep.subr.bf16.mxu0 0
    %1231 = vmatpush1.bf16.msra.mxu0 0
    %1232 = vmatprep.subr.bf16.mxu0 0
    %1233 = vmatpush1.bf16.msra.mxu0 0
    %1234 = vmatprep.mubr.bf16.mxu0 0
    %1235 = vmatmul.mubr.bf16.gmra.mrb[0].mxu0 %v1160
    %v1236 = vpop.f32.mrb[0].mxu0
    %v1237 = vadd.f32 0.0, %v1236
    %v1238 = vpop.f32.mrb[0].mxu0
    %v1239 = vadd.f32 0.0, %v1238
    %v1240 = vpop.f32.mrb[0].mxu0
    %v1241 = vpop.f32.mrb[0].mxu0
    %1242 = vdwg.mxu0
    %v1243 = vadd.f32 %v1156, %v1196
    %v1244 = vadd.f32 %v1157, %v1198
    %v1245 = vadd.f32 %v1158, %v1237
    %v1246 = vadd.f32 %v1159, %v1239
    %v1247 = vxor.u32 %v1243, 2147483648
    %v1248 = vmul.f32 %v1247, 1.442695
    %v1249 = vpow.pop %v1248
    %v1250 = vadd.f32 %v1249, 1.0
    %v1251 = vrcp.pop %v1250
    %v1252 = vmul.f32 1.0, %v1251
    %v1253 = vxor.u32 %v1244, 2147483648
    %v1254 = vmul.f32 %v1253, 1.442695
    %v1255 = vpow.pop %v1254
    %v1256 = vadd.f32 %v1255, 1.0
    %v1257 = vrcp.pop %v1256
    %v1258 = vmul.f32 1.0, %v1257
    %v1259 = vtanh.pop %v1245
    %v1260 = vxor.u32 %v1246, 2147483648
    %v1261 = vmul.f32 %v1260, 1.442695
    %v1262 = vpow.pop %v1261
    %v1263 = vadd.f32 %v1262, 1.0
    %v1264 = vrcp.pop %v1263
    %v1265 = vmul.f32 1.0, %v1264
    %v1266 = vmul.f32 %v1258, %v1149
    %v1267 = vmul.f32 %v1252, %v1259
    %v1268 = vadd.f32 %v1266, %v1267
    %v1269 = vtanh.pop %v1268
    %v1270 = vmul.f32 %v1265, %v1269
    %vm1271 = vcmp.eq.s32.totalorder %v607, 4
    %v1272 = vsel %vm1271, 1, 0
    %vm1273 = vcmp.eq.s32.totalorder %v1272, 1
    %v1274 = vsel %vm1273, %v1270, %v1155
    %v1275 = vld [vmem:[#allocation3 + $0x80] sm:$0xff]
    %v1276 = vld [vmem:[#allocation3 + $0x88] sm:$0xff]
    %v1277 = vld [vmem:[#allocation3 + $0x90] sm:$0xff]
    %v1278 = vld [vmem:[#allocation3 + $0x98] sm:$0xff]
    %v1279 = vpack.c.bf16 %v1270, %v1270
    %1280 = vmatprep.subr.bf16.mxu0 %v741
    %1281 = vmatpush1.bf16.msra.mxu0 %v740
    %1282 = vmatprep.subr.bf16.mxu0 %v745
    %1283 = vmatpush1.bf16.msra.mxu0 %v744
    %1284 = vmatprep.subr.bf16.mxu0 %v749
    %1285 = vmatpush1.bf16.msra.mxu0 %v748
    %1286 = vmatprep.subr.bf16.mxu0 %v753
    %1287 = vmatpush1.bf16.msra.mxu0 %v752
    %1288 = vmatprep.subr.bf16.mxu0 %v757
    %1289 = vmatpush1.bf16.msra.mxu0 %v756
    %1290 = vmatprep.subr.bf16.mxu0 %v761
    %1291 = vmatpush1.bf16.msra.mxu0 %v760
    %1292 = vmatprep.subr.bf16.mxu0 %v765
    %1293 = vmatpush1.bf16.msra.mxu0 %v764
    %1294 = vmatprep.subr.bf16.mxu0 %v769
    %1295 = vmatpush1.bf16.msra.mxu0 %v768
    %1296 = vmatprep.subr.bf16.mxu0 0
    %1297 = vmatpush1.bf16.msra.mxu0 0
    %1298 = vmatprep.subr.bf16.mxu0 0
    %1299 = vmatpush1.bf16.msra.mxu0 0
    %1300 = vmatprep.subr.bf16.mxu0 0
    %1301 = vmatpush1.bf16.msra.mxu0 0
    %1302 = vmatprep.subr.bf16.mxu0 0
    %1303 = vmatpush1.bf16.msra.mxu0 0
    %1304 = vmatprep.subr.bf16.mxu0 0
    %1305 = vmatpush1.bf16.msra.mxu0 0
    %1306 = vmatprep.subr.bf16.mxu0 0
    %1307 = vmatpush1.bf16.msra.mxu0 0
    %1308 = vmatprep.subr.bf16.mxu0 0
    %1309 = vmatpush1.bf16.msra.mxu0 0
    %1310 = vmatprep.subr.bf16.mxu0 0
    %1311 = vmatpush1.bf16.msra.mxu0 0
    %1312 = vmatprep.mubr.bf16.mxu0 0
    %1313 = vmatmul.mubr.bf16.gmra.mrb[0].mxu0 %v1279
    %v1314 = vpop.f32.mrb[0].mxu0
    %v1315 = vadd.f32 0.0, %v1314
    %v1316 = vpop.f32.mrb[0].mxu0
    %v1317 = vadd.f32 0.0, %v1316
    %v1318 = vpop.f32.mrb[0].mxu0
    %v1319 = vpop.f32.mrb[0].mxu0
    %1320 = vdwg.mxu0
    %1321 = vmatprep.subr.bf16.mxu0 %v743
    %1322 = vmatpush1.bf16.msra.mxu0 %v742
    %1323 = vmatprep.subr.bf16.mxu0 %v747
    %1324 = vmatpush1.bf16.msra.mxu0 %v746
    %1325 = vmatprep.subr.bf16.mxu0 %v751
    %1326 = vmatpush1.bf16.msra.mxu0 %v750
    %1327 = vmatprep.subr.bf16.mxu0 %v755
    %1328 = vmatpush1.bf16.msra.mxu0 %v754
    %1329 = vmatprep.subr.bf16.mxu0 %v759
    %1330 = vmatpush1.bf16.msra.mxu0 %v758
    %1331 = vmatprep.subr.bf16.mxu0 %v763
    %1332 = vmatpush1.bf16.msra.mxu0 %v762
    %1333 = vmatprep.subr.bf16.mxu0 %v767
    %1334 = vmatpush1.bf16.msra.mxu0 %v766
    %1335 = vmatprep.subr.bf16.mxu0 %v771
    %1336 = vmatpush1.bf16.msra.mxu0 %v770
    %1337 = vmatprep.subr.bf16.mxu0 0
    %1338 = vmatpush1.bf16.msra.mxu0 0
    %1339 = vmatprep.subr.bf16.mxu0 0
    %1340 = vmatpush1.bf16.msra.mxu0 0
    %1341 = vmatprep.subr.bf16.mxu0 0
    %1342 = vmatpush1.bf16.msra.mxu0 0
    %1343 = vmatprep.subr.bf16.mxu0 0
    %1344 = vmatpush1.bf16.msra.mxu0 0
    %1345 = vmatprep.subr.bf16.mxu0 0
    %1346 = vmatpush1.bf16.msra.mxu0 0
    %1347 = vmatprep.subr.bf16.mxu0 0
    %1348 = vmatpush1.bf16.msra.mxu0 0
    %1349 = vmatprep.subr.bf16.mxu0 0
    %1350 = vmatpush1.bf16.msra.mxu0 0
    %1351 = vmatprep.subr.bf16.mxu0 0
    %1352 = vmatpush1.bf16.msra.mxu0 0
    %1353 = vmatprep.mubr.bf16.mxu0 0
    %1354 = vmatmul.mubr.bf16.gmra.mrb[0].mxu0 %v1279
    %v1355 = vpop.f32.mrb[0].mxu0
    %v1356 = vadd.f32 0.0, %v1355
    %v1357 = vpop.f32.mrb[0].mxu0
    %v1358 = vadd.f32 0.0, %v1357
    %v1359 = vpop.f32.mrb[0].mxu0
    %v1360 = vpop.f32.mrb[0].mxu0
    %1361 = vdwg.mxu0
    %v1362 = vadd.f32 %v1275, %v1315
    %v1363 = vadd.f32 %v1276, %v1317
    %v1364 = vadd.f32 %v1277, %v1356
    %v1365 = vadd.f32 %v1278, %v1358
    %v1366 = vxor.u32 %v1362, 2147483648
    %v1367 = vmul.f32 %v1366, 1.442695
    %v1368 = vpow.pop %v1367
    %v1369 = vadd.f32 %v1368, 1.0
    %v1370 = vrcp.pop %v1369
    %v1371 = vmul.f32 1.0, %v1370
    %v1372 = vxor.u32 %v1363, 2147483648
    %v1373 = vmul.f32 %v1372, 1.442695
    %v1374 = vpow.pop %v1373
    %v1375 = vadd.f32 %v1374, 1.0
    %v1376 = vrcp.pop %v1375
    %v1377 = vmul.f32 1.0, %v1376
    %v1378 = vtanh.pop %v1364
    %v1379 = vxor.u32 %v1365, 2147483648
    %v1380 = vmul.f32 %v1379, 1.442695
    %v1381 = vpow.pop %v1380
    %v1382 = vadd.f32 %v1381, 1.0
    %v1383 = vrcp.pop %v1382
    %v1384 = vmul.f32 1.0, %v1383
    %v1385 = vmul.f32 %v1377, %v1268
    %v1386 = vmul.f32 %v1371, %v1378
    %v1387 = vadd.f32 %v1385, %v1386
    %v1388 = vtanh.pop %v1387
    %v1389 = vmul.f32 %v1384, %v1388
    %vm1390 = vcmp.eq.s32.totalorder %v607, 5
    %v1391 = vsel %vm1390, 1, 0
    %vm1392 = vcmp.eq.s32.totalorder %v1391, 1
    %v1393 = vsel %vm1392, %v1389, %v1274
    %v1394 = vld [vmem:[#allocation3 + $0xa0] sm:$0xff]
    %v1395 = vld [vmem:[#allocation3 + $0xa8] sm:$0xff]
    %v1396 = vld [vmem:[#allocation3 + $0xb0] sm:$0xff]
    %v1397 = vld [vmem:[#allocation3 + $0xb8] sm:$0xff]
    %v1398 = vpack.c.bf16 %v1389, %v1389
    %1399 = vmatprep.subr.bf16.mxu0 %v741
    %1400 = vmatpush1.bf16.msra.mxu0 %v740
    %1401 = vmatprep.subr.bf16.mxu0 %v745
    %1402 = vmatpush1.bf16.msra.mxu0 %v744
    %1403 = vmatprep.subr.bf16.mxu0 %v749
    %1404 = vmatpush1.bf16.msra.mxu0 %v748
    %1405 = vmatprep.subr.bf16.mxu0 %v753
    %1406 = vmatpush1.bf16.msra.mxu0 %v752
    %1407 = vmatprep.subr.bf16.mxu0 %v757
    %1408 = vmatpush1.bf16.msra.mxu0 %v756
    %1409 = vmatprep.subr.bf16.mxu0 %v761
    %1410 = vmatpush1.bf16.msra.mxu0 %v760
    %1411 = vmatprep.subr.bf16.mxu0 %v765
    %1412 = vmatpush1.bf16.msra.mxu0 %v764
    %1413 = vmatprep.subr.bf16.mxu0 %v769
    %1414 = vmatpush1.bf16.msra.mxu0 %v768
    %1415 = vmatprep.subr.bf16.mxu0 0
    %1416 = vmatpush1.bf16.msra.mxu0 0
    %1417 = vmatprep.subr.bf16.mxu0 0
    %1418 = vmatpush1.bf16.msra.mxu0 0
    %1419 = vmatprep.subr.bf16.mxu0 0
    %1420 = vmatpush1.bf16.msra.mxu0 0
    %1421 = vmatprep.subr.bf16.mxu0 0
    %1422 = vmatpush1.bf16.msra.mxu0 0
    %1423 = vmatprep.subr.bf16.mxu0 0
    %1424 = vmatpush1.bf16.msra.mxu0 0
    %1425 = vmatprep.subr.bf16.mxu0 0
    %1426 = vmatpush1.bf16.msra.mxu0 0
    %1427 = vmatprep.subr.bf16.mxu0 0
    %1428 = vmatpush1.bf16.msra.mxu0 0
    %1429 = vmatprep.subr.bf16.mxu0 0
    %1430 = vmatpush1.bf16.msra.mxu0 0
    %1431 = vmatprep.mubr.bf16.mxu0 0
    %1432 = vmatmul.mubr.bf16.gmra.mrb[0].mxu0 %v1398
    %v1433 = vpop.f32.mrb[0].mxu0
    %v1434 = vadd.f32 0.0, %v1433
    %v1435 = vpop.f32.mrb[0].mxu0
    %v1436 = vadd.f32 0.0, %v1435
    %v1437 = vpop.f32.mrb[0].mxu0
    %v1438 = vpop.f32.mrb[0].mxu0
    %1439 = vdwg.mxu0
    %1440 = vmatprep.subr.bf16.mxu0 %v743
    %1441 = vmatpush1.bf16.msra.mxu0 %v742
    %1442 = vmatprep.subr.bf16.mxu0 %v747
    %1443 = vmatpush1.bf16.msra.mxu0 %v746
    %1444 = vmatprep.subr.bf16.mxu0 %v751
    %1445 = vmatpush1.bf16.msra.mxu0 %v750
    %1446 = vmatprep.subr.bf16.mxu0 %v755
    %1447 = vmatpush1.bf16.msra.mxu0 %v754
    %1448 = vmatprep.subr.bf16.mxu0 %v759
    %1449 = vmatpush1.bf16.msra.mxu0 %v758
    %1450 = vmatprep.subr.bf16.mxu0 %v763
    %1451 = vmatpush1.bf16.msra.mxu0 %v762
    %1452 = vmatprep.subr.bf16.mxu0 %v767
    %1453 = vmatpush1.bf16.msra.mxu0 %v766
    %1454 = vmatprep.subr.bf16.mxu0 %v771
    %1455 = vmatpush1.bf16.msra.mxu0 %v770
    %1456 = vmatprep.subr.bf16.mxu0 0
    %1457 = vmatpush1.bf16.msra.mxu0 0
    %1458 = vmatprep.subr.bf16.mxu0 0
    %1459 = vmatpush1.bf16.msra.mxu0 0
    %1460 = vmatprep.subr.bf16.mxu0 0
    %1461 = vmatpush1.bf16.msra.mxu0 0
    %1462 = vmatprep.subr.bf16.mxu0 0
    %1463 = vmatpush1.bf16.msra.mxu0 0
    %1464 = vmatprep.subr.bf16.mxu0 0
    %1465 = vmatpush1.bf16.msra.mxu0 0
    %1466 = vmatprep.subr.bf16.mxu0 0
    %1467 = vmatpush1.bf16.msra.mxu0 0
    %1468 = vmatprep.subr.bf16.mxu0 0
    %1469 = vmatpush1.bf16.msra.mxu0 0
    %1470 = vmatprep.subr.bf16.mxu0 0
    %1471 = vmatpush1.bf16.msra.mxu0 0
    %1472 = vmatprep.mubr.bf16.mxu0 0
    %1473 = vmatmul.mubr.bf16.gmra.mrb[0].mxu0 %v1398
    %v1474 = vpop.f32.mrb[0].mxu0
    %v1475 = vadd.f32 0.0, %v1474
    %v1476 = vpop.f32.mrb[0].mxu0
    %v1477 = vadd.f32 0.0, %v1476
    %v1478 = vpop.f32.mrb[0].mxu0
    %v1479 = vpop.f32.mrb[0].mxu0
    %1480 = vdwg.mxu0
    %v1481 = vadd.f32 %v1394, %v1434
    %v1482 = vadd.f32 %v1395, %v1436
    %v1483 = vadd.f32 %v1396, %v1475
    %v1484 = vadd.f32 %v1397, %v1477
    %v1485 = vxor.u32 %v1481, 2147483648
    %v1486 = vmul.f32 %v1485, 1.442695
    %v1487 = vpow.pop %v1486
    %v1488 = vadd.f32 %v1487, 1.0
    %v1489 = vrcp.pop %v1488
    %v1490 = vmul.f32 1.0, %v1489
    %v1491 = vxor.u32 %v1482, 2147483648
    %v1492 = vmul.f32 %v1491, 1.442695
    %v1493 = vpow.pop %v1492
    %v1494 = vadd.f32 %v1493, 1.0
    %v1495 = vrcp.pop %v1494
    %v1496 = vmul.f32 1.0, %v1495
    %v1497 = vtanh.pop %v1483
    %v1498 = vxor.u32 %v1484, 2147483648
    %v1499 = vmul.f32 %v1498, 1.442695
    %v1500 = vpow.pop %v1499
    %v1501 = vadd.f32 %v1500, 1.0
    %v1502 = vrcp.pop %v1501
    %v1503 = vmul.f32 1.0, %v1502
    %v1504 = vmul.f32 %v1496, %v1387
    %v1505 = vmul.f32 %v1490, %v1497
    %v1506 = vadd.f32 %v1504, %v1505
    %v1507 = vtanh.pop %v1506
    %v1508 = vmul.f32 %v1503, %v1507
    %vm1509 = vcmp.eq.s32.totalorder %v607, 6
    %v1510 = vsel %vm1509, 1, 0
    %vm1511 = vcmp.eq.s32.totalorder %v1510, 1
    %v1512 = vsel %vm1511, %v1508, %v1393
    %v1513 = vld [vmem:[#allocation3 + $0xc0] sm:$0xff]
    %v1514 = vld [vmem:[#allocation3 + $0xc8] sm:$0xff]
    %v1515 = vld [vmem:[#allocation3 + $0xd0] sm:$0xff]
    %v1516 = vld [vmem:[#allocation3 + $0xd8] sm:$0xff]
    %v1517 = vpack.c.bf16 %v1508, %v1508
    %1518 = vmatprep.subr.bf16.mxu0 %v741
    %1519 = vmatpush1.bf16.msra.mxu0 %v740
    %1520 = vmatprep.subr.bf16.mxu0 %v745
    %1521 = vmatpush1.bf16.msra.mxu0 %v744
    %1522 = vmatprep.subr.bf16.mxu0 %v749
    %1523 = vmatpush1.bf16.msra.mxu0 %v748
    %1524 = vmatprep.subr.bf16.mxu0 %v753
    %1525 = vmatpush1.bf16.msra.mxu0 %v752
    %1526 = vmatprep.subr.bf16.mxu0 %v757
    %1527 = vmatpush1.bf16.msra.mxu0 %v756
    %1528 = vmatprep.subr.bf16.mxu0 %v761
    %1529 = vmatpush1.bf16.msra.mxu0 %v760
    %1530 = vmatprep.subr.bf16.mxu0 %v765
    %1531 = vmatpush1.bf16.msra.mxu0 %v764
    %1532 = vmatprep.subr.bf16.mxu0 %v769
    %1533 = vmatpush1.bf16.msra.mxu0 %v768
    %1534 = vmatprep.subr.bf16.mxu0 0
    %1535 = vmatpush1.bf16.msra.mxu0 0
    %1536 = vmatprep.subr.bf16.mxu0 0
    %1537 = vmatpush1.bf16.msra.mxu0 0
    %1538 = vmatprep.subr.bf16.mxu0 0
    %1539 = vmatpush1.bf16.msra.mxu0 0
    %1540 = vmatprep.subr.bf16.mxu0 0
    %1541 = vmatpush1.bf16.msra.mxu0 0
    %1542 = vmatprep.subr.bf16.mxu0 0
    %1543 = vmatpush1.bf16.msra.mxu0 0
    %1544 = vmatprep.subr.bf16.mxu0 0
    %1545 = vmatpush1.bf16.msra.mxu0 0
    %1546 = vmatprep.subr.bf16.mxu0 0
    %1547 = vmatpush1.bf16.msra.mxu0 0
    %1548 = vmatprep.subr.bf16.mxu0 0
    %1549 = vmatpush1.bf16.msra.mxu0 0
    %1550 = vmatprep.mubr.bf16.mxu0 0
    %1551 = vmatmul.mubr.bf16.gmra.mrb[0].mxu0 %v1517
    %v1552 = vpop.f32.mrb[0].mxu0
    %v1553 = vadd.f32 0.0, %v1552
    %v1554 = vpop.f32.mrb[0].mxu0
    %v1555 = vadd.f32 0.0, %v1554
    %v1556 = vpop.f32.mrb[0].mxu0
    %v1557 = vpop.f32.mrb[0].mxu0
    %1558 = vdwg.mxu0
    %1559 = vmatprep.subr.bf16.mxu0 %v743
    %1560 = vmatpush1.bf16.msra.mxu0 %v742
    %1561 = vmatprep.subr.bf16.mxu0 %v747
    %1562 = vmatpush1.bf16.msra.mxu0 %v746
    %1563 = vmatprep.subr.bf16.mxu0 %v751
    %1564 = vmatpush1.bf16.msra.mxu0 %v750
    %1565 = vmatprep.subr.bf16.mxu0 %v755
    %1566 = vmatpush1.bf16.msra.mxu0 %v754
    %1567 = vmatprep.subr.bf16.mxu0 %v759
    %1568 = vmatpush1.bf16.msra.mxu0 %v758
    %1569 = vmatprep.subr.bf16.mxu0 %v763
    %1570 = vmatpush1.bf16.msra.mxu0 %v762
    %1571 = vmatprep.subr.bf16.mxu0 %v767
    %1572 = vmatpush1.bf16.msra.mxu0 %v766
    %1573 = vmatprep.subr.bf16.mxu0 %v771
    %1574 = vmatpush1.bf16.msra.mxu0 %v770
    %1575 = vmatprep.subr.bf16.mxu0 0
    %1576 = vmatpush1.bf16.msra.mxu0 0
    %1577 = vmatprep.subr.bf16.mxu0 0
    %1578 = vmatpush1.bf16.msra.mxu0 0
    %1579 = vmatprep.subr.bf16.mxu0 0
    %1580 = vmatpush1.bf16.msra.mxu0 0
    %1581 = vmatprep.subr.bf16.mxu0 0
    %1582 = vmatpush1.bf16.msra.mxu0 0
    %1583 = vmatprep.subr.bf16.mxu0 0
    %1584 = vmatpush1.bf16.msra.mxu0 0
    %1585 = vmatprep.subr.bf16.mxu0 0
    %1586 = vmatpush1.bf16.msra.mxu0 0
    %1587 = vmatprep.subr.bf16.mxu0 0
    %1588 = vmatpush1.bf16.msra.mxu0 0
    %1589 = vmatprep.subr.bf16.mxu0 0
    %1590 = vmatpush1.bf16.msra.mxu0 0
    %1591 = vmatprep.mubr.bf16.mxu0 0
    %1592 = vmatmul.mubr.bf16.gmra.mrb[0].mxu0 %v1517
    %v1593 = vpop.f32.mrb[0].mxu0
    %v1594 = vadd.f32 0.0, %v1593
    %v1595 = vpop.f32.mrb[0].mxu0
    %v1596 = vadd.f32 0.0, %v1595
    %v1597 = vpop.f32.mrb[0].mxu0
    %v1598 = vpop.f32.mrb[0].mxu0
    %1599 = vdwg.mxu0
    %v1600 = vadd.f32 %v1513, %v1553
    %v1601 = vadd.f32 %v1514, %v1555
    %v1602 = vadd.f32 %v1515, %v1594
    %v1603 = vadd.f32 %v1516, %v1596
    %v1604 = vxor.u32 %v1600, 2147483648
    %v1605 = vmul.f32 %v1604, 1.442695
    %v1606 = vpow.pop %v1605
    %v1607 = vadd.f32 %v1606, 1.0
    %v1608 = vrcp.pop %v1607
    %v1609 = vmul.f32 1.0, %v1608
    %v1610 = vxor.u32 %v1601, 2147483648
    %v1611 = vmul.f32 %v1610, 1.442695
    %v1612 = vpow.pop %v1611
    %v1613 = vadd.f32 %v1612, 1.0
    %v1614 = vrcp.pop %v1613
    %v1615 = vmul.f32 1.0, %v1614
    %v1616 = vtanh.pop %v1602
    %v1617 = vxor.u32 %v1603, 2147483648
    %v1618 = vmul.f32 %v1617, 1.442695
    %v1619 = vpow.pop %v1618
    %v1620 = vadd.f32 %v1619, 1.0
    %v1621 = vrcp.pop %v1620
    %v1622 = vmul.f32 1.0, %v1621
    %v1623 = vmul.f32 %v1615, %v1506
    %v1624 = vmul.f32 %v1609, %v1616
    %v1625 = vadd.f32 %v1623, %v1624
    %v1626 = vtanh.pop %v1625
    %v1627 = vmul.f32 %v1622, %v1626
    %vm1628 = vcmp.eq.s32.totalorder %v607, 7
    %v1629 = vsel %vm1628, 1, 0
    %vm1630 = vcmp.eq.s32.totalorder %v1629, 1
    %v1631 = vsel %vm1630, %v1627, %v1512
    %v1632 = vld [vmem:[#allocation3 + $0xe0] sm:$0xff]
    %v1633 = vld [vmem:[#allocation3 + $0xe8] sm:$0xff]
    %v1634 = vld [vmem:[#allocation3 + $0xf0] sm:$0xff]
    %v1635 = vld [vmem:[#allocation3 + $0xf8] sm:$0xff]
    %v1636 = vpack.c.bf16 %v1627, %v1627
    %1637 = vmatprep.subr.bf16.mxu0 %v741
    %1638 = vmatpush1.bf16.msra.mxu0 %v740
    %1639 = vmatprep.subr.bf16.mxu0 %v745
    %1640 = vmatpush1.bf16.msra.mxu0 %v744
    %1641 = vmatprep.subr.bf16.mxu0 %v749
    %1642 = vmatpush1.bf16.msra.mxu0 %v748
    %1643 = vmatprep.subr.bf16.mxu0 %v753
    %1644 = vmatpush1.bf16.msra.mxu0 %v752
    %1645 = vmatprep.subr.bf16.mxu0 %v757
    %1646 = vmatpush1.bf16.msra.mxu0 %v756
    %1647 = vmatprep.subr.bf16.mxu0 %v761
    %1648 = vmatpush1.bf16.msra.mxu0 %v760
    %1649 = vmatprep.subr.bf16.mxu0 %v765
    %1650 = vmatpush1.bf16.msra.mxu0 %v764
    %1651 = vmatprep.subr.bf16.mxu0 %v769
    %1652 = vmatpush1.bf16.msra.mxu0 %v768
    %1653 = vmatprep.subr.bf16.mxu0 0
    %1654 = vmatpush1.bf16.msra.mxu0 0
    %1655 = vmatprep.subr.bf16.mxu0 0
    %1656 = vmatpush1.bf16.msra.mxu0 0
    %1657 = vmatprep.subr.bf16.mxu0 0
    %1658 = vmatpush1.bf16.msra.mxu0 0
    %1659 = vmatprep.subr.bf16.mxu0 0
    %1660 = vmatpush1.bf16.msra.mxu0 0
    %1661 = vmatprep.subr.bf16.mxu0 0
    %1662 = vmatpush1.bf16.msra.mxu0 0
    %1663 = vmatprep.subr.bf16.mxu0 0
    %1664 = vmatpush1.bf16.msra.mxu0 0
    %1665 = vmatprep.subr.bf16.mxu0 0
    %1666 = vmatpush1.bf16.msra.mxu0 0
    %1667 = vmatprep.subr.bf16.mxu0 0
    %1668 = vmatpush1.bf16.msra.mxu0 0
    %1669 = vmatprep.mubr.bf16.mxu0 0
    %1670 = vmatmul.mubr.bf16.gmra.mrb[0].mxu0 %v1636
    %v1671 = vpop.f32.mrb[0].mxu0
    %v1672 = vadd.f32 0.0, %v1671
    %v1673 = vpop.f32.mrb[0].mxu0
    %v1674 = vadd.f32 0.0, %v1673
    %v1675 = vpop.f32.mrb[0].mxu0
    %v1676 = vpop.f32.mrb[0].mxu0
    %1677 = vdwg.mxu0
    %1678 = vmatprep.subr.bf16.mxu0 %v743
    %1679 = vmatpush1.bf16.msra.mxu0 %v742
    %1680 = vmatprep.subr.bf16.mxu0 %v747
    %1681 = vmatpush1.bf16.msra.mxu0 %v746
    %1682 = vmatprep.subr.bf16.mxu0 %v751
    %1683 = vmatpush1.bf16.msra.mxu0 %v750
    %1684 = vmatprep.subr.bf16.mxu0 %v755
    %1685 = vmatpush1.bf16.msra.mxu0 %v754
    %1686 = vmatprep.subr.bf16.mxu0 %v759
    %1687 = vmatpush1.bf16.msra.mxu0 %v758
    %1688 = vmatprep.subr.bf16.mxu0 %v763
    %1689 = vmatpush1.bf16.msra.mxu0 %v762
    %1690 = vmatprep.subr.bf16.mxu0 %v767
    %1691 = vmatpush1.bf16.msra.mxu0 %v766
    %1692 = vmatprep.subr.bf16.mxu0 %v771
    %1693 = vmatpush1.bf16.msra.mxu0 %v770
    %1694 = vmatprep.subr.bf16.mxu0 0
    %1695 = vmatpush1.bf16.msra.mxu0 0
    %1696 = vmatprep.subr.bf16.mxu0 0
    %1697 = vmatpush1.bf16.msra.mxu0 0
    %1698 = vmatprep.subr.bf16.mxu0 0
    %1699 = vmatpush1.bf16.msra.mxu0 0
    %1700 = vmatprep.subr.bf16.mxu0 0
    %1701 = vmatpush1.bf16.msra.mxu0 0
    %1702 = vmatprep.subr.bf16.mxu0 0
    %1703 = vmatpush1.bf16.msra.mxu0 0
    %1704 = vmatprep.subr.bf16.mxu0 0
    %1705 = vmatpush1.bf16.msra.mxu0 0
    %1706 = vmatprep.subr.bf16.mxu0 0
    %1707 = vmatpush1.bf16.msra.mxu0 0
    %1708 = vmatprep.subr.bf16.mxu0 0
    %1709 = vmatpush1.bf16.msra.mxu0 0
    %1710 = vmatprep.mubr.bf16.mxu0 0
    %1711 = vmatmul.mubr.bf16.gmra.mrb[0].mxu0 %v1636
    %v1712 = vpop.f32.mrb[0].mxu0
    %v1713 = vadd.f32 0.0, %v1712
    %v1714 = vpop.f32.mrb[0].mxu0
    %v1715 = vadd.f32 0.0, %v1714
    %v1716 = vpop.f32.mrb[0].mxu0
    %v1717 = vpop.f32.mrb[0].mxu0
    %1718 = vdwg.mxu0
    %v1719 = vadd.f32 %v1632, %v1672
    %v1720 = vadd.f32 %v1633, %v1674
    %v1721 = vadd.f32 %v1634, %v1713
    %v1722 = vadd.f32 %v1635, %v1715
    %v1723 = vxor.u32 %v1719, 2147483648
    %v1724 = vmul.f32 %v1723, 1.442695
    %v1725 = vpow.pop %v1724
    %v1726 = vadd.f32 %v1725, 1.0
    %v1727 = vrcp.pop %v1726
    %v1728 = vmul.f32 1.0, %v1727
    %v1729 = vxor.u32 %v1720, 2147483648
    %v1730 = vmul.f32 %v1729, 1.442695
    %v1731 = vpow.pop %v1730
    %v1732 = vadd.f32 %v1731, 1.0
    %v1733 = vrcp.pop %v1732
    %v1734 = vmul.f32 1.0, %v1733
    %v1735 = vtanh.pop %v1721
    %v1736 = vxor.u32 %v1722, 2147483648
    %v1737 = vmul.f32 %v1736, 1.442695
    %v1738 = vpow.pop %v1737
    %v1739 = vadd.f32 %v1738, 1.0
    %v1740 = vrcp.pop %v1739
    %v1741 = vmul.f32 1.0, %v1740
    %v1742 = vmul.f32 %v1734, %v1625
    %v1743 = vmul.f32 %v1728, %v1735
    %v1744 = vadd.f32 %v1742, %v1743
    %v1745 = vtanh.pop %v1744
    %v1746 = vmul.f32 %v1741, %v1745
    %vm1747 = vcmp.eq.s32.totalorder %v607, 8
    %v1748 = vsel %vm1747, 1, 0
    %vm1749 = vcmp.eq.s32.totalorder %v1748, 1
    %v1750 = vsel %vm1749, %v1746, %v1631
    %v1751 = vld [vmem:[#allocation10] sm:$0xff]
    %v1752 = vld [vmem:[#allocation10 + $0x8] sm:$0xff]
    %v1753 = vld [vmem:[#allocation10 + $0x10] sm:$0xff]
    %v1754 = vld [vmem:[#allocation10 + $0x18] sm:$0xff]
    %v1755 = vpack.c.bf16 %v1752, %v1751
    %v1756 = vpack.c.bf16 %v1754, %v1753
    %v1757 = vld [vmem:[#allocation16] sm:$0xff]
    %v1758 = vld [vmem:[#allocation16 + $0x18] sm:$0xff]
    %v1759 = vld [vmem:[#allocation16 + $0x30] sm:$0xff]
    %v1760 = vld [vmem:[#allocation16 + $0x48] sm:$0xff]
    %v1761 = vld [vmem:[#allocation16 + $0x60] sm:$0xff]
    %v1762 = vld [vmem:[#allocation16 + $0x78] sm:$0xff]
    %v1763 = vld [vmem:[#allocation16 + $0x90] sm:$0xff]
    %v1764 = vld [vmem:[#allocation16 + $0xa8] sm:$0xff]
    %v1765 = vld [vmem:[#allocation16 + $0xc0] sm:$0xff]
    %v1766 = vld [vmem:[#allocation16 + $0xd8] sm:$0xff]
    %v1767 = vld [vmem:[#allocation16 + $0xf0] sm:$0xff]
    %v1768 = vld [vmem:[#allocation16 + $0x108] sm:$0xff]
    %v1769 = vld [vmem:[#allocation16 + $0x120] sm:$0xff]
    %v1770 = vld [vmem:[#allocation16 + $0x138] sm:$0xff]
    %v1771 = vld [vmem:[#allocation16 + $0x150] sm:$0xff]
    %v1772 = vld [vmem:[#allocation16 + $0x168] sm:$0xff]
    %v1789 = vunpack.c.l.b16 %v1757
    %v1790 = vunpack.c.h.b16 %v1757
    %v1791 = vunpack.c.l.b16 %v1758
    %v1792 = vunpack.c.h.b16 %v1758
    %v1793 = vunpack.c.l.b16 %v1759
    %v1794 = vunpack.c.h.b16 %v1759
    %v1795 = vunpack.c.l.b16 %v1760
    %v1796 = vunpack.c.h.b16 %v1760
    %v1797 = vunpack.c.l.b16 %v1761
    %v1798 = vunpack.c.h.b16 %v1761
    %v1799 = vunpack.c.l.b16 %v1762
    %v1800 = vunpack.c.h.b16 %v1762
    %v1801 = vunpack.c.l.b16 %v1763
    %v1802 = vunpack.c.h.b16 %v1763
    %v1803 = vunpack.c.l.b16 %v1764
    %v1804 = vunpack.c.h.b16 %v1764
    %v1805 = vunpack.c.l.b16 %v1765
    %v1806 = vunpack.c.h.b16 %v1765
    %v1807 = vunpack.c.l.b16 %v1766
    %v1808 = vunpack.c.h.b16 %v1766
    %v1809 = vunpack.c.l.b16 %v1767
    %v1810 = vunpack.c.h.b16 %v1767
    %v1811 = vunpack.c.l.b16 %v1768
    %v1812 = vunpack.c.h.b16 %v1768
    %v1813 = vunpack.c.l.b16 %v1769
    %v1814 = vunpack.c.h.b16 %v1769
    %v1815 = vunpack.c.l.b16 %v1770
    %v1816 = vunpack.c.h.b16 %v1770
    %v1817 = vunpack.c.l.b16 %v1771
    %v1818 = vunpack.c.h.b16 %v1771
    %v1819 = vunpack.c.l.b16 %v1772
    %v1820 = vunpack.c.h.b16 %v1772
    %v1821 = vpack.c.b16 %v1791, %v1789
    %v1822 = vpack.c.b16 %v1792, %v1790
    %v1823 = vpack.c.b16 %v1795, %v1793
    %v1824 = vpack.c.b16 %v1796, %v1794
    %v1825 = vpack.c.b16 %v1799, %v1797
    %v1826 = vpack.c.b16 %v1800, %v1798
    %v1827 = vpack.c.b16 %v1803, %v1801
    %v1828 = vpack.c.b16 %v1804, %v1802
    %v1829 = vpack.c.b16 %v1807, %v1805
    %v1830 = vpack.c.b16 %v1808, %v1806
    %v1831 = vpack.c.b16 %v1811, %v1809
    %v1832 = vpack.c.b16 %v1812, %v1810
    %v1833 = vpack.c.b16 %v1815, %v1813
    %v1834 = vpack.c.b16 %v1816, %v1814
    %v1835 = vpack.c.b16 %v1819, %v1817
    %v1836 = vpack.c.b16 %v1820, %v1818
    %1853 = vmatprep.subr.bf16.mxu0 %v1822
    %1854 = vmatpush1.bf16.msra.mxu0 %v1821
    %1855 = vmatprep.subr.bf16.mxu0 %v1824
    %1856 = vmatpush1.bf16.msra.mxu0 %v1823
    %1857 = vmatprep.subr.bf16.mxu0 %v1826
    %1858 = vmatpush1.bf16.msra.mxu0 %v1825
    %1859 = vmatprep.subr.bf16.mxu0 %v1828
    %1860 = vmatpush1.bf16.msra.mxu0 %v1827
    %1861 = vmatprep.subr.bf16.mxu0 %v1830
    %1862 = vmatpush1.bf16.msra.mxu0 %v1829
    %1863 = vmatprep.subr.bf16.mxu0 %v1832
    %1864 = vmatpush1.bf16.msra.mxu0 %v1831
    %1865 = vmatprep.subr.bf16.mxu0 %v1834
    %1866 = vmatpush1.bf16.msra.mxu0 %v1833
    %1867 = vmatprep.subr.bf16.mxu0 %v1836
    %1868 = vmatpush1.bf16.msra.mxu0 %v1835
    %1869 = vmatprep.subr.bf16.mxu0 0
    %1870 = vmatpush1.bf16.msra.mxu0 0
    %1871 = vmatprep.subr.bf16.mxu0 0
    %1872 = vmatpush1.bf16.msra.mxu0 0
    %1873 = vmatprep.subr.bf16.mxu0 0
    %1874 = vmatpush1.bf16.msra.mxu0 0
    %1875 = vmatprep.subr.bf16.mxu0 0
    %1876 = vmatpush1.bf16.msra.mxu0 0
    %1877 = vmatprep.subr.bf16.mxu0 0
    %1878 = vmatpush1.bf16.msra.mxu0 0
    %1879 = vmatprep.subr.bf16.mxu0 0
    %1880 = vmatpush1.bf16.msra.mxu0 0
    %1881 = vmatprep.subr.bf16.mxu0 0
    %1882 = vmatpush1.bf16.msra.mxu0 0
    %1883 = vmatprep.subr.bf16.mxu0 0
    %1884 = vmatpush1.bf16.msra.mxu0 0
    %1885 = vmatprep.mubr.bf16.mxu0 0
    %1886 = vmatmul.mubr.bf16.gmra.mrb[0].mxu0 %v1755
    %v1887 = vpop.f32.mrb[0].mxu0
    %v1888 = vadd.f32 0.0, %v1887
    %v1889 = vpop.f32.mrb[0].mxu0
    %v1890 = vadd.f32 0.0, %v1889
    %v1891 = vpop.f32.mrb[0].mxu0
    %v1892 = vadd.f32 0.0, %v1891
    %v1893 = vpop.f32.mrb[0].mxu0
    %v1894 = vadd.f32 0.0, %v1893
    %1895 = vmatprep.mubr.bf16.mxu0 0
    %1896 = vmatmul.mubr.bf16.gmra.mrb[0].mxu0 %v1756
    %v1897 = vpop.f32.mrb[0].mxu0
    %v1898 = vadd.f32 0.0, %v1897
    %v1899 = vpop.f32.mrb[0].mxu0
    %v1900 = vadd.f32 0.0, %v1899
    %v1901 = vpop.f32.mrb[0].mxu0
    %v1902 = vadd.f32 0.0, %v1901
    %v1903 = vpop.f32.mrb[0].mxu0
    %v1904 = vadd.f32 0.0, %v1903
    %1905 = vdwg.mxu0
    %v1906 = vpack.c.bf16 %v1750, %v1750
    %v1907 = vld [vmem:[#allocation16 + $0x8] sm:$0xff]
    %v1908 = vld [vmem:[#allocation16 + $0x20] sm:$0xff]
    %v1909 = vld [vmem:[#allocation16 + $0x38] sm:$0xff]
    %v1910 = vld [vmem:[#allocation16 + $0x50] sm:$0xff]
    %v1911 = vld [vmem:[#allocation16 + $0x68] sm:$0xff]
    %v1912 = vld [vmem:[#allocation16 + $0x80] sm:$0xff]
    %v1913 = vld [vmem:[#allocation16 + $0x98] sm:$0xff]
    %v1914 = vld [vmem:[#allocation16 + $0xb0] sm:$0xff]
    %v1915 = vld [vmem:[#allocation16 + $0xc8] sm:$0xff]
    %v1916 = vld [vmem:[#allocation16 + $0xe0] sm:$0xff]
    %v1917 = vld [vmem:[#allocation16 + $0xf8] sm:$0xff]
    %v1918 = vld [vmem:[#allocation16 + $0x110] sm:$0xff]
    %v1919 = vld [vmem:[#allocation16 + $0x128] sm:$0xff]
    %v1920 = vld [vmem:[#allocation16 + $0x140] sm:$0xff]
    %v1921 = vld [vmem:[#allocation16 + $0x158] sm:$0xff]
    %v1922 = vld [vmem:[#allocation16 + $0x170] sm:$0xff]
    %v1939 = vunpack.c.l.b16 %v1907
    %v1940 = vunpack.c.h.b16 %v1907
    %v1941 = vunpack.c.l.b16 %v1908
    %v1942 = vunpack.c.h.b16 %v1908
    %v1943 = vunpack.c.l.b16 %v1909
    %v1944 = vunpack.c.h.b16 %v1909
    %v1945 = vunpack.c.l.b16 %v1910
    %v1946 = vunpack.c.h.b16 %v1910
    %v1947 = vunpack.c.l.b16 %v1911
    %v1948 = vunpack.c.h.b16 %v1911
    %v1949 = vunpack.c.l.b16 %v1912
    %v1950 = vunpack.c.h.b16 %v1912
    %v1951 = vunpack.c.l.b16 %v1913
    %v1952 = vunpack.c.h.b16 %v1913
    %v1953 = vunpack.c.l.b16 %v1914
    %v1954 = vunpack.c.h.b16 %v1914
    %v1955 = vunpack.c.l.b16 %v1915
    %v1956 = vunpack.c.h.b16 %v1915
    %v1957 = vunpack.c.l.b16 %v1916
    %v1958 = vunpack.c.h.b16 %v1916
    %v1959 = vunpack.c.l.b16 %v1917
    %v1960 = vunpack.c.h.b16 %v1917
    %v1961 = vunpack.c.l.b16 %v1918
    %v1962 = vunpack.c.h.b16 %v1918
    %v1963 = vunpack.c.l.b16 %v1919
    %v1964 = vunpack.c.h.b16 %v1919
    %v1965 = vunpack.c.l.b16 %v1920
    %v1966 = vunpack.c.h.b16 %v1920
    %v1967 = vunpack.c.l.b16 %v1921
    %v1968 = vunpack.c.h.b16 %v1921
    %v1969 = vunpack.c.l.b16 %v1922
    %v1970 = vunpack.c.h.b16 %v1922
    %v1971 = vpack.c.b16 %v1941, %v1939
    %v1972 = vpack.c.b16 %v1942, %v1940
    %v1973 = vpack.c.b16 %v1945, %v1943
    %v1974 = vpack.c.b16 %v1946, %v1944
    %v1975 = vpack.c.b16 %v1949, %v1947
    %v1976 = vpack.c.b16 %v1950, %v1948
    %v1977 = vpack.c.b16 %v1953, %v1951
    %v1978 = vpack.c.b16 %v1954, %v1952
    %v1979 = vpack.c.b16 %v1957, %v1955
    %v1980 = vpack.c.b16 %v1958, %v1956
    %v1981 = vpack.c.b16 %v1961, %v1959
    %v1982 = vpack.c.b16 %v1962, %v1960
    %v1983 = vpack.c.b16 %v1965, %v1963
    %v1984 = vpack.c.b16 %v1966, %v1964
    %v1985 = vpack.c.b16 %v1969, %v1967
    %v1986 = vpack.c.b16 %v1970, %v1968
    %2003 = vmatprep.subr.bf16.mxu0 %v1972
    %2004 = vmatpush1.bf16.msra.mxu0 %v1971
    %2005 = vmatprep.subr.bf16.mxu0 %v1974
    %2006 = vmatpush1.bf16.msra.mxu0 %v1973
    %2007 = vmatprep.subr.bf16.mxu0 %v1976
    %2008 = vmatpush1.bf16.msra.mxu0 %v1975
    %2009 = vmatprep.subr.bf16.mxu0 %v1978
    %2010 = vmatpush1.bf16.msra.mxu0 %v1977
    %2011 = vmatprep.subr.bf16.mxu0 %v1980
    %2012 = vmatpush1.bf16.msra.mxu0 %v1979
    %2013 = vmatprep.subr.bf16.mxu0 %v1982
    %2014 = vmatpush1.bf16.msra.mxu0 %v1981
    %2015 = vmatprep.subr.bf16.mxu0 %v1984
    %2016 = vmatpush1.bf16.msra.mxu0 %v1983
    %2017 = vmatprep.subr.bf16.mxu0 %v1986
    %2018 = vmatpush1.bf16.msra.mxu0 %v1985
    %2019 = vmatprep.subr.bf16.mxu0 0
    %2020 = vmatpush1.bf16.msra.mxu0 0
    %2021 = vmatprep.subr.bf16.mxu0 0
    %2022 = vmatpush1.bf16.msra.mxu0 0
    %2023 = vmatprep.subr.bf16.mxu0 0
    %2024 = vmatpush1.bf16.msra.mxu0 0
    %2025 = vmatprep.subr.bf16.mxu0 0
    %2026 = vmatpush1.bf16.msra.mxu0 0
    %2027 = vmatprep.subr.bf16.mxu0 0
    %2028 = vmatpush1.bf16.msra.mxu0 0
    %2029 = vmatprep.subr.bf16.mxu0 0
    %2030 = vmatpush1.bf16.msra.mxu0 0
    %2031 = vmatprep.subr.bf16.mxu0 0
    %2032 = vmatpush1.bf16.msra.mxu0 0
    %2033 = vmatprep.subr.bf16.mxu0 0
    %2034 = vmatpush1.bf16.msra.mxu0 0
    %2035 = vmatprep.mubr.bf16.mxu0 0
    %2036 = vmatmul.mubr.bf16.gmra.mrb[0].mxu0 %v1906
    %v2037 = vpop.f32.mrb[0].mxu0
    %v2038 = vadd.f32 0.0, %v2037
    %v2039 = vpop.f32.mrb[0].mxu0
    %v2040 = vadd.f32 0.0, %v2039
    %v2041 = vpop.f32.mrb[0].mxu0
    %v2042 = vpop.f32.mrb[0].mxu0
    %2043 = vdwg.mxu0
    %v2044 = vld [vmem:[%s7 + $0x4] sm:$0x1]
    %v2045 = vld [vmem:[%s7 + $0x5] sm:$0x1]
    %v2046 = vld [vmem:[%s7 + $0x6] sm:$0x1]
    %v2047 = vld [vmem:[%s7 + $0x7] sm:$0x1]
    %v2048 = vld [vmem:[%s7 + $0x8] sm:$0x3]
    %v2049 = vlaneseq
    %v2050 = vshrl.u32 %v2049, 7
    %v2051 = vsub.s32 0, %v2050
    %v2052 = vrot.slane %v2038, %v2051
    %v2053 = vlaneseq
    %v2054 = vshrl.u32 %v2053, 7
    %v2055 = vsub.s32 1, %v2054
    %v2056 = vrot.slane %v2038, %v2055
    %v2057 = vadd.f32 %v1888, %v2052
    %v2058 = vadd.f32 %v1892, %v2052
    %v2059 = vadd.f32 %v1898, %v2056
    %v2060 = vadd.f32 %v1902, %v2056
    %v2062 = vlaneseq
    %v2063 = vshrl.u32 %v2062, 7
    %v2064 = vsub.s32 0, %v2063
    %v2065 = vrot.slane %v2044, %v2064
    %v2067 = vadd.f32 %v2057, %v2065
    %v2068 = vadd.f32 %v2058, %v2065
    %v2069 = vadd.f32 %v2059, %v2065
    %v2070 = vadd.f32 %v2060, %v2065
    %v2071 = vtanh.pop %v2067
    %v2072 = vtanh.pop %v2068
    %v2073 = vtanh.pop %v2069
    %v2074 = vtanh.pop %v2070
    %v2076 = vlaneseq
    %v2077 = vshrl.u32 %v2076, 7
    %v2078 = vsub.s32 0, %v2077
    %v2079 = vrot.slane %v2046, %v2078
    %v2081 = vmul.f32 %v2071, %v2079
    %v2082 = vmul.f32 %v2072, %v2079
    %v2083 = vmul.f32 %v2073, %v2079
    %v2084 = vmul.f32 %v2074, %v2079
    %2085 = vadd.xlane.f32.xlu0 %v2081
    %v2086 = vpop.xlane.xlu0 %2085
    %2087 = vadd.xlane.f32.xlu0 %v2082
    %v2088 = vpop.xlane.xlu0 %2087
    %2089 = vadd.xlane.f32.xlu0 %v2083
    %v2090 = vpop.xlane.xlu0 %2089
    %2091 = vadd.xlane.f32.xlu0 %v2084
    %v2092 = vpop.xlane.xlu0 %2091
    %v2093 = vmax.f32 %v2086, %v2088
    %v2094 = vrot.slane %v2093, 4
    %v2095 = vmax.f32 %v2093, %v2094
    %v2096 = vrot.slane %v2095, 2
    %v2097 = vmax.f32 %v2095, %v2096
    %v2098 = vrot.slane %v2097, 1
    %v2099 = vmax.f32 %v2097, %v2098
    %v2100 = vsub.f32 %v2086, %v2099
    %v2101 = vsub.f32 %v2088, %v2099
    %v2102 = vmul.f32 %v2100, 1.442695
    %v2103 = vpow.pop %v2102
    %v2104 = vmul.f32 %v2101, 1.442695
    %v2105 = vpow.pop %v2104
    %v2106 = vadd.f32 %v2103, %v2105
    %v2107 = vrot.slane %v2106, 4
    %v2108 = vadd.f32 %v2106, %v2107
    %v2109 = vrot.slane %v2108, 2
    %v2110 = vadd.f32 %v2108, %v2109
    %v2111 = vrot.slane %v2110, 1
    %v2112 = vadd.f32 %v2110, %v2111
    %v2113 = vrcp.pop %v2112
    %v2114 = vmul.f32 %v2103, %v2113
    %v2115 = vmul.f32 %v2105, %v2113
    %v2116 = vmul.f32 %v2114, %v1751
    %v2117 = vmul.f32 %v2115, %v1752
    %v2118 = vadd.f32 %v2116, %v2117
    %v2119 = vrot.slane %v2118, 4
    %v2120 = vadd.f32 %v2118, %v2119
    %v2121 = vrot.slane %v2120, 2
    %v2122 = vadd.f32 %v2120, %v2121
    %v2123 = vrot.slane %v2122, 1
    %v2124 = vadd.f32 %v2122, %v2123
    %v2125 = vmax.f32 %v2090, %v2092
    %v2126 = vrot.slane %v2125, 4
    %v2127 = vmax.f32 %v2125, %v2126
    %v2128 = vrot.slane %v2127, 2
    %v2129 = vmax.f32 %v2127, %v2128
    %v2130 = vrot.slane %v2129, 1
    %v2131 = vmax.f32 %v2129, %v2130
    %v2132 = vsub.f32 %v2090, %v2131
    %v2133 = vsub.f32 %v2092, %v2131
    %v2134 = vmul.f32 %v2132, 1.442695
    %v2135 = vpow.pop %v2134
    %v2136 = vmul.f32 %v2133, 1.442695
    %v2137 = vpow.pop %v2136
    %v2138 = vadd.f32 %v2135, %v2137
    %v2139 = vrot.slane %v2138, 4
    %v2140 = vadd.f32 %v2138, %v2139
    %v2141 = vrot.slane %v2140, 2
    %v2142 = vadd.f32 %v2140, %v2141
    %v2143 = vrot.slane %v2142, 1
    %v2144 = vadd.f32 %v2142, %v2143
    %v2145 = vrcp.pop %v2144
    %v2146 = vmul.f32 %v2135, %v2145
    %v2147 = vmul.f32 %v2137, %v2145
    %v2148 = vmul.f32 %v2146, %v1753
    %v2149 = vmul.f32 %v2147, %v1754
    %v2150 = vadd.f32 %v2148, %v2149
    %v2151 = vrot.slane %v2150, 4
    %v2152 = vadd.f32 %v2150, %v2151
    %v2153 = vrot.slane %v2152, 2
    %v2154 = vadd.f32 %v2152, %v2153
    %v2155 = vrot.slane %v2154, 1
    %v2156 = vadd.f32 %v2154, %v2155
    %vm2157 = vcmask 1040384
    %v2158 = vsel %vm2157, %v2124, %v2156
    %v2159 = vadd.f32 %v2158, %v1750
    %v2160 = vpack.c.bf16 %v2158, %v2158
    %v2161 = vld [vmem:[#allocation16 + $0xc] sm:$0xf]
    %v2162 = vld [vmem:[#allocation16 + $0x24] sm:$0xf]
    %v2163 = vld [vmem:[#allocation16 + $0x3c] sm:$0xf]
    %v2164 = vld [vmem:[#allocation16 + $0x54] sm:$0xf]
    %v2165 = vld [vmem:[#allocation16 + $0x6c] sm:$0xf]
    %v2166 = vld [vmem:[#allocation16 + $0x84] sm:$0xf]
    %v2167 = vld [vmem:[#allocation16 + $0x9c] sm:$0xf]
    %v2168 = vld [vmem:[#allocation16 + $0xb4] sm:$0xf]
    %v2169 = vld [vmem:[#allocation16 + $0xcc] sm:$0xf]
    %v2170 = vld [vmem:[#allocation16 + $0xe4] sm:$0xf]
    %v2171 = vld [vmem:[#allocation16 + $0xfc] sm:$0xf]
    %v2172 = vld [vmem:[#allocation16 + $0x114] sm:$0xf]
    %v2173 = vld [vmem:[#allocation16 + $0x12c] sm:$0xf]
    %v2174 = vld [vmem:[#allocation16 + $0x144] sm:$0xf]
    %v2175 = vld [vmem:[#allocation16 + $0x15c] sm:$0xf]
    %v2176 = vld [vmem:[#allocation16 + $0x174] sm:$0xf]
    %v2193 = vunpack.c.l.b16 %v2161
    %v2194 = vunpack.c.l.b16 %v2162
    %v2195 = vunpack.c.l.b16 %v2163
    %v2196 = vunpack.c.l.b16 %v2164
    %v2197 = vunpack.c.l.b16 %v2165
    %v2198 = vunpack.c.l.b16 %v2166
    %v2199 = vunpack.c.l.b16 %v2167
    %v2200 = vunpack.c.l.b16 %v2168
    %v2201 = vunpack.c.l.b16 %v2169
    %v2202 = vunpack.c.l.b16 %v2170
    %v2203 = vunpack.c.l.b16 %v2171
    %v2204 = vunpack.c.l.b16 %v2172
    %v2205 = vunpack.c.l.b16 %v2173
    %v2206 = vunpack.c.l.b16 %v2174
    %v2207 = vunpack.c.l.b16 %v2175
    %v2208 = vunpack.c.l.b16 %v2176
    %v2209 = vpack.c.b16 %v2194, %v2193
    %v2210 = vpack.c.b16 %v2196, %v2195
    %v2211 = vpack.c.b16 %v2198, %v2197
    %v2212 = vpack.c.b16 %v2200, %v2199
    %v2213 = vpack.c.b16 %v2202, %v2201
    %v2214 = vpack.c.b16 %v2204, %v2203
    %v2215 = vpack.c.b16 %v2206, %v2205
    %v2216 = vpack.c.b16 %v2208, %v2207
    %2225 = vmatprep.subr.bf16.mxu0 0
    %2226 = vmatpush1.bf16.msra.mxu0 %v2209
    %2227 = vmatprep.subr.bf16.mxu0 0
    %2228 = vmatpush1.bf16.msra.mxu0 %v2210
    %2229 = vmatprep.subr.bf16.mxu0 0
    %2230 = vmatpush1.bf16.msra.mxu0 %v2211
    %2231 = vmatprep.subr.bf16.mxu0 0
    %2232 = vmatpush1.bf16.msra.mxu0 %v2212
    %2233 = vmatprep.subr.bf16.mxu0 0
    %2234 = vmatpush1.bf16.msra.mxu0 %v2213
    %2235 = vmatprep.subr.bf16.mxu0 0
    %2236 = vmatpush1.bf16.msra.mxu0 %v2214
    %2237 = vmatprep.subr.bf16.mxu0 0
    %2238 = vmatpush1.bf16.msra.mxu0 %v2215
    %2239 = vmatprep.subr.bf16.mxu0 0
    %2240 = vmatpush1.bf16.msra.mxu0 %v2216
    %2241 = vmatprep.subr.bf16.mxu0 0
    %2242 = vmatpush1.bf16.msra.mxu0 0
    %2243 = vmatprep.subr.bf16.mxu0 0
    %2244 = vmatpush1.bf16.msra.mxu0 0
    %2245 = vmatprep.subr.bf16.mxu0 0
    %2246 = vmatpush1.bf16.msra.mxu0 0
    %2247 = vmatprep.subr.bf16.mxu0 0
    %2248 = vmatpush1.bf16.msra.mxu0 0
    %2249 = vmatprep.subr.bf16.mxu0 0
    %2250 = vmatpush1.bf16.msra.mxu0 0
    %2251 = vmatprep.subr.bf16.mxu0 0
    %2252 = vmatpush1.bf16.msra.mxu0 0
    %2253 = vmatprep.subr.bf16.mxu0 0
    %2254 = vmatpush1.bf16.msra.mxu0 0
    %2255 = vmatprep.subr.bf16.mxu0 0
    %2256 = vmatpush1.bf16.msra.mxu0 0
    %2257 = vmatprep.mubr.bf16.mxu0 0
    %2258 = vmatmul.mubr.bf16.gmra.mrb[0].mxu0 %v2160
    %v2259 = vpop.f32.mrb[0].mxu0
    %v2260 = vadd.f32 0.0, %v2259
    %v2261 = vpop.f32.mrb[0].mxu0
    %v2262 = vpop.f32.mrb[0].mxu0
    %v2263 = vpop.f32.mrb[0].mxu0
    %2264 = vdwg.mxu0
    %v2265 = vadd.f32 %v2040, %v2260
    %v2266 = vlaneseq
    %v2267 = vshrl.u32 %v2266, 7
    %v2268 = vsub.s32 0, %v2267
    %v2269 = vrot.slane %v2265, %v2268
    %v2270 = vlaneseq
    %v2271 = vshrl.u32 %v2270, 7
    %v2272 = vsub.s32 1, %v2271
    %v2273 = vrot.slane %v2265, %v2272
    %v2274 = vadd.f32 %v1890, %v2269
    %v2275 = vadd.f32 %v1894, %v2269
    %v2276 = vadd.f32 %v1900, %v2273
    %v2277 = vadd.f32 %v1904, %v2273
    %v2279 = vlaneseq
    %v2280 = vshrl.u32 %v2279, 7
    %v2281 = vsub.s32 0, %v2280
    %v2282 = vrot.slane %v2045, %v2281
    %v2284 = vadd.f32 %v2274, %v2282
    %v2285 = vadd.f32 %v2275, %v2282
    %v2286 = vadd.f32 %v2276, %v2282
    %v2287 = vadd.f32 %v2277, %v2282
    %v2288 = vtanh.pop %v2284
    %v2289 = vtanh.pop %v2285
    %v2290 = vtanh.pop %v2286
    %v2291 = vtanh.pop %v2287
    %v2293 = vlaneseq
    %v2294 = vshrl.u32 %v2293, 7
    %v2295 = vsub.s32 0, %v2294
    %v2296 = vrot.slane %v2047, %v2295
    %v2298 = vmul.f32 %v2288, %v2296
    %v2299 = vmul.f32 %v2289, %v2296
    %v2300 = vmul.f32 %v2290, %v2296
    %v2301 = vmul.f32 %v2291, %v2296
    %2302 = vadd.xlane.f32.xlu0 %v2298
    %v2303 = vpop.xlane.xlu0 %2302
    %2304 = vadd.xlane.f32.xlu0 %v2299
    %v2305 = vpop.xlane.xlu0 %2304
    %2306 = vadd.xlane.f32.xlu0 %v2300
    %v2307 = vpop.xlane.xlu0 %2306
    %2308 = vadd.xlane.f32.xlu0 %v2301
    %v2309 = vpop.xlane.xlu0 %2308
    %v2310 = vmax.f32 %v2303, %v2305
    %v2311 = vrot.slane %v2310, 4
    %v2312 = vmax.f32 %v2310, %v2311
    %v2313 = vrot.slane %v2312, 2
    %v2314 = vmax.f32 %v2312, %v2313
    %v2315 = vrot.slane %v2314, 1
    %v2316 = vmax.f32 %v2314, %v2315
    %v2317 = vsub.f32 %v2303, %v2316
    %v2318 = vsub.f32 %v2305, %v2316
    %v2319 = vmul.f32 %v2317, 1.442695
    %v2320 = vpow.pop %v2319
    %v2321 = vmul.f32 %v2318, 1.442695
    %v2322 = vpow.pop %v2321
    %v2323 = vadd.f32 %v2320, %v2322
    %v2324 = vrot.slane %v2323, 4
    %v2325 = vadd.f32 %v2323, %v2324
    %v2326 = vrot.slane %v2325, 2
    %v2327 = vadd.f32 %v2325, %v2326
    %v2328 = vrot.slane %v2327, 1
    %v2329 = vadd.f32 %v2327, %v2328
    %v2330 = vrcp.pop %v2329
    %v2331 = vmul.f32 %v2320, %v2330
    %v2332 = vmul.f32 %v2322, %v2330
    %v2333 = vmul.f32 %v2331, %v1751
    %v2334 = vmul.f32 %v2332, %v1752
    %v2335 = vadd.f32 %v2333, %v2334
    %v2336 = vrot.slane %v2335, 4
    %v2337 = vadd.f32 %v2335, %v2336
    %v2338 = vrot.slane %v2337, 2
    %v2339 = vadd.f32 %v2337, %v2338
    %v2340 = vrot.slane %v2339, 1
    %v2341 = vadd.f32 %v2339, %v2340
    %v2342 = vmax.f32 %v2307, %v2309
    %v2343 = vrot.slane %v2342, 4
    %v2344 = vmax.f32 %v2342, %v2343
    %v2345 = vrot.slane %v2344, 2
    %v2346 = vmax.f32 %v2344, %v2345
    %v2347 = vrot.slane %v2346, 1
    %v2348 = vmax.f32 %v2346, %v2347
    %v2349 = vsub.f32 %v2307, %v2348
    %v2350 = vsub.f32 %v2309, %v2348
    %v2351 = vmul.f32 %v2349, 1.442695
    %v2352 = vpow.pop %v2351
    %v2353 = vmul.f32 %v2350, 1.442695
    %v2354 = vpow.pop %v2353
    %v2355 = vadd.f32 %v2352, %v2354
    %v2356 = vrot.slane %v2355, 4
    %v2357 = vadd.f32 %v2355, %v2356
    %v2358 = vrot.slane %v2357, 2
    %v2359 = vadd.f32 %v2357, %v2358
    %v2360 = vrot.slane %v2359, 1
    %v2361 = vadd.f32 %v2359, %v2360
    %v2362 = vrcp.pop %v2361
    %v2363 = vmul.f32 %v2352, %v2362
    %v2364 = vmul.f32 %v2354, %v2362
    %v2365 = vmul.f32 %v2363, %v1753
    %v2366 = vmul.f32 %v2364, %v1754
    %v2367 = vadd.f32 %v2365, %v2366
    %v2368 = vrot.slane %v2367, 4
    %v2369 = vadd.f32 %v2367, %v2368
    %v2370 = vrot.slane %v2369, 2
    %v2371 = vadd.f32 %v2369, %v2370
    %v2372 = vrot.slane %v2371, 1
    %v2373 = vadd.f32 %v2371, %v2372
    %v2374 = vsel %vm2157, %v2341, %v2373
    %v2375 = vadd.f32 %v2374, %v2159
    %v2376 = vpack.c.bf16 %v2375, %v2375
    %v2377 = vld [vmem:[#allocation16 + $0x10] sm:$0xff]
    %v2378 = vld [vmem:[#allocation16 + $0x28] sm:$0xff]
    %v2379 = vld [vmem:[#allocation16 + $0x40] sm:$0xff]
    %v2380 = vld [vmem:[#allocation16 + $0x58] sm:$0xff]
    %v2381 = vld [vmem:[#allocation16 + $0x70] sm:$0xff]
    %v2382 = vld [vmem:[#allocation16 + $0x88] sm:$0xff]
    %v2383 = vld [vmem:[#allocation16 + $0xa0] sm:$0xff]
    %v2384 = vld [vmem:[#allocation16 + $0xb8] sm:$0xff]
    %v2385 = vld [vmem:[#allocation16 + $0xd0] sm:$0xff]
    %v2386 = vld [vmem:[#allocation16 + $0xe8] sm:$0xff]
    %v2387 = vld [vmem:[#allocation16 + $0x100] sm:$0xff]
    %v2388 = vld [vmem:[#allocation16 + $0x118] sm:$0xff]
    %v2389 = vld [vmem:[#allocation16 + $0x130] sm:$0xff]
    %v2390 = vld [vmem:[#allocation16 + $0x148] sm:$0xff]
    %v2391 = vld [vmem:[#allocation16 + $0x160] sm:$0xff]
    %v2392 = vld [vmem:[#allocation16 + $0x178] sm:$0xff]
    %v2394 = vlaneseq
    %v2395 = vshrl.u32 %v2394, 7
    %v2396 = vsub.s32 0, %v2395
    %v2397 = vrot.slane %v2048, %v2396
    %v2398 = vlaneseq
    %v2399 = vshrl.u32 %v2398, 7
    %v2400 = vsub.s32 1, %v2399
    %v2401 = vrot.slane %v2048, %v2400
    %v2420 = vunpack.c.l.b16 %v2377
    %v2421 = vunpack.c.h.b16 %v2377
    %v2422 = vunpack.c.l.b16 %v2378
    %v2423 = vunpack.c.h.b16 %v2378
    %v2424 = vunpack.c.l.b16 %v2379
    %v2425 = vunpack.c.h.b16 %v2379
    %v2426 = vunpack.c.l.b16 %v2380
    %v2427 = vunpack.c.h.b16 %v2380
    %v2428 = vunpack.c.l.b16 %v2381
    %v2429 = vunpack.c.h.b16 %v2381
    %v2430 = vunpack.c.l.b16 %v2382
    %v2431 = vunpack.c.h.b16 %v2382
    %v2432 = vunpack.c.l.b16 %v2383
    %v2433 = vunpack.c.h.b16 %v2383
    %v2434 = vunpack.c.l.b16 %v2384
    %v2435 = vunpack.c.h.b16 %v2384
    %v2436 = vunpack.c.l.b16 %v2385
    %v2437 = vunpack.c.h.b16 %v2385
    %v2438 = vunpack.c.l.b16 %v2386
    %v2439 = vunpack.c.h.b16 %v2386
    %v2440 = vunpack.c.l.b16 %v2387
    %v2441 = vunpack.c.h.b16 %v2387
    %v2442 = vunpack.c.l.b16 %v2388
    %v2443 = vunpack.c.h.b16 %v2388
    %v2444 = vunpack.c.l.b16 %v2389
    %v2445 = vunpack.c.h.b16 %v2389
    %v2446 = vunpack.c.l.b16 %v2390
    %v2447 = vunpack.c.h.b16 %v2390
    %v2448 = vunpack.c.l.b16 %v2391
    %v2449 = vunpack.c.h.b16 %v2391
    %v2450 = vunpack.c.l.b16 %v2392
    %v2451 = vunpack.c.h.b16 %v2392
    %v2452 = vpack.c.b16 %v2422, %v2420
    %v2453 = vpack.c.b16 %v2423, %v2421
    %v2454 = vpack.c.b16 %v2426, %v2424
    %v2455 = vpack.c.b16 %v2427, %v2425
    %v2456 = vpack.c.b16 %v2430, %v2428
    %v2457 = vpack.c.b16 %v2431, %v2429
    %v2458 = vpack.c.b16 %v2434, %v2432
    %v2459 = vpack.c.b16 %v2435, %v2433
    %v2460 = vpack.c.b16 %v2438, %v2436
    %v2461 = vpack.c.b16 %v2439, %v2437
    %v2462 = vpack.c.b16 %v2442, %v2440
    %v2463 = vpack.c.b16 %v2443, %v2441
    %v2464 = vpack.c.b16 %v2446, %v2444
    %v2465 = vpack.c.b16 %v2447, %v2445
    %v2466 = vpack.c.b16 %v2450, %v2448
    %v2467 = vpack.c.b16 %v2451, %v2449
    %2484 = vmatprep.subr.bf16.mxu0 %v2453
    %2485 = vmatpush1.bf16.msra.mxu0 %v2452
    %2486 = vmatprep.subr.bf16.mxu0 %v2455
    %2487 = vmatpush1.bf16.msra.mxu0 %v2454
    %2488 = vmatprep.subr.bf16.mxu0 %v2457
    %2489 = vmatpush1.bf16.msra.mxu0 %v2456
    %2490 = vmatprep.subr.bf16.mxu0 %v2459
    %2491 = vmatpush1.bf16.msra.mxu0 %v2458
    %2492 = vmatprep.subr.bf16.mxu0 %v2461
    %2493 = vmatpush1.bf16.msra.mxu0 %v2460
    %2494 = vmatprep.subr.bf16.mxu0 %v2463
    %2495 = vmatpush1.bf16.msra.mxu0 %v2462
    %2496 = vmatprep.subr.bf16.mxu0 %v2465
    %2497 = vmatpush1.bf16.msra.mxu0 %v2464
    %2498 = vmatprep.subr.bf16.mxu0 %v2467
    %2499 = vmatpush1.bf16.msra.mxu0 %v2466
    %2500 = vmatprep.subr.bf16.mxu0 0
    %2501 = vmatpush1.bf16.msra.mxu0 0
    %2502 = vmatprep.subr.bf16.mxu0 0
    %2503 = vmatpush1.bf16.msra.mxu0 0
    %2504 = vmatprep.subr.bf16.mxu0 0
    %2505 = vmatpush1.bf16.msra.mxu0 0
    %2506 = vmatprep.subr.bf16.mxu0 0
    %2507 = vmatpush1.bf16.msra.mxu0 0
    %2508 = vmatprep.subr.bf16.mxu0 0
    %2509 = vmatpush1.bf16.msra.mxu0 0
    %2510 = vmatprep.subr.bf16.mxu0 0
    %2511 = vmatpush1.bf16.msra.mxu0 0
    %2512 = vmatprep.subr.bf16.mxu0 0
    %2513 = vmatpush1.bf16.msra.mxu0 0
    %2514 = vmatprep.subr.bf16.mxu0 0
    %2515 = vmatpush1.bf16.msra.mxu0 0
    %2516 = vmatprep.mubr.bf16.mxu0 0
    %2517 = vmatmul.mubr.bf16.gmra.mrb[0].mxu0 %v2376
    %v2518 = vpop.f32.mrb[0].mxu0
    %v2519 = vadd.f32 %v2397, %v2518
    %v2520 = vpop.f32.mrb[0].mxu0
    %v2521 = vadd.f32 %v2401, %v2520
    %v2522 = vpop.f32.mrb[0].mxu0
    %v2523 = vpop.f32.mrb[0].mxu0
    %2524 = vdwg.mxu0
    %v2527 = vcombine.low %v2519, %v2521
    %v2529 = vunpack.c.l.s4 1983009808
    %v2530 = vunpack.c.0.s8 %v2529
    %v2531 = vlaneseq
    %v2532 = vshrl.u32 %v2531, 7
    %v2533 = vsub.s32 %v2530, %v2532
    %v2534 = vrot.slane %v2527, %v2533
    %2536 = vst [vmem:[#allocation17] sm:$0xf] %v2534
    // Predicated region
    $region62: #{tpu_custom_call.1} parent=1 // pred_check
      _
    $region63: #{tpu_custom_call.1} parent=1 // pred_check_branch
      %2538 = sbr.rel (0) target = $region65
    $region64: #{tpu_custom_call.1} parent=1 // pred_region
      %s2540 = ssub.s32 64, 64
      %2541 = vsyncadd [#allocation6], %s2540
      %s2543 = sshll.u32 [#allocation17], 4
      %s2544 = int_to_ptr.vmem [resolvable:$true] %s2543
      %2546 = dma.vmem_to_hbm [thread:$0]  %s2544, 64, %s8, [#allocation6]
    $region65: #{tpu_custom_call.1} parent=1 // pred_fallthru
      _
    // Predicated region
    $region66: #{tpu_custom_call.1} parent=1 // pred_check
      _
    $region67: #{tpu_custom_call.1} parent=1 // pred_check_branch
      %2548 = sbr.rel (0) target = $region69
    $region68: #{tpu_custom_call.1} parent=1 // pred_region
      %2549 = dma.done [#allocation6], 64
    $region69: #{tpu_custom_call.1} parent=1 // pred_fallthru
      _
    %2550 = vsyncpa [#allocation5], 1
    %2551 = vsyncpa [#allocation12], 1
    %2552 = vsyncpa [#allocation15], 1
    %2553 = vsyncpa [#allocation6], 1
    %2554 = vsyncpa [#allocation7], 1
    %2555 = vsyncpa [#allocation8], 1

</llo_original>
